<compile_context>
chip_gen: v7x
topology: tpu7x:2x2x1
jax: 0.10.0
libtpu: 0.0.40
codegen_flags: <defaults>
</compile_context>

<pallas_src>
import functools
import itertools

import numpy as np
import jax
import jax.numpy as jnp
from jax.experimental import pallas as pl
from jax.experimental.pallas import tpu as pltpu

BN_EPS = 1e-5
D_IN = (1, 28, 28)          # the module's default D_in; Cin must be 1 (Conv2d(1, 8, ...))
H_HIDDEN = 256
GRID_H, GRID_W = 3, 3


# ---------------------------------------------------------------------------
# TPS constants (host-side numpy in float64, cast to f32 — the precomputed
# buffers of TPSGridGen.__init__ in the PyTorch module).
# ---------------------------------------------------------------------------
def make_tps_constants(H, W, grid_h=GRID_H, grid_w=GRID_W, r1=0.9, r2=0.9):
    pts = np.array(list(itertools.product(
        np.arange(-r1, r1 + 1e-5, 2.0 * r1 / (grid_h - 1)),
        np.arange(-r2, r2 + 1e-5, 2.0 * r2 / (grid_w - 1)))), dtype=np.float64)
    cp = pts[:, ::-1].copy()                          # swap (y, x) -> (x, y)
    K = cp.shape[0]

    def U(d2):
        out = np.zeros_like(d2)
        nz = d2 > 0
        out[nz] = 0.5 * d2[nz] * np.log(d2[nz])
        return out

    # forward kernel and its inverse
    d2 = np.sum((cp[:, None, :] - cp[None, :, :]) ** 2, axis=-1)
    fk = np.zeros((K + 3, K + 3))
    fk[:K, :K] = U(d2)
    fk[:K, K] = 1.0
    fk[K, :K] = 1.0
    fk[:K, K + 1:] = cp
    fk[K + 1:, :K] = cp.T
    inv = np.linalg.inv(fk)

    # target coordinates (p = i*W + j), normalised with align_corners=True convention
    iy, ix = np.meshgrid(np.arange(H), np.arange(W), indexing="ij")
    tx = ix.reshape(-1) * 2.0 / (W - 1) - 1.0
    ty = iy.reshape(-1) * 2.0 / (H - 1) - 1.0
    tc = np.stack([tx, ty], axis=1)                   # (HW, 2) in (x, y)
    d2t = np.sum((tc[:, None, :] - cp[None, :, :]) ** 2, axis=-1)
    repr_mat = np.concatenate([U(d2t), np.ones((H * W, 1)), tc], axis=1)   # (HW, K+3)
    A = repr_mat @ inv[:, :K]                         # (HW, K); A @ cp == tc exactly

    return (jnp.asarray(cp, jnp.float32),             # (K, 2) target control points (x, y)
            jnp.asarray(A.T, jnp.float32),            # (K, HW)
            jnp.asarray(tc.T, jnp.float32))           # (2, HW) identity source grid


# ---------------------------------------------------------------------------
# Pallas kernels
# ---------------------------------------------------------------------------
def _matmul_bn_act_kernel(a_ref, w_ref, g_ref, b_ref, o_ref, *, relu):
    # A @ W on the MXU, training-mode BatchNorm over the row axis (= N*H*W) with
    # two-pass statistics, then ReLU (ReLU commutes with the 2x2 max-pool applied
    # afterwards in the wrapper).  Only the true C output channels are stored.
    y = jnp.dot(a_ref[...], w_ref[...], preferred_element_type=jnp.float32)
    inv_m = 1.0 / y.shape[0]
    mean = jnp.sum(y, axis=0, keepdims=True) * inv_m
    d = y - mean
    var = jnp.sum(d * d, axis=0, keepdims=True) * inv_m
    y = d * jax.lax.rsqrt(var + BN_EPS) * g_ref[...] + b_ref[...]
    if relu:
        y = jnp.maximum(y, 0.0)
    o_ref[...] = y


def conv_bn_relu(a, w, gamma, beta, *, relu=True):
    """im2col conv (M,K)@(K,C) + BN + ReLU; stores only the true C channels."""
    M = a.shape[0]
    c = w.shape[1]
    return pl.pallas_call(
        functools.partial(_matmul_bn_act_kernel, relu=relu),
        out_shape=jax.ShapeDtypeStruct((M, c), jnp.float32),
        in_specs=[pl.BlockSpec(memory_space=pltpu.MemorySpace.VMEM)] * 4,
        out_specs=pl.BlockSpec(memory_space=pltpu.MemorySpace.VMEM),
    )(a, w, gamma.reshape(1, c), beta.reshape(1, c))


def _head_kernel(a_ref, wfc_ref, g_ref, b_ref, wreg_ref, breg_ref, o_ref, *, n, s):
    # fc_loc_net (1x1 conv 10->256 + BN + ReLU), AvgPool(3x3) as s static row-slice
    # adds (input is laid out spatial-major, rows = j*n + batch), and the regression
    # Linear — all fused.  The regression weight/bias already have the control-point
    # subtraction and the (9,2)->(2,9) transpose folded in, so o = dtheta^T flat.
    y = jnp.dot(a_ref[...], wfc_ref[...], preferred_element_type=jnp.float32)   # (s*n, 256)
    inv_m = 1.0 / (s * n)
    mean = jnp.sum(y, axis=0, keepdims=True) * inv_m
    d = y - mean
    var = jnp.sum(d * d, axis=0, keepdims=True) * inv_m
    y = jnp.maximum(d * jax.lax.rsqrt(var + BN_EPS) * g_ref[...] + b_ref[...], 0.0)
    pooled = y[0:n, :]
    for j in range(1, s):
        pooled = pooled + y[j * n:(j + 1) * n, :]
    pooled = pooled * (1.0 / s)                                                  # (n, 256)
    o_ref[...] = (jnp.dot(pooled, wreg_ref[...], preferred_element_type=jnp.float32)
                  + breg_ref[...])                                               # (n, 18)


def loc_head(a_sm, w_fc, gamma, beta, w_dreg, b_dreg, *, n, s):
    c_out = w_dreg.shape[1]
    return pl.pallas_call(
        functools.partial(_head_kernel, n=n, s=s),
        out_shape=jax.ShapeDtypeStruct((n, c_out), jnp.float32),
        in_specs=[pl.BlockSpec(memory_space=pltpu.MemorySpace.VMEM)] * 6,
        out_specs=pl.BlockSpec(memory_space=pltpu.MemorySpace.VMEM),
    )(a_sm, w_fc, gamma.reshape(1, -1), beta.reshape(1, -1),
      w_dreg, b_dreg.reshape(1, -1))


def _tps_sampler_kernel(dthetaT_ref, at_ref, tgt_ref, img_ref, o_ref, *, H, W, B):
    HW = H * W
    at = at_ref[...]                                   # (K, HW)
    tgt = tgt_ref[...]                                 # (2, HW)
    # Hoisted iota constants (float "tent" gather weights below).
    row_idx = jax.lax.broadcasted_iota(jnp.int32, (H, HW), 0).astype(jnp.float32)
    col_idx = jax.lax.broadcasted_iota(jnp.int32, (W, HW), 0).astype(jnp.float32)
    for b in range(B):                                 # short static per-sample loop
        # TPS grid: source = target_coords + A @ (theta - target_control_points)
        # (algebraically identical to target_coordinate_repr @ inv_kernel @ [theta;0]).
        src = tgt + jnp.dot(dthetaT_ref[b], at, preferred_element_type=jnp.float32)  # (2, HW)
        # align_corners=True mapping from [-1, 1] to pixel coordinates
        fx = (src[0:1, :] + 1.0) * (0.5 * (W - 1))
        fy = (src[1:2, :] + 1.0) * (0.5 * (H - 1))
        # Float tent weights == exact bilinear weights, and already zero for any
        # out-of-range tap (padding_mode='zeros') — no floor/where/clip needed.
        wx = jnp.maximum(1.0 - jnp.abs(col_idx - fx), 0.0)      # (W, HW)
        wy = jnp.maximum(1.0 - jnp.abs(row_idx - fy), 0.0)      # (H, HW)
        # Separable bilinear gather on the natural (H, W) image layout:
        #   columns: MXU matmul img(H,W) @ wx(W,HW) -> (H,HW)
        #   rows   : elementwise blend + sublane reduce (VPU/XLU).
        cols = jnp.dot(img_ref[b], wx, preferred_element_type=jnp.float32)       # (H, HW)
        o_ref[pl.ds(b, 1), :] = jnp.sum(cols * wy, axis=0, keepdims=True)        # (1, HW)


def tps_grid_sample(img, dthetaT, at, tgt):
    """img: (N, H, W) single-channel images (natural layout); dthetaT: (N, 2, K)."""
    n, h, w = img.shape
    k = at.shape[0]
    hw = h * w
    bsz = min(8, n)                                    # sublane-dense output stores
    npad = pl.cdiv(n, bsz) * bsz
    if npad != n:
        img = jnp.pad(img, ((0, npad - n), (0, 0), (0, 0)))
        dthetaT = jnp.pad(dthetaT, ((0, npad - n), (0, 0), (0, 0)))
    out = pl.pallas_call(
        functools.partial(_tps_sampler_kernel, H=h, W=w, B=bsz),
        out_shape=jax.ShapeDtypeStruct((npad, hw), jnp.float32),
        grid=(npad // bsz,),
        in_specs=[
            pl.BlockSpec((bsz, 2, k), lambda i: (i, 0, 0)),
            pl.BlockSpec((k, hw), lambda i: (0, 0)),
            pl.BlockSpec((2, hw), lambda i: (0, 0)),
            pl.BlockSpec((bsz, h, w), lambda i: (i, 0, 0)),
        ],
        out_specs=pl.BlockSpec((bsz, hw), lambda i: (i, 0)),
        compiler_params=pltpu.CompilerParams(
            dimension_semantics=("parallel",),         # shards across TCs on v7x
        ),
    )(dthetaT, at, tgt, img)
    return out[:n]


# ---------------------------------------------------------------------------
# JAX glue (layout plumbing only)
# ---------------------------------------------------------------------------
def im2col(x_nhwc, kh, kw):
    n, h, w, c = x_nhwc.shape
    ho, wo = h - kh + 1, w - kw + 1
    cols = []
    for di in range(kh):
        for dj in range(kw):
            cols.append(x_nhwc[:, di:di + ho, dj:dj + wo, :])
    p = jnp.concatenate(cols, axis=-1)            # K ordered as (di, dj, cin)
    return p.reshape(n * ho * wo, kh * kw * c), (ho, wo)


def maxpool2x2(x_nhwc):
    n, h, w, c = x_nhwc.shape
    hc, wc = (h // 2) * 2, (w // 2) * 2
    x = x_nhwc[:, :hc, :wc, :]
    x = x.reshape(n, hc // 2, 2, wc // 2, 2, c)
    return jnp.max(x, axis=(2, 4))


def init_params(key):
    _, hin, win = D_IN
    cp, at, tgt_t = make_tps_constants(hin, win)
    k1, k2, k3 = jax.random.split(key, 3)
    # PyTorch conv weight layout (Cout, Cin, kh, kw) -> im2col matrix (kh*kw*Cin, Cout)
    w_conv1 = 0.1 * jax.random.normal(k1, (8, 1, 7, 7), jnp.float32)
    w_conv2 = 0.1 * jax.random.normal(k2, (10, 8, 5, 5), jnp.float32)
    w_fc = 0.1 * jax.random.normal(k3, (H_HIDDEN, 10, 1, 1), jnp.float32)
    # reg_loc_net: weight.fill_(0), bias = target_control_points.view(-1)
    w_reg = jnp.zeros((H_HIDDEN, GRID_H * GRID_W * 2), jnp.float32)
    b_reg = cp.reshape(-1)
    # Fold (theta - target_control_points) and the (9,2)->(2,9) transpose into the
    # regression weights: columns permuted to [x0..x8, y0..y8], cp subtracted from
    # the bias, so the head kernel emits flattened dtheta^T directly.
    perm = jnp.asarray(np.concatenate([np.arange(0, 18, 2), np.arange(1, 18, 2)]),
                       jnp.int32)
    w_dreg = w_reg[:, perm]
    b_dreg = (b_reg - cp.reshape(-1))[perm]
    return dict(
        w_conv1=jnp.transpose(w_conv1, (2, 3, 1, 0)).reshape(7 * 7 * 1, 8),
        g1=jnp.ones((8,), jnp.float32), b1=jnp.zeros((8,), jnp.float32),
        w_conv2=jnp.transpose(w_conv2, (2, 3, 1, 0)).reshape(5 * 5 * 8, 10),
        g2=jnp.ones((10,), jnp.float32), b2=jnp.zeros((10,), jnp.float32),
        w_fc=jnp.transpose(w_fc, (2, 3, 1, 0)).reshape(10, H_HIDDEN),
        g3=jnp.ones((H_HIDDEN,), jnp.float32), b3=jnp.zeros((H_HIDDEN,), jnp.float32),
        w_dreg=w_dreg, b_dreg=b_dreg,
        # TPSGridGen precomputed buffers
        at=at,                     # (9, HW) = (target_coordinate_repr @ inv_kernel[:, :9])^T
        tgt_t=tgt_t,               # (2, HW) identity source grid
    )


def spatial_transformer_forward(x, params):
    cin, hin, win = D_IN
    x = x.reshape(-1, cin, hin, win).astype(jnp.float32)      # x.view(-1, *D_in), NCHW
    n = x.shape[0]
    x_nhwc = jnp.transpose(x, (0, 2, 3, 1))

    # conv_loc_net: Conv(1->8,7x7) + BN + MaxPool(2) + ReLU  (ReLU & MaxPool commute)
    a, (h1, w1) = im2col(x_nhwc, 7, 7)
    y = conv_bn_relu(a, params["w_conv1"], params["g1"], params["b1"])
    y = maxpool2x2(y.reshape(n, h1, w1, 8))                   # (N, 11, 11, 8)

    # Conv(8->10,5x5) + BN + MaxPool(2) + ReLU
    a, (h2, w2) = im2col(y, 5, 5)
    y = conv_bn_relu(a, params["w_conv2"], params["g2"], params["b2"])
    y = maxpool2x2(y.reshape(n, h2, w2, 10))                  # (N, 3, 3, 10)

    # fc_loc_net (1x1 conv + BN + ReLU) + AvgPool(3) + reg Linear — one fused kernel.
    # Spatial-major layout (9*N, C) so the kernel pools with 9 row-slice adds.
    n3, h3, w3, c3 = y.shape
    s3 = h3 * w3
    a_sm = jnp.transpose(y.reshape(n3, s3, c3), (1, 0, 2)).reshape(s3 * n3, c3)
    dtheta = loc_head(a_sm, params["w_fc"], params["g3"], params["b3"],
                      params["w_dreg"], params["b_dreg"], n=n3, s=s3)     # (N, 18)

    # TPS grid generation + bilinear grid_sample (single input channel, Cin == 1)
    dthetaT = dtheta.reshape(n, 2, GRID_H * GRID_W)                       # (N, 2, 9)
    img = x.reshape(n, hin, win)                                          # natural layout
    out = tps_grid_sample(img, dthetaT, params["at"], params["tgt_t"])    # (N, HW)
    return out.reshape(n, 1, hin, win)


if __name__ == "__main__":
    key = jax.random.PRNGKey(0)
    kx, kp = jax.random.split(key)
    x = jax.random.normal(kx, (2,) + D_IN, jnp.float32)
    params = init_params(kp)

    fwd = jax.jit(spatial_transformer_forward)
    out = jax.block_until_ready(fwd(x, params))

    assert out.shape == (2, 1, 28, 28)
    # zero-init regression weight + control-point bias -> identity TPS warp -> out ~= x
    max_err = float(jnp.max(jnp.abs(out - x)))
    assert max_err < 1e-3, max_err
    print("KERNEL_OK")
</pallas_src>

<mosaic_0001>
module attributes {stable_mosaic.version = 11 : i64} {
  func.func @_matmul_bn_act_kernel(%arg0: memref<968x49xf32, #tpu.memory_space<vmem>>, %arg1: memref<49x8xf32, #tpu.memory_space<vmem>>, %arg2: memref<1x8xf32, #tpu.memory_space<vmem>>, %arg3: memref<1x8xf32, #tpu.memory_space<vmem>>, %arg4: memref<968x8xf32, #tpu.memory_space<vmem>>) attributes {dimension_semantics = [], scalar_prefetch = 0 : i64, scratch_operands = 0 : i64, tpu.core_type = #tpu.core_type<tc>} {
    %c0 = arith.constant 0 : index
    %c0_0 = arith.constant 0 : index
    %0 = vector.load %arg0[%c0, %c0_0] : memref<968x49xf32, #tpu.memory_space<vmem>>, vector<968x49xf32>
    %c0_1 = arith.constant 0 : index
    %c0_2 = arith.constant 0 : index
    %1 = vector.load %arg1[%c0_1, %c0_2] : memref<49x8xf32, #tpu.memory_space<vmem>>, vector<49x8xf32>
    %cst = arith.constant dense<0.000000e+00> : vector<968x8xf32>
    %2 = tpu.matmul %0, %1, %cst {dimension_numbers = #tpu.dot_dimension_numbers<[1], [0], [0], [1], [0, 0, 1, 1], [], []>} : vector<968x49xf32>, vector<49x8xf32>, vector<968x8xf32> -> vector<968x8xf32>
    %cst_3 = arith.constant dense<0.000000e+00> : vector<8xf32>
    %3 = vector.multi_reduction <add>, %2, %cst_3 [0] : vector<968x8xf32> to vector<8xf32>
    %4 = vector.shape_cast %3 : vector<8xf32> to vector<1x8xf32>
    %cst_4 = arith.constant 0.00103305781 : f32
    %5 = vector.broadcast %cst_4 : f32 to vector<1x8xf32>
    %6 = arith.mulf %4, %5 : vector<1x8xf32>
    %7 = vector.broadcast %6 : vector<1x8xf32> to vector<968x8xf32>
    %8 = arith.subf %2, %7 : vector<968x8xf32>
    %9 = arith.mulf %8, %8 : vector<968x8xf32>
    %cst_5 = arith.constant dense<0.000000e+00> : vector<8xf32>
    %10 = vector.multi_reduction <add>, %9, %cst_5 [0] : vector<968x8xf32> to vector<8xf32>
    %11 = vector.shape_cast %10 : vector<8xf32> to vector<1x8xf32>
    %cst_6 = arith.constant 0.00103305781 : f32
    %12 = vector.broadcast %cst_6 : f32 to vector<1x8xf32>
    %13 = arith.mulf %11, %12 : vector<1x8xf32>
    %cst_7 = arith.constant 9.99999974E-6 : f32
    %14 = vector.broadcast %cst_7 : f32 to vector<1x8xf32>
    %15 = arith.addf %13, %14 : vector<1x8xf32>
    %16 = math.rsqrt %15 : vector<1x8xf32>
    %17 = vector.broadcast %16 : vector<1x8xf32> to vector<968x8xf32>
    %18 = arith.mulf %8, %17 : vector<968x8xf32>
    %c0_8 = arith.constant 0 : index
    %c0_9 = arith.constant 0 : index
    %19 = vector.load %arg2[%c0_8, %c0_9] : memref<1x8xf32, #tpu.memory_space<vmem>>, vector<1x8xf32>
    %20 = vector.broadcast %19 : vector<1x8xf32> to vector<968x8xf32>
    %21 = arith.mulf %18, %20 : vector<968x8xf32>
    %c0_10 = arith.constant 0 : index
    %c0_11 = arith.constant 0 : index
    %22 = vector.load %arg3[%c0_10, %c0_11] : memref<1x8xf32, #tpu.memory_space<vmem>>, vector<1x8xf32>
    %23 = vector.broadcast %22 : vector<1x8xf32> to vector<968x8xf32>
    %24 = arith.addf %21, %23 : vector<968x8xf32>
    %cst_12 = arith.constant 0.000000e+00 : f32
    %25 = vector.broadcast %cst_12 : f32 to vector<968x8xf32>
    %26 = arith.maximumf %24, %25 : vector<968x8xf32>
    %c0_13 = arith.constant 0 : index
    %c0_14 = arith.constant 0 : index
    %27 = vector.load %arg4[%c0_13, %c0_14] : memref<968x8xf32, #tpu.memory_space<vmem>>, vector<968x8xf32>
    tpu.vector_store %arg4[%c0_13, %c0_14], %26 {strides = array<i32>} : memref<968x8xf32, #tpu.memory_space<vmem>>, vector<968x8xf32>,
    return
  }
}

module attributes {stable_mosaic.version = 11 : i64} {
  func.func @_matmul_bn_act_kernel(%arg0: memref<98x200xf32, #tpu.memory_space<vmem>>, %arg1: memref<200x10xf32, #tpu.memory_space<vmem>>, %arg2: memref<1x10xf32, #tpu.memory_space<vmem>>, %arg3: memref<1x10xf32, #tpu.memory_space<vmem>>, %arg4: memref<98x10xf32, #tpu.memory_space<vmem>>) attributes {dimension_semantics = [], scalar_prefetch = 0 : i64, scratch_operands = 0 : i64, tpu.core_type = #tpu.core_type<tc>} {
    %c0 = arith.constant 0 : index
    %c0_0 = arith.constant 0 : index
    %0 = vector.load %arg0[%c0, %c0_0] : memref<98x200xf32, #tpu.memory_space<vmem>>, vector<98x200xf32>
    %c0_1 = arith.constant 0 : index
    %c0_2 = arith.constant 0 : index
    %1 = vector.load %arg1[%c0_1, %c0_2] : memref<200x10xf32, #tpu.memory_space<vmem>>, vector<200x10xf32>
    %cst = arith.constant dense<0.000000e+00> : vector<98x10xf32>
    %2 = tpu.matmul %0, %1, %cst {dimension_numbers = #tpu.dot_dimension_numbers<[1], [0], [0], [1], [0, 0, 1, 1], [], []>} : vector<98x200xf32>, vector<200x10xf32>, vector<98x10xf32> -> vector<98x10xf32>
    %cst_3 = arith.constant dense<0.000000e+00> : vector<10xf32>
    %3 = vector.multi_reduction <add>, %2, %cst_3 [0] : vector<98x10xf32> to vector<10xf32>
    %4 = vector.shape_cast %3 : vector<10xf32> to vector<1x10xf32>
    %cst_4 = arith.constant 0.0102040814 : f32
    %5 = vector.broadcast %cst_4 : f32 to vector<1x10xf32>
    %6 = arith.mulf %4, %5 : vector<1x10xf32>
    %7 = vector.broadcast %6 : vector<1x10xf32> to vector<98x10xf32>
    %8 = arith.subf %2, %7 : vector<98x10xf32>
    %9 = arith.mulf %8, %8 : vector<98x10xf32>
    %cst_5 = arith.constant dense<0.000000e+00> : vector<10xf32>
    %10 = vector.multi_reduction <add>, %9, %cst_5 [0] : vector<98x10xf32> to vector<10xf32>
    %11 = vector.shape_cast %10 : vector<10xf32> to vector<1x10xf32>
    %cst_6 = arith.constant 0.0102040814 : f32
    %12 = vector.broadcast %cst_6 : f32 to vector<1x10xf32>
    %13 = arith.mulf %11, %12 : vector<1x10xf32>
    %cst_7 = arith.constant 9.99999974E-6 : f32
    %14 = vector.broadcast %cst_7 : f32 to vector<1x10xf32>
    %15 = arith.addf %13, %14 : vector<1x10xf32>
    %16 = math.rsqrt %15 : vector<1x10xf32>
    %17 = vector.broadcast %16 : vector<1x10xf32> to vector<98x10xf32>
    %18 = arith.mulf %8, %17 : vector<98x10xf32>
    %c0_8 = arith.constant 0 : index
    %c0_9 = arith.constant 0 : index
    %19 = vector.load %arg2[%c0_8, %c0_9] : memref<1x10xf32, #tpu.memory_space<vmem>>, vector<1x10xf32>
    %20 = vector.broadcast %19 : vector<1x10xf32> to vector<98x10xf32>
    %21 = arith.mulf %18, %20 : vector<98x10xf32>
    %c0_10 = arith.constant 0 : index
    %c0_11 = arith.constant 0 : index
    %22 = vector.load %arg3[%c0_10, %c0_11] : memref<1x10xf32, #tpu.memory_space<vmem>>, vector<1x10xf32>
    %23 = vector.broadcast %22 : vector<1x10xf32> to vector<98x10xf32>
    %24 = arith.addf %21, %23 : vector<98x10xf32>
    %cst_12 = arith.constant 0.000000e+00 : f32
    %25 = vector.broadcast %cst_12 : f32 to vector<98x10xf32>
    %26 = arith.maximumf %24, %25 : vector<98x10xf32>
    %c0_13 = arith.constant 0 : index
    %c0_14 = arith.constant 0 : index
    %27 = vector.load %arg4[%c0_13, %c0_14] : memref<98x10xf32, #tpu.memory_space<vmem>>, vector<98x10xf32>
    tpu.vector_store %arg4[%c0_13, %c0_14], %26 {strides = array<i32>} : memref<98x10xf32, #tpu.memory_space<vmem>>, vector<98x10xf32>,
    return
  }
}

module attributes {stable_mosaic.version = 11 : i64} {
  func.func @_head_kernel(%arg0: memref<18x10xf32, #tpu.memory_space<vmem>>, %arg1: memref<10x256xf32, #tpu.memory_space<vmem>>, %arg2: memref<1x256xf32, #tpu.memory_space<vmem>>, %arg3: memref<1x256xf32, #tpu.memory_space<vmem>>, %arg4: memref<256x18xf32, #tpu.memory_space<vmem>>, %arg5: memref<1x18xf32, #tpu.memory_space<vmem>>, %arg6: memref<2x18xf32, #tpu.memory_space<vmem>>) attributes {dimension_semantics = [], scalar_prefetch = 0 : i64, scratch_operands = 0 : i64, tpu.core_type = #tpu.core_type<tc>} {
    %c0 = arith.constant 0 : index
    %c0_0 = arith.constant 0 : index
    %0 = vector.load %arg0[%c0, %c0_0] : memref<18x10xf32, #tpu.memory_space<vmem>>, vector<18x10xf32>
    %c0_1 = arith.constant 0 : index
    %c0_2 = arith.constant 0 : index
    %1 = vector.load %arg1[%c0_1, %c0_2] : memref<10x256xf32, #tpu.memory_space<vmem>>, vector<10x256xf32>
    %cst = arith.constant dense<0.000000e+00> : vector<18x256xf32>
    %2 = tpu.matmul %0, %1, %cst {dimension_numbers = #tpu.dot_dimension_numbers<[1], [0], [0], [1], [0, 0, 1, 1], [], []>} : vector<18x10xf32>, vector<10x256xf32>, vector<18x256xf32> -> vector<18x256xf32>
    %cst_3 = arith.constant dense<0.000000e+00> : vector<256xf32>
    %3 = vector.multi_reduction <add>, %2, %cst_3 [0] : vector<18x256xf32> to vector<256xf32>
    %4 = vector.shape_cast %3 : vector<256xf32> to vector<1x256xf32>
    %cst_4 = arith.constant 0.055555556 : f32
    %5 = vector.broadcast %cst_4 : f32 to vector<1x256xf32>
    %6 = arith.mulf %4, %5 : vector<1x256xf32>
    %7 = vector.broadcast %6 : vector<1x256xf32> to vector<18x256xf32>
    %8 = arith.subf %2, %7 : vector<18x256xf32>
    %9 = arith.mulf %8, %8 : vector<18x256xf32>
    %cst_5 = arith.constant dense<0.000000e+00> : vector<256xf32>
    %10 = vector.multi_reduction <add>, %9, %cst_5 [0] : vector<18x256xf32> to vector<256xf32>
    %11 = vector.shape_cast %10 : vector<256xf32> to vector<1x256xf32>
    %cst_6 = arith.constant 0.055555556 : f32
    %12 = vector.broadcast %cst_6 : f32 to vector<1x256xf32>
    %13 = arith.mulf %11, %12 : vector<1x256xf32>
    %cst_7 = arith.constant 9.99999974E-6 : f32
    %14 = vector.broadcast %cst_7 : f32 to vector<1x256xf32>
    %15 = arith.addf %13, %14 : vector<1x256xf32>
    %16 = math.rsqrt %15 : vector<1x256xf32>
    %17 = vector.broadcast %16 : vector<1x256xf32> to vector<18x256xf32>
    %18 = arith.mulf %8, %17 : vector<18x256xf32>
    %c0_8 = arith.constant 0 : index
    %c0_9 = arith.constant 0 : index
    %19 = vector.load %arg2[%c0_8, %c0_9] : memref<1x256xf32, #tpu.memory_space<vmem>>, vector<1x256xf32>
    %20 = vector.broadcast %19 : vector<1x256xf32> to vector<18x256xf32>
    %21 = arith.mulf %18, %20 : vector<18x256xf32>
    %c0_10 = arith.constant 0 : index
    %c0_11 = arith.constant 0 : index
    %22 = vector.load %arg3[%c0_10, %c0_11] : memref<1x256xf32, #tpu.memory_space<vmem>>, vector<1x256xf32>
    %23 = vector.broadcast %22 : vector<1x256xf32> to vector<18x256xf32>
    %24 = arith.addf %21, %23 : vector<18x256xf32>
    %cst_12 = arith.constant 0.000000e+00 : f32
    %25 = vector.broadcast %cst_12 : f32 to vector<18x256xf32>
    %26 = arith.maximumf %24, %25 : vector<18x256xf32>
    %27 = vector.extract_strided_slice %26 {offsets = [0, 0], sizes = [2, 256], strides = [1, 1]} : vector<18x256xf32> to vector<2x256xf32>
    %28 = vector.extract_strided_slice %26 {offsets = [2, 0], sizes = [2, 256], strides = [1, 1]} : vector<18x256xf32> to vector<2x256xf32>
    %29 = arith.addf %27, %28 : vector<2x256xf32>
    %30 = vector.extract_strided_slice %26 {offsets = [4, 0], sizes = [2, 256], strides = [1, 1]} : vector<18x256xf32> to vector<2x256xf32>
    %31 = arith.addf %29, %30 : vector<2x256xf32>
    %32 = vector.extract_strided_slice %26 {offsets = [6, 0], sizes = [2, 256], strides = [1, 1]} : vector<18x256xf32> to vector<2x256xf32>
    %33 = arith.addf %31, %32 : vector<2x256xf32>
    %34 = vector.extract_strided_slice %26 {offsets = [8, 0], sizes = [2, 256], strides = [1, 1]} : vector<18x256xf32> to vector<2x256xf32>
    %35 = arith.addf %33, %34 : vector<2x256xf32>
    %36 = vector.extract_strided_slice %26 {offsets = [10, 0], sizes = [2, 256], strides = [1, 1]} : vector<18x256xf32> to vector<2x256xf32>
    %37 = arith.addf %35, %36 : vector<2x256xf32>
    %38 = vector.extract_strided_slice %26 {offsets = [12, 0], sizes = [2, 256], strides = [1, 1]} : vector<18x256xf32> to vector<2x256xf32>
    %39 = arith.addf %37, %38 : vector<2x256xf32>
    %40 = vector.extract_strided_slice %26 {offsets = [14, 0], sizes = [2, 256], strides = [1, 1]} : vector<18x256xf32> to vector<2x256xf32>
    %41 = arith.addf %39, %40 : vector<2x256xf32>
    %42 = vector.extract_strided_slice %26 {offsets = [16, 0], sizes = [2, 256], strides = [1, 1]} : vector<18x256xf32> to vector<2x256xf32>
    %43 = arith.addf %41, %42 : vector<2x256xf32>
    %cst_13 = arith.constant 0.111111112 : f32
    %44 = vector.broadcast %cst_13 : f32 to vector<2x256xf32>
    %45 = arith.mulf %43, %44 : vector<2x256xf32>
    %c0_14 = arith.constant 0 : index
    %c0_15 = arith.constant 0 : index
    %46 = vector.load %arg4[%c0_14, %c0_15] : memref<256x18xf32, #tpu.memory_space<vmem>>, vector<256x18xf32>
    %cst_16 = arith.constant dense<0.000000e+00> : vector<2x18xf32>
    %47 = tpu.matmul %45, %46, %cst_16 {dimension_numbers = #tpu.dot_dimension_numbers<[1], [0], [0], [1], [0, 0, 1, 1], [], []>} : vector<2x256xf32>, vector<256x18xf32>, vector<2x18xf32> -> vector<2x18xf32>
    %c0_17 = arith.constant 0 : index
    %c0_18 = arith.constant 0 : index
    %48 = vector.load %arg5[%c0_17, %c0_18] : memref<1x18xf32, #tpu.memory_space<vmem>>, vector<1x18xf32>
    %49 = vector.broadcast %48 : vector<1x18xf32> to vector<2x18xf32>
    %50 = arith.addf %47, %49 : vector<2x18xf32>
    %c0_19 = arith.constant 0 : index
    %c0_20 = arith.constant 0 : index
    %51 = vector.load %arg6[%c0_19, %c0_20] : memref<2x18xf32, #tpu.memory_space<vmem>>, vector<2x18xf32>
    tpu.vector_store %arg6[%c0_19, %c0_20], %50 {strides = array<i32>} : memref<2x18xf32, #tpu.memory_space<vmem>>, vector<2x18xf32>,
    return
  }
}

module attributes {stable_mosaic.version = 11 : i64} {
  func.func @_tps_sampler_kernel(%arg0: i32, %arg1: memref<2x2x9xf32, #tpu.memory_space<vmem>>, %arg2: memref<9x784xf32, #tpu.memory_space<vmem>>, %arg3: memref<2x784xf32, #tpu.memory_space<vmem>>, %arg4: memref<2x28x28xf32, #tpu.memory_space<vmem>>, %arg5: memref<2x784xf32, #tpu.memory_space<vmem>>) attributes {dimension_semantics = [#tpu.dimension_semantics<parallel>], iteration_bounds = array<i64: 1>, scalar_prefetch = 0 : i64, scratch_operands = 0 : i64, tpu.core_type = #tpu.core_type<tc>, window_params = [{transform_indices = @transform_0, window_bounds = array<i64: 2, 2, 9>}, {pipeline_mode = #tpu.pipeline_mode<synchronous>, transform_indices = @transform_1, window_bounds = array<i64: 9, 784>}, {pipeline_mode = #tpu.pipeline_mode<synchronous>, transform_indices = @transform_2, window_bounds = array<i64: 2, 784>}, {transform_indices = @transform_3, window_bounds = array<i64: 2, 28, 28>}, {transform_indices = @transform_4, window_bounds = array<i64: 2, 784>}]} {
    %c0 = arith.constant 0 : index
    %c0_0 = arith.constant 0 : index
    %0 = vector.load %arg2[%c0, %c0_0] : memref<9x784xf32, #tpu.memory_space<vmem>>, vector<9x784xf32>
    %c0_1 = arith.constant 0 : index
    %c0_2 = arith.constant 0 : index
    %1 = vector.load %arg3[%c0_1, %c0_2] : memref<2x784xf32, #tpu.memory_space<vmem>>, vector<2x784xf32>
    %2 = tpu.iota {dimensions = array<i32: 0>} : vector<28x784xi32>
    %3 = arith.sitofp %2 : vector<28x784xi32> to vector<28x784xf32>
    %4 = tpu.iota {dimensions = array<i32: 0>} : vector<28x784xi32>
    %5 = arith.sitofp %4 : vector<28x784xi32> to vector<28x784xf32>
    %c0_3 = arith.constant 0 : index
    %c0_4 = arith.constant 0 : index
    %c0_5 = arith.constant 0 : index
    %6 = vector.load %arg1[%c0_3, %c0_4, %c0_5] : memref<2x2x9xf32, #tpu.memory_space<vmem>>, vector<1x2x9xf32>
    %7 = vector.shape_cast %6 : vector<1x2x9xf32> to vector<2x9xf32>
    %cst = arith.constant dense<0.000000e+00> : vector<2x784xf32>
    %8 = tpu.matmul %7, %0, %cst {dimension_numbers = #tpu.dot_dimension_numbers<[1], [0], [0], [1], [0, 0, 1, 1], [], []>} : vector<2x9xf32>, vector<9x784xf32>, vector<2x784xf32> -> vector<2x784xf32>
    %9 = arith.addf %1, %8 : vector<2x784xf32>
    %10 = vector.extract_strided_slice %9 {offsets = [0, 0], sizes = [1, 784], strides = [1, 1]} : vector<2x784xf32> to vector<1x784xf32>
    %cst_6 = arith.constant 1.000000e+00 : f32
    %11 = vector.broadcast %cst_6 : f32 to vector<1x784xf32>
    %12 = arith.addf %10, %11 : vector<1x784xf32>
    %cst_7 = arith.constant 1.350000e+01 : f32
    %13 = vector.broadcast %cst_7 : f32 to vector<1x784xf32>
    %14 = arith.mulf %12, %13 : vector<1x784xf32>
    %15 = vector.extract_strided_slice %9 {offsets = [1, 0], sizes = [1, 784], strides = [1, 1]} : vector<2x784xf32> to vector<1x784xf32>
    %cst_8 = arith.constant 1.000000e+00 : f32
    %16 = vector.broadcast %cst_8 : f32 to vector<1x784xf32>
    %17 = arith.addf %15, %16 : vector<1x784xf32>
    %cst_9 = arith.constant 1.350000e+01 : f32
    %18 = vector.broadcast %cst_9 : f32 to vector<1x784xf32>
    %19 = arith.mulf %17, %18 : vector<1x784xf32>
    %20 = vector.broadcast %14 : vector<1x784xf32> to vector<28x784xf32>
    %21 = arith.subf %5, %20 : vector<28x784xf32>
    %22 = math.absf %21 : vector<28x784xf32>
    %cst_10 = arith.constant 1.000000e+00 : f32
    %23 = vector.broadcast %cst_10 : f32 to vector<28x784xf32>
    %24 = arith.subf %23, %22 : vector<28x784xf32>
    %cst_11 = arith.constant 0.000000e+00 : f32
    %25 = vector.broadcast %cst_11 : f32 to vector<28x784xf32>
    %26 = arith.maximumf %24, %25 : vector<28x784xf32>
    %27 = vector.broadcast %19 : vector<1x784xf32> to vector<28x784xf32>
    %28 = arith.subf %3, %27 : vector<28x784xf32>
    %29 = math.absf %28 : vector<28x784xf32>
    %cst_12 = arith.constant 1.000000e+00 : f32
    %30 = vector.broadcast %cst_12 : f32 to vector<28x784xf32>
    %31 = arith.subf %30, %29 : vector<28x784xf32>
    %cst_13 = arith.constant 0.000000e+00 : f32
    %32 = vector.broadcast %cst_13 : f32 to vector<28x784xf32>
    %33 = arith.maximumf %31, %32 : vector<28x784xf32>
    %c0_14 = arith.constant 0 : index
    %c0_15 = arith.constant 0 : index
    %c0_16 = arith.constant 0 : index
    %34 = vector.load %arg4[%c0_14, %c0_15, %c0_16] : memref<2x28x28xf32, #tpu.memory_space<vmem>>, vector<1x28x28xf32>
    %35 = vector.shape_cast %34 : vector<1x28x28xf32> to vector<28x28xf32>
    %cst_17 = arith.constant dense<0.000000e+00> : vector<28x784xf32>
    %36 = tpu.matmul %35, %26, %cst_17 {dimension_numbers = #tpu.dot_dimension_numbers<[1], [0], [0], [1], [0, 0, 1, 1], [], []>} : vector<28x28xf32>, vector<28x784xf32>, vector<28x784xf32> -> vector<28x784xf32>
    %37 = arith.mulf %36, %33 : vector<28x784xf32>
    %cst_18 = arith.constant dense<0.000000e+00> : vector<784xf32>
    %38 = vector.multi_reduction <add>, %37, %cst_18 [0] : vector<28x784xf32> to vector<784xf32>
    %39 = vector.shape_cast %38 : vector<784xf32> to vector<1x784xf32>
    %c0_19 = arith.constant 0 : index
    %c0_20 = arith.constant 0 : index
    %40 = vector.load %arg5[%c0_19, %c0_20] : memref<2x784xf32, #tpu.memory_space<vmem>>, vector<1x784xf32>
    tpu.vector_store %arg5[%c0_19, %c0_20], %39 {strides = array<i32>} : memref<2x784xf32, #tpu.memory_space<vmem>>, vector<1x784xf32>,
    %c1 = arith.constant 1 : index
    %c0_21 = arith.constant 0 : index
    %c0_22 = arith.constant 0 : index
    %41 = vector.load %arg1[%c1, %c0_21, %c0_22] : memref<2x2x9xf32, #tpu.memory_space<vmem>>, vector<1x2x9xf32>
    %42 = vector.shape_cast %41 : vector<1x2x9xf32> to vector<2x9xf32>
    %cst_23 = arith.constant dense<0.000000e+00> : vector<2x784xf32>
    %43 = tpu.matmul %42, %0, %cst_23 {dimension_numbers = #tpu.dot_dimension_numbers<[1], [0], [0], [1], [0, 0, 1, 1], [], []>} : vector<2x9xf32>, vector<9x784xf32>, vector<2x784xf32> -> vector<2x784xf32>
    %44 = arith.addf %1, %43 : vector<2x784xf32>
    %45 = vector.extract_strided_slice %44 {offsets = [0, 0], sizes = [1, 784], strides = [1, 1]} : vector<2x784xf32> to vector<1x784xf32>
    %cst_24 = arith.constant 1.000000e+00 : f32
    %46 = vector.broadcast %cst_24 : f32 to vector<1x784xf32>
    %47 = arith.addf %45, %46 : vector<1x784xf32>
    %cst_25 = arith.constant 1.350000e+01 : f32
    %48 = vector.broadcast %cst_25 : f32 to vector<1x784xf32>
    %49 = arith.mulf %47, %48 : vector<1x784xf32>
    %50 = vector.extract_strided_slice %44 {offsets = [1, 0], sizes = [1, 784], strides = [1, 1]} : vector<2x784xf32> to vector<1x784xf32>
    %cst_26 = arith.constant 1.000000e+00 : f32
    %51 = vector.broadcast %cst_26 : f32 to vector<1x784xf32>
    %52 = arith.addf %50, %51 : vector<1x784xf32>
    %cst_27 = arith.constant 1.350000e+01 : f32
    %53 = vector.broadcast %cst_27 : f32 to vector<1x784xf32>
    %54 = arith.mulf %52, %53 : vector<1x784xf32>
    %55 = vector.broadcast %49 : vector<1x784xf32> to vector<28x784xf32>
    %56 = arith.subf %5, %55 : vector<28x784xf32>
    %57 = math.absf %56 : vector<28x784xf32>
    %cst_28 = arith.constant 1.000000e+00 : f32
    %58 = vector.broadcast %cst_28 : f32 to vector<28x784xf32>
    %59 = arith.subf %58, %57 : vector<28x784xf32>
    %cst_29 = arith.constant 0.000000e+00 : f32
    %60 = vector.broadcast %cst_29 : f32 to vector<28x784xf32>
    %61 = arith.maximumf %59, %60 : vector<28x784xf32>
    %62 = vector.broadcast %54 : vector<1x784xf32> to vector<28x784xf32>
    %63 = arith.subf %3, %62 : vector<28x784xf32>
    %64 = math.absf %63 : vector<28x784xf32>
    %cst_30 = arith.constant 1.000000e+00 : f32
    %65 = vector.broadcast %cst_30 : f32 to vector<28x784xf32>
    %66 = arith.subf %65, %64 : vector<28x784xf32>
    %cst_31 = arith.constant 0.000000e+00 : f32
    %67 = vector.broadcast %cst_31 : f32 to vector<28x784xf32>
    %68 = arith.maximumf %66, %67 : vector<28x784xf32>
    %c1_32 = arith.constant 1 : index
    %c0_33 = arith.constant 0 : index
    %c0_34 = arith.constant 0 : index
    %69 = vector.load %arg4[%c1_32, %c0_33, %c0_34] : memref<2x28x28xf32, #tpu.memory_space<vmem>>, vector<1x28x28xf32>
    %70 = vector.shape_cast %69 : vector<1x28x28xf32> to vector<28x28xf32>
    %cst_35 = arith.constant dense<0.000000e+00> : vector<28x784xf32>
    %71 = tpu.matmul %70, %61, %cst_35 {dimension_numbers = #tpu.dot_dimension_numbers<[1], [0], [0], [1], [0, 0, 1, 1], [], []>} : vector<28x28xf32>, vector<28x784xf32>, vector<28x784xf32> -> vector<28x784xf32>
    %72 = arith.mulf %71, %68 : vector<28x784xf32>
    %cst_36 = arith.constant dense<0.000000e+00> : vector<784xf32>
    %73 = vector.multi_reduction <add>, %72, %cst_36 [0] : vector<28x784xf32> to vector<784xf32>
    %74 = vector.shape_cast %73 : vector<784xf32> to vector<1x784xf32>
    %c1_37 = arith.constant 1 : index
    %c0_38 = arith.constant 0 : index
    %75 = vector.load %arg5[%c1_37, %c0_38] : memref<2x784xf32, #tpu.memory_space<vmem>>, vector<1x784xf32>
    tpu.vector_store %arg5[%c1_37, %c0_38], %74 {strides = array<i32>} : memref<2x784xf32, #tpu.memory_space<vmem>>, vector<1x784xf32>,
    return
  }
  func.func @transform_0(%arg0: i32) -> (i32, i32, i32) {
    %c0_i32 = arith.constant 0 : i32
    %c0_i32_0 = arith.constant 0 : i32
    %c0_i32_1 = arith.constant 0 : i32
    return %arg0, %c0_i32, %c0_i32_0 : i32, i32, i32
  }
  func.func @transform_1(%arg0: i32) -> (i32, i32) {
    %c0_i32 = arith.constant 0 : i32
    %c0_i32_0 = arith.constant 0 : i32
    %c0_i32_1 = arith.constant 0 : i32
    return %c0_i32, %c0_i32_0 : i32, i32
  }
  func.func @transform_2(%arg0: i32) -> (i32, i32) {
    %c0_i32 = arith.constant 0 : i32
    %c0_i32_0 = arith.constant 0 : i32
    %c0_i32_1 = arith.constant 0 : i32
    return %c0_i32, %c0_i32_0 : i32, i32
  }
  func.func @transform_3(%arg0: i32) -> (i32, i32, i32) {
    %c0_i32 = arith.constant 0 : i32
    %c0_i32_0 = arith.constant 0 : i32
    %c0_i32_1 = arith.constant 0 : i32
    return %arg0, %c0_i32, %c0_i32_0 : i32, i32, i32
  }
  func.func @transform_4(%arg0: i32) -> (i32, i32) {
    %c0_i32 = arith.constant 0 : i32
    %c0_i32_0 = arith.constant 0 : i32
    return %arg0, %c0_i32 : i32, i32
  }
}

</mosaic_0001>

<llo_original>
// kernel: spatial_transformer_forward.5
$region0: #{spatial_transformer_forward.5}
  #allocation0 [shape = 'u32[]', space=smem, size = 0x4, offset = 0x4, fixed_abs, tag = 'smem constant byte address 0x4 - core index']
  #allocation1 [shape = 'u32[144,128]{1,0:T(1,128)}', space=vmem, size = 0x12000, scoped, tag = 'internal scratch']
  %s0 = inlined_call_operand.vmem [shape: f32[98,200], index: 0, kind: input, shape index: {}]
  %s1 = inlined_call_operand.vmem [shape: f32[200,10], index: 1, kind: input, shape index: {}]
  %s2 = inlined_call_operand.vmem [shape: f32[1,10], index: 2, kind: input, shape index: {}]
  %s3 = inlined_call_operand.vmem [shape: f32[1,10], index: 3, kind: input, shape index: {}]
  %s4 = inlined_call_operand.vmem [shape: f32[98,10], index: 4, kind: output, shape index: {}]
  %s5 = sld [smem:[#allocation0]]
  $region26: #{spatial_transformer_forward.5} parent=0
    _
  %s7 = ssub.s32 1, %s5
  %s8 = scalar_select 0, %s7, %s5
  // Predicated region
  $region2: #{spatial_transformer_forward.5} parent=0 // pred_check
    _
  $region3: #{spatial_transformer_forward.5} parent=0 // pred_check_branch
    %10 = sbr.rel (0) target = $region5
  $region4: #{spatial_transformer_forward.5} parent=0 // pred_region
    _
  $region5: #{spatial_transformer_forward.5} parent=0 // pred_fallthru
    _
  // Predicated region
  $region6: #{spatial_transformer_forward.5} parent=0 // pred_check
    _
  $region7: #{spatial_transformer_forward.5} parent=0 // pred_check_branch
    %12 = sbr.rel (0) target = $region9
  $region8: #{spatial_transformer_forward.5} parent=0 // pred_region
    _
  $region9: #{spatial_transformer_forward.5} parent=0 // pred_fallthru
    _
  // Predicated region
  $region10: #{spatial_transformer_forward.5} parent=0 // pred_check
    _
  $region11: #{spatial_transformer_forward.5} parent=0 // pred_check_branch
    %14 = sbr.rel (0) target = $region13
  $region12: #{spatial_transformer_forward.5} parent=0 // pred_region
    _
  $region13: #{spatial_transformer_forward.5} parent=0 // pred_fallthru
    _
  // Predicated region
  $region14: #{spatial_transformer_forward.5} parent=0 // pred_check
    _
  $region15: #{spatial_transformer_forward.5} parent=0 // pred_check_branch
    %16 = sbr.rel (0) target = $region17
  $region16: #{spatial_transformer_forward.5} parent=0 // pred_region
    _
  $region17: #{spatial_transformer_forward.5} parent=0 // pred_fallthru
    _
  %v17 = vld [vmem:[%s0] sm:$0xff]
  %v18 = vld [vmem:[%s0 + $0x8] sm:$0xff]
  %v19 = vld [vmem:[%s0 + $0x10] sm:$0xff]
  %v20 = vld [vmem:[%s0 + $0x18] sm:$0xff]
  %v21 = vld [vmem:[%s0 + $0x20] sm:$0xff]
  %v22 = vld [vmem:[%s0 + $0x28] sm:$0xff]
  %v23 = vld [vmem:[%s0 + $0x30] sm:$0xff]
  %v24 = vld [vmem:[%s0 + $0x38] sm:$0xff]
  %v25 = vld [vmem:[%s0 + $0x40] sm:$0xff]
  %v26 = vld [vmem:[%s0 + $0x48] sm:$0xff]
  %v27 = vld [vmem:[%s0 + $0x50] sm:$0xff]
  %v28 = vld [vmem:[%s0 + $0x58] sm:$0xff]
  %v29 = vld [vmem:[%s0 + $0x60] sm:$0xff]
  %v30 = vld [vmem:[%s0 + $0x68] sm:$0xff]
  %v31 = vld [vmem:[%s0 + $0x70] sm:$0xff]
  %v32 = vld [vmem:[%s0 + $0x78] sm:$0xff]
  %v33 = vld [vmem:[%s0 + $0x80] sm:$0xff]
  %v34 = vld [vmem:[%s0 + $0x88] sm:$0xff]
  %v35 = vld [vmem:[%s0 + $0x90] sm:$0xff]
  %v36 = vld [vmem:[%s0 + $0x98] sm:$0xff]
  %v37 = vld [vmem:[%s0 + $0xa0] sm:$0xff]
  %v38 = vld [vmem:[%s0 + $0xa8] sm:$0xff]
  %v39 = vld [vmem:[%s0 + $0xb0] sm:$0xff]
  %v40 = vld [vmem:[%s0 + $0xb8] sm:$0xff]
  %v41 = vld [vmem:[%s0 + $0xc0] sm:$0x3]
  %v42 = vld [vmem:[%s0 + $0xc8] sm:$0x3]
  %v43 = vld [vmem:[%s1] sm:$0xff]
  %v44 = vld [vmem:[%s1 + $0x8] sm:$0xff]
  %v45 = vld [vmem:[%s1 + $0x10] sm:$0xff]
  %v46 = vld [vmem:[%s1 + $0x18] sm:$0xff]
  %v47 = vld [vmem:[%s1 + $0x20] sm:$0xff]
  %v48 = vld [vmem:[%s1 + $0x28] sm:$0xff]
  %v49 = vld [vmem:[%s1 + $0x30] sm:$0xff]
  %v50 = vld [vmem:[%s1 + $0x38] sm:$0xff]
  %v51 = vld [vmem:[%s1 + $0x40] sm:$0xff]
  %v52 = vld [vmem:[%s1 + $0x48] sm:$0xff]
  %v53 = vld [vmem:[%s1 + $0x50] sm:$0xff]
  %v54 = vld [vmem:[%s1 + $0x58] sm:$0xff]
  %v55 = vld [vmem:[%s1 + $0x60] sm:$0xff]
  %v56 = vld [vmem:[%s1 + $0x68] sm:$0xff]
  %v57 = vld [vmem:[%s1 + $0x70] sm:$0xff]
  %v58 = vld [vmem:[%s1 + $0x78] sm:$0xff]
  %v59 = vld [vmem:[%s1 + $0x80] sm:$0xff]
  %v60 = vld [vmem:[%s1 + $0x88] sm:$0xff]
  %v61 = vld [vmem:[%s1 + $0x90] sm:$0xff]
  %v62 = vld [vmem:[%s1 + $0x98] sm:$0xff]
  %v63 = vld [vmem:[%s1 + $0xa0] sm:$0xff]
  %v64 = vld [vmem:[%s1 + $0xa8] sm:$0xff]
  %v65 = vld [vmem:[%s1 + $0xb0] sm:$0xff]
  %v66 = vld [vmem:[%s1 + $0xb8] sm:$0xff]
  %v67 = vld [vmem:[%s1 + $0xc0] sm:$0xff]
  %vm68 = vcmask 588800
  %v70 = vsel %vm68, %v18, 0
  %v73 = vsel %vm68, %v20, 0
  %v76 = vsel %vm68, %v22, 0
  %v79 = vsel %vm68, %v24, 0
  %v82 = vsel %vm68, %v26, 0
  %v85 = vsel %vm68, %v28, 0
  %v88 = vsel %vm68, %v30, 0
  %v91 = vsel %vm68, %v32, 0
  %v94 = vsel %vm68, %v34, 0
  %v97 = vsel %vm68, %v36, 0
  %v100 = vsel %vm68, %v38, 0
  %v103 = vsel %vm68, %v40, 0
  %v106 = vsel %vm68, %v42, 0
  %108 = vmatprep.subr.mxu0 0.0
  %109 = vmatpush1.msra.mxu0 %v43
  %110 = vmatprep.subr.mxu0 0.0
  %111 = vmatpush1.msra.mxu0 %v44
  %112 = vmatprep.subr.mxu0 0.0
  %113 = vmatpush1.msra.mxu0 %v45
  %114 = vmatprep.subr.mxu0 0.0
  %115 = vmatpush1.msra.mxu0 %v46
  %116 = vmatprep.subr.mxu0 0.0
  %117 = vmatpush1.msra.mxu0 %v47
  %118 = vmatprep.subr.mxu0 0.0
  %119 = vmatpush1.msra.mxu0 %v48
  %120 = vmatprep.subr.mxu0 0.0
  %121 = vmatpush1.msra.mxu0 %v49
  %122 = vmatprep.subr.mxu0 0.0
  %123 = vmatpush1.msra.mxu0 %v50
  %124 = vmatprep.subr.mxu0 0.0
  %125 = vmatpush1.msra.mxu0 %v51
  %126 = vmatprep.subr.mxu0 0.0
  %127 = vmatpush1.msra.mxu0 %v52
  %128 = vmatprep.subr.mxu0 0.0
  %129 = vmatpush1.msra.mxu0 %v53
  %130 = vmatprep.subr.mxu0 0.0
  %131 = vmatpush1.msra.mxu0 %v54
  %132 = vmatprep.subr.mxu0 0.0
  %133 = vmatpush1.msra.mxu0 %v55
  %134 = vmatprep.subr.mxu0 0.0
  %135 = vmatpush1.msra.mxu0 %v56
  %136 = vmatprep.subr.mxu0 0.0
  %137 = vmatpush1.msra.mxu0 %v57
  %138 = vmatprep.subr.mxu0 0.0
  %139 = vmatpush1.msra.mxu0 %v58
  %140 = vmatprep.subr.mxu0 0.0
  %141 = vmatpush1.msra.mxu0 %v59
  %142 = vmatprep.subr.mxu0 0.0
  %143 = vmatpush1.msra.mxu0 %v60
  %144 = vmatprep.subr.mxu0 0.0
  %145 = vmatpush1.msra.mxu0 %v61
  %146 = vmatprep.subr.mxu0 0.0
  %147 = vmatpush1.msra.mxu0 %v62
  %148 = vmatprep.subr.mxu0 0.0
  %149 = vmatpush1.msra.mxu0 %v63
  %150 = vmatprep.subr.mxu0 0.0
  %151 = vmatpush1.msra.mxu0 %v64
  %152 = vmatprep.subr.mxu0 0.0
  %153 = vmatpush1.msra.mxu0 %v65
  %154 = vmatprep.subr.mxu0 0.0
  %155 = vmatpush1.msra.mxu0 %v66
  %156 = vmatprep.subr.mxu0 0.0
  %157 = vmatpush1.msra.mxu0 %v67
  %158 = vmatprep.subr.mxu0 0.0
  %159 = vmatpush1.msra.mxu0 0.0
  %160 = vmatprep.subr.mxu0 0.0
  %161 = vmatpush1.msra.mxu0 0.0
  %162 = vmatprep.subr.mxu0 0.0
  %163 = vmatpush1.msra.mxu0 0.0
  %164 = vmatprep.subr.mxu0 0.0
  %165 = vmatpush1.msra.mxu0 0.0
  %166 = vmatprep.subr.mxu0 0.0
  %167 = vmatpush1.msra.mxu0 0.0
  %168 = vmatprep.subr.mxu0 0.0
  %169 = vmatpush1.msra.mxu0 0.0
  %170 = vmatprep.subr.mxu0 0.0
  %171 = vmatpush1.msra.mxu0 0.0
  %172 = vmatprep.mubr.f32.mxu0 %v70
  %173 = vmatmul.mubr.f32.gmra.mrb[0].mxu0 %v17
  %v174 = vpop.f32.mrb[0].mxu0
  %v175 = vadd.f32 0.0, %v174
  %v176 = vpop.f32.mrb[0].mxu0
  %177 = vmatprep.mubr.f32.mxu0 %v73
  %178 = vmatmul.mubr.f32.gmra.mrb[0].mxu0 %v19
  %v179 = vpop.f32.mrb[0].mxu0
  %v180 = vadd.f32 0.0, %v179
  %v181 = vpop.f32.mrb[0].mxu0
  %182 = vmatprep.mubr.f32.mxu0 %v76
  %183 = vmatmul.mubr.f32.gmra.mrb[0].mxu0 %v21
  %v184 = vpop.f32.mrb[0].mxu0
  %v185 = vadd.f32 0.0, %v184
  %v186 = vpop.f32.mrb[0].mxu0
  %187 = vmatprep.mubr.f32.mxu0 %v79
  %188 = vmatmul.mubr.f32.gmra.mrb[0].mxu0 %v23
  %v189 = vpop.f32.mrb[0].mxu0
  %v190 = vadd.f32 0.0, %v189
  %v191 = vpop.f32.mrb[0].mxu0
  %192 = vmatprep.mubr.f32.mxu0 %v82
  %193 = vmatmul.mubr.f32.gmra.mrb[0].mxu0 %v25
  %v194 = vpop.f32.mrb[0].mxu0
  %v195 = vadd.f32 0.0, %v194
  %v196 = vpop.f32.mrb[0].mxu0
  %197 = vmatprep.mubr.f32.mxu0 %v85
  %198 = vmatmul.mubr.f32.gmra.mrb[0].mxu0 %v27
  %v199 = vpop.f32.mrb[0].mxu0
  %v200 = vadd.f32 0.0, %v199
  %v201 = vpop.f32.mrb[0].mxu0
  %202 = vmatprep.mubr.f32.mxu0 %v88
  %203 = vmatmul.mubr.f32.gmra.mrb[0].mxu0 %v29
  %v204 = vpop.f32.mrb[0].mxu0
  %v205 = vadd.f32 0.0, %v204
  %v206 = vpop.f32.mrb[0].mxu0
  %207 = vmatprep.mubr.f32.mxu0 %v91
  %208 = vmatmul.mubr.f32.gmra.mrb[0].mxu0 %v31
  %v209 = vpop.f32.mrb[0].mxu0
  %v210 = vadd.f32 0.0, %v209
  %v211 = vpop.f32.mrb[0].mxu0
  %212 = vmatprep.mubr.f32.mxu0 %v94
  %213 = vmatmul.mubr.f32.gmra.mrb[0].mxu0 %v33
  %v214 = vpop.f32.mrb[0].mxu0
  %v215 = vadd.f32 0.0, %v214
  %v216 = vpop.f32.mrb[0].mxu0
  %217 = vmatprep.mubr.f32.mxu0 %v97
  %218 = vmatmul.mubr.f32.gmra.mrb[0].mxu0 %v35
  %v219 = vpop.f32.mrb[0].mxu0
  %v220 = vadd.f32 0.0, %v219
  %v221 = vpop.f32.mrb[0].mxu0
  %222 = vmatprep.mubr.f32.mxu0 %v100
  %223 = vmatmul.mubr.f32.gmra.mrb[0].mxu0 %v37
  %v224 = vpop.f32.mrb[0].mxu0
  %v225 = vadd.f32 0.0, %v224
  %v226 = vpop.f32.mrb[0].mxu0
  %227 = vmatprep.mubr.f32.mxu0 %v103
  %228 = vmatmul.mubr.f32.gmra.mrb[0].mxu0 %v39
  %v229 = vpop.f32.mrb[0].mxu0
  %v230 = vadd.f32 0.0, %v229
  %v231 = vpop.f32.mrb[0].mxu0
  %232 = vmatprep.mubr.f32.mxu0 %v106
  %233 = vmatmul.mubr.f32.gmra.mrb[0].mxu0 %v41
  %v234 = vpop.f32.mrb[0].mxu0
  %v235 = vadd.f32 0.0, %v234
  %v236 = vpop.f32.mrb[0].mxu0
  %237 = vdwg.mxu0
  %vm238 = vcmask 80896
  %v239 = vsel %vm238, %v175, 0.0
  %v240 = vsel %vm238, %v180, 0.0
  %v241 = vadd.f32 %v239, %v240
  %v242 = vsel %vm238, %v185, 0.0
  %v243 = vadd.f32 %v241, %v242
  %v244 = vsel %vm238, %v190, 0.0
  %v245 = vadd.f32 %v243, %v244
  %v246 = vsel %vm238, %v195, 0.0
  %v247 = vadd.f32 %v245, %v246
  %v248 = vsel %vm238, %v200, 0.0
  %v249 = vadd.f32 %v247, %v248
  %v250 = vsel %vm238, %v205, 0.0
  %v251 = vadd.f32 %v249, %v250
  %v252 = vsel %vm238, %v210, 0.0
  %v253 = vadd.f32 %v251, %v252
  %v254 = vsel %vm238, %v215, 0.0
  %v255 = vadd.f32 %v253, %v254
  %v256 = vsel %vm238, %v220, 0.0
  %v257 = vadd.f32 %v255, %v256
  %v258 = vsel %vm238, %v225, 0.0
  %v259 = vadd.f32 %v257, %v258
  %v260 = vsel %vm238, %v230, 0.0
  %v261 = vadd.f32 %v259, %v260
  %vm262 = vcmask 74752
  %v263 = vsel %vm262, %v235, 0.0
  %v264 = vadd.f32 %v261, %v263
  %v265 = vrot.slane %v264, 4
  %v266 = vadd.f32 %v264, %v265
  %v267 = vrot.slane %v266, 2
  %v268 = vadd.f32 %v266, %v267
  %v269 = vrot.slane %v268, 1
  %v270 = vadd.f32 %v268, %v269
  %v271 = vmul.f32 %v270, 0.010204081
  %v272 = vsub.f32 %v175, %v271
  %v273 = vsub.f32 %v180, %v271
  %v274 = vsub.f32 %v185, %v271
  %v275 = vsub.f32 %v190, %v271
  %v276 = vsub.f32 %v195, %v271
  %v277 = vsub.f32 %v200, %v271
  %v278 = vsub.f32 %v205, %v271
  %v279 = vsub.f32 %v210, %v271
  %v280 = vsub.f32 %v215, %v271
  %v281 = vsub.f32 %v220, %v271
  %v282 = vsub.f32 %v225, %v271
  %v283 = vsub.f32 %v230, %v271
  %v284 = vsub.f32 %v235, %v271
  %v285 = vmul.f32 %v272, %v272
  %v286 = vmul.f32 %v273, %v273
  %v287 = vmul.f32 %v274, %v274
  %v288 = vmul.f32 %v275, %v275
  %v289 = vmul.f32 %v276, %v276
  %v290 = vmul.f32 %v277, %v277
  %v291 = vmul.f32 %v278, %v278
  %v292 = vmul.f32 %v279, %v279
  %v293 = vmul.f32 %v280, %v280
  %v294 = vmul.f32 %v281, %v281
  %v295 = vmul.f32 %v282, %v282
  %v296 = vmul.f32 %v283, %v283
  %v297 = vmul.f32 %v284, %v284
  %v298 = vsel %vm238, %v285, 0.0
  %v299 = vsel %vm238, %v286, 0.0
  %v300 = vadd.f32 %v298, %v299
  %v301 = vsel %vm238, %v287, 0.0
  %v302 = vadd.f32 %v300, %v301
  %v303 = vsel %vm238, %v288, 0.0
  %v304 = vadd.f32 %v302, %v303
  %v305 = vsel %vm238, %v289, 0.0
  %v306 = vadd.f32 %v304, %v305
  %v307 = vsel %vm238, %v290, 0.0
  %v308 = vadd.f32 %v306, %v307
  %v309 = vsel %vm238, %v291, 0.0
  %v310 = vadd.f32 %v308, %v309
  %v311 = vsel %vm238, %v292, 0.0
  %v312 = vadd.f32 %v310, %v311
  %v313 = vsel %vm238, %v293, 0.0
  %v314 = vadd.f32 %v312, %v313
  %v315 = vsel %vm238, %v294, 0.0
  %v316 = vadd.f32 %v314, %v315
  %v317 = vsel %vm238, %v295, 0.0
  %v318 = vadd.f32 %v316, %v317
  %v319 = vsel %vm238, %v296, 0.0
  %v320 = vadd.f32 %v318, %v319
  %v321 = vsel %vm262, %v297, 0.0
  %v322 = vadd.f32 %v320, %v321
  %v323 = vrot.slane %v322, 4
  %v324 = vadd.f32 %v322, %v323
  %v325 = vrot.slane %v324, 2
  %v326 = vadd.f32 %v324, %v325
  %v327 = vrot.slane %v326, 1
  %v328 = vadd.f32 %v326, %v327
  %v329 = vmul.f32 %v328, 0.010204081
  %v330 = vadd.f32 %v329, 1e-05
  %v331 = vrsqrt.pop %v330
  %v332 = vmul.f32 %v272, %v331
  %v333 = vmul.f32 %v273, %v331
  %v334 = vmul.f32 %v274, %v331
  %v335 = vmul.f32 %v275, %v331
  %v336 = vmul.f32 %v276, %v331
  %v337 = vmul.f32 %v277, %v331
  %v338 = vmul.f32 %v278, %v331
  %v339 = vmul.f32 %v279, %v331
  %v340 = vmul.f32 %v280, %v331
  %v341 = vmul.f32 %v281, %v331
  %v342 = vmul.f32 %v282, %v331
  %v343 = vmul.f32 %v283, %v331
  %v344 = vmul.f32 %v284, %v331
  %v345 = vld [vmem:[%s2] sm:$0x1]
  %v347 = vlaneseq
  %v348 = vshrl.u32 %v347, 7
  %v349 = vsub.s32 0, %v348
  %v350 = vrot.slane %v345, %v349
  %v352 = vmul.f32 %v332, %v350
  %v353 = vmul.f32 %v333, %v350
  %v354 = vmul.f32 %v334, %v350
  %v355 = vmul.f32 %v335, %v350
  %v356 = vmul.f32 %v336, %v350
  %v357 = vmul.f32 %v337, %v350
  %v358 = vmul.f32 %v338, %v350
  %v359 = vmul.f32 %v339, %v350
  %v360 = vmul.f32 %v340, %v350
  %v361 = vmul.f32 %v341, %v350
  %v362 = vmul.f32 %v342, %v350
  %v363 = vmul.f32 %v343, %v350
  %v364 = vmul.f32 %v344, %v350
  %v365 = vld [vmem:[%s3] sm:$0x1]
  %v367 = vlaneseq
  %v368 = vshrl.u32 %v367, 7
  %v369 = vsub.s32 0, %v368
  %v370 = vrot.slane %v365, %v369
  %v372 = vadd.f32 %v352, %v370
  %v373 = vadd.f32 %v353, %v370
  %v374 = vadd.f32 %v354, %v370
  %v375 = vadd.f32 %v355, %v370
  %v376 = vadd.f32 %v356, %v370
  %v377 = vadd.f32 %v357, %v370
  %v378 = vadd.f32 %v358, %v370
  %v379 = vadd.f32 %v359, %v370
  %v380 = vadd.f32 %v360, %v370
  %v381 = vadd.f32 %v361, %v370
  %v382 = vadd.f32 %v362, %v370
  %v383 = vadd.f32 %v363, %v370
  %v384 = vadd.f32 %v364, %v370
  %v385 = vmax.f32 %v372, 0.0
  %v386 = vmax.f32 %v373, 0.0
  %v387 = vmax.f32 %v374, 0.0
  %v388 = vmax.f32 %v375, 0.0
  %v389 = vmax.f32 %v376, 0.0
  %v390 = vmax.f32 %v377, 0.0
  %v391 = vmax.f32 %v378, 0.0
  %v392 = vmax.f32 %v379, 0.0
  %v393 = vmax.f32 %v380, 0.0
  %v394 = vmax.f32 %v381, 0.0
  %v395 = vmax.f32 %v382, 0.0
  %v396 = vmax.f32 %v383, 0.0
  %v397 = vmax.f32 %v384, 0.0
  %398 = vst.msk [vmem:[%s4] sm:$0xff] %vm238, %v385
  %399 = vst.msk [vmem:[%s4 + $0x8] sm:$0xff] %vm238, %v386
  %400 = vst.msk [vmem:[%s4 + $0x10] sm:$0xff] %vm238, %v387
  %401 = vst.msk [vmem:[%s4 + $0x18] sm:$0xff] %vm238, %v388
  %402 = vst.msk [vmem:[%s4 + $0x20] sm:$0xff] %vm238, %v389
  %403 = vst.msk [vmem:[%s4 + $0x28] sm:$0xff] %vm238, %v390
  %404 = vst.msk [vmem:[%s4 + $0x30] sm:$0xff] %vm238, %v391
  %405 = vst.msk [vmem:[%s4 + $0x38] sm:$0xff] %vm238, %v392
  %406 = vst.msk [vmem:[%s4 + $0x40] sm:$0xff] %vm238, %v393
  %407 = vst.msk [vmem:[%s4 + $0x48] sm:$0xff] %vm238, %v394
  %408 = vst.msk [vmem:[%s4 + $0x50] sm:$0xff] %vm238, %v395
  %409 = vst.msk [vmem:[%s4 + $0x58] sm:$0xff] %vm238, %v396
  %410 = vst.msk [vmem:[%s4 + $0x60] sm:$0x3] %vm262, %v397
  // Predicated region
  $region18: #{spatial_transformer_forward.5} parent=0 // pred_check
    _
  $region19: #{spatial_transformer_forward.5} parent=0 // pred_check_branch
    %412 = sbr.rel (0) target = $region21
  $region20: #{spatial_transformer_forward.5} parent=0 // pred_region
    _
  $region21: #{spatial_transformer_forward.5} parent=0 // pred_fallthru
    _
  // Predicated region
  $region22: #{spatial_transformer_forward.5} parent=0 // pred_check
    _
  $region23: #{spatial_transformer_forward.5} parent=0 // pred_check_branch
    %414 = sbr.rel (0) target = $region25
  $region24: #{spatial_transformer_forward.5} parent=0 // pred_region
    _
  $region25: #{spatial_transformer_forward.5} parent=0 // pred_fallthru
    _

// kernel: spatial_transformer_forward.4
$region0: #{spatial_transformer_forward.4}
  #allocation0 [shape = 'u32[]', space=smem, size = 0x4, offset = 0x4, fixed_abs, tag = 'smem constant byte address 0x4 - core index']
  #allocation1 [shape = 'u32[144,128]{1,0:T(1,128)}', space=vmem, size = 0x12000, scoped, tag = 'internal scratch']
  %s0 = inlined_call_operand.vmem [shape: f32[968,49], index: 0, kind: input, shape index: {}]
  %s1 = inlined_call_operand.vmem [shape: f32[49,8], index: 1, kind: input, shape index: {}]
  %s2 = inlined_call_operand.vmem [shape: f32[1,8], index: 2, kind: input, shape index: {}]
  %s3 = inlined_call_operand.vmem [shape: f32[1,8], index: 3, kind: input, shape index: {}]
  %s4 = inlined_call_operand.vmem [shape: f32[968,8], index: 4, kind: output, shape index: {}]
  %s5 = sld [smem:[#allocation0]]
  $region26: #{spatial_transformer_forward.4} parent=0
    _
  %s7 = ssub.s32 1, %s5
  %s8 = scalar_select 0, %s7, %s5
  // Predicated region
  $region2: #{spatial_transformer_forward.4} parent=0 // pred_check
    _
  $region3: #{spatial_transformer_forward.4} parent=0 // pred_check_branch
    %10 = sbr.rel (0) target = $region5
  $region4: #{spatial_transformer_forward.4} parent=0 // pred_region
    _
  $region5: #{spatial_transformer_forward.4} parent=0 // pred_fallthru
    _
  // Predicated region
  $region6: #{spatial_transformer_forward.4} parent=0 // pred_check
    _
  $region7: #{spatial_transformer_forward.4} parent=0 // pred_check_branch
    %12 = sbr.rel (0) target = $region9
  $region8: #{spatial_transformer_forward.4} parent=0 // pred_region
    _
  $region9: #{spatial_transformer_forward.4} parent=0 // pred_fallthru
    _
  // Predicated region
  $region10: #{spatial_transformer_forward.4} parent=0 // pred_check
    _
  $region11: #{spatial_transformer_forward.4} parent=0 // pred_check_branch
    %14 = sbr.rel (0) target = $region13
  $region12: #{spatial_transformer_forward.4} parent=0 // pred_region
    _
  $region13: #{spatial_transformer_forward.4} parent=0 // pred_fallthru
    _
  // Predicated region
  $region14: #{spatial_transformer_forward.4} parent=0 // pred_check
    _
  $region15: #{spatial_transformer_forward.4} parent=0 // pred_check_branch
    %16 = sbr.rel (0) target = $region17
  $region16: #{spatial_transformer_forward.4} parent=0 // pred_region
    _
  $region17: #{spatial_transformer_forward.4} parent=0 // pred_fallthru
    _
  %v17 = vld [vmem:[%s0] sm:$0xff]
  %v18 = vld [vmem:[%s0 + $0x8] sm:$0xff]
  %v19 = vld [vmem:[%s0 + $0x10] sm:$0xff]
  %v20 = vld [vmem:[%s0 + $0x18] sm:$0xff]
  %v21 = vld [vmem:[%s0 + $0x20] sm:$0xff]
  %v22 = vld [vmem:[%s0 + $0x28] sm:$0xff]
  %v23 = vld [vmem:[%s0 + $0x30] sm:$0xff]
  %v24 = vld [vmem:[%s0 + $0x38] sm:$0xff]
  %v25 = vld [vmem:[%s0 + $0x40] sm:$0xff]
  %v26 = vld [vmem:[%s0 + $0x48] sm:$0xff]
  %v27 = vld [vmem:[%s0 + $0x50] sm:$0xff]
  %v28 = vld [vmem:[%s0 + $0x58] sm:$0xff]
  %v29 = vld [vmem:[%s0 + $0x60] sm:$0xff]
  %v30 = vld [vmem:[%s0 + $0x68] sm:$0xff]
  %v31 = vld [vmem:[%s0 + $0x70] sm:$0xff]
  %v32 = vld [vmem:[%s0 + $0x78] sm:$0xff]
  %v33 = vld [vmem:[%s0 + $0x80] sm:$0xff]
  %v34 = vld [vmem:[%s0 + $0x88] sm:$0xff]
  %v35 = vld [vmem:[%s0 + $0x90] sm:$0xff]
  %v36 = vld [vmem:[%s0 + $0x98] sm:$0xff]
  %v37 = vld [vmem:[%s0 + $0xa0] sm:$0xff]
  %v38 = vld [vmem:[%s0 + $0xa8] sm:$0xff]
  %v39 = vld [vmem:[%s0 + $0xb0] sm:$0xff]
  %v40 = vld [vmem:[%s0 + $0xb8] sm:$0xff]
  %v41 = vld [vmem:[%s0 + $0xc0] sm:$0xff]
  %v42 = vld [vmem:[%s0 + $0xc8] sm:$0xff]
  %v43 = vld [vmem:[%s0 + $0xd0] sm:$0xff]
  %v44 = vld [vmem:[%s0 + $0xd8] sm:$0xff]
  %v45 = vld [vmem:[%s0 + $0xe0] sm:$0xff]
  %v46 = vld [vmem:[%s0 + $0xe8] sm:$0xff]
  %v47 = vld [vmem:[%s0 + $0xf0] sm:$0xff]
  %v48 = vld [vmem:[%s0 + $0xf8] sm:$0xff]
  %v49 = vld [vmem:[%s0 + $0x100] sm:$0xff]
  %v50 = vld [vmem:[%s0 + $0x108] sm:$0xff]
  %v51 = vld [vmem:[%s0 + $0x110] sm:$0xff]
  %v52 = vld [vmem:[%s0 + $0x118] sm:$0xff]
  %v53 = vld [vmem:[%s0 + $0x120] sm:$0xff]
  %v54 = vld [vmem:[%s0 + $0x128] sm:$0xff]
  %v55 = vld [vmem:[%s0 + $0x130] sm:$0xff]
  %v56 = vld [vmem:[%s0 + $0x138] sm:$0xff]
  %v57 = vld [vmem:[%s0 + $0x140] sm:$0xff]
  %v58 = vld [vmem:[%s0 + $0x148] sm:$0xff]
  %v59 = vld [vmem:[%s0 + $0x150] sm:$0xff]
  %v60 = vld [vmem:[%s0 + $0x158] sm:$0xff]
  %v61 = vld [vmem:[%s0 + $0x160] sm:$0xff]
  %v62 = vld [vmem:[%s0 + $0x168] sm:$0xff]
  %v63 = vld [vmem:[%s0 + $0x170] sm:$0xff]
  %v64 = vld [vmem:[%s0 + $0x178] sm:$0xff]
  %v65 = vld [vmem:[%s0 + $0x180] sm:$0xff]
  %v66 = vld [vmem:[%s0 + $0x188] sm:$0xff]
  %v67 = vld [vmem:[%s0 + $0x190] sm:$0xff]
  %v68 = vld [vmem:[%s0 + $0x198] sm:$0xff]
  %v69 = vld [vmem:[%s0 + $0x1a0] sm:$0xff]
  %v70 = vld [vmem:[%s0 + $0x1a8] sm:$0xff]
  %v71 = vld [vmem:[%s0 + $0x1b0] sm:$0xff]
  %v72 = vld [vmem:[%s0 + $0x1b8] sm:$0xff]
  %v73 = vld [vmem:[%s0 + $0x1c0] sm:$0xff]
  %v74 = vld [vmem:[%s0 + $0x1c8] sm:$0xff]
  %v75 = vld [vmem:[%s0 + $0x1d0] sm:$0xff]
  %v76 = vld [vmem:[%s0 + $0x1d8] sm:$0xff]
  %v77 = vld [vmem:[%s0 + $0x1e0] sm:$0xff]
  %v78 = vld [vmem:[%s0 + $0x1e8] sm:$0xff]
  %v79 = vld [vmem:[%s0 + $0x1f0] sm:$0xff]
  %v80 = vld [vmem:[%s0 + $0x1f8] sm:$0xff]
  %v81 = vld [vmem:[%s0 + $0x200] sm:$0xff]
  %v82 = vld [vmem:[%s0 + $0x208] sm:$0xff]
  %v83 = vld [vmem:[%s0 + $0x210] sm:$0xff]
  %v84 = vld [vmem:[%s0 + $0x218] sm:$0xff]
  %v85 = vld [vmem:[%s0 + $0x220] sm:$0xff]
  %v86 = vld [vmem:[%s0 + $0x228] sm:$0xff]
  %v87 = vld [vmem:[%s0 + $0x230] sm:$0xff]
  %v88 = vld [vmem:[%s0 + $0x238] sm:$0xff]
  %v89 = vld [vmem:[%s0 + $0x240] sm:$0xff]
  %v90 = vld [vmem:[%s0 + $0x248] sm:$0xff]
  %v91 = vld [vmem:[%s0 + $0x250] sm:$0xff]
  %v92 = vld [vmem:[%s0 + $0x258] sm:$0xff]
  %v93 = vld [vmem:[%s0 + $0x260] sm:$0xff]
  %v94 = vld [vmem:[%s0 + $0x268] sm:$0xff]
  %v95 = vld [vmem:[%s0 + $0x270] sm:$0xff]
  %v96 = vld [vmem:[%s0 + $0x278] sm:$0xff]
  %v97 = vld [vmem:[%s0 + $0x280] sm:$0xff]
  %v98 = vld [vmem:[%s0 + $0x288] sm:$0xff]
  %v99 = vld [vmem:[%s0 + $0x290] sm:$0xff]
  %v100 = vld [vmem:[%s0 + $0x298] sm:$0xff]
  %v101 = vld [vmem:[%s0 + $0x2a0] sm:$0xff]
  %v102 = vld [vmem:[%s0 + $0x2a8] sm:$0xff]
  %v103 = vld [vmem:[%s0 + $0x2b0] sm:$0xff]
  %v104 = vld [vmem:[%s0 + $0x2b8] sm:$0xff]
  %v105 = vld [vmem:[%s0 + $0x2c0] sm:$0xff]
  %v106 = vld [vmem:[%s0 + $0x2c8] sm:$0xff]
  %v107 = vld [vmem:[%s0 + $0x2d0] sm:$0xff]
  %v108 = vld [vmem:[%s0 + $0x2d8] sm:$0xff]
  %v109 = vld [vmem:[%s0 + $0x2e0] sm:$0xff]
  %v110 = vld [vmem:[%s0 + $0x2e8] sm:$0xff]
  %v111 = vld [vmem:[%s0 + $0x2f0] sm:$0xff]
  %v112 = vld [vmem:[%s0 + $0x2f8] sm:$0xff]
  %v113 = vld [vmem:[%s0 + $0x300] sm:$0xff]
  %v114 = vld [vmem:[%s0 + $0x308] sm:$0xff]
  %v115 = vld [vmem:[%s0 + $0x310] sm:$0xff]
  %v116 = vld [vmem:[%s0 + $0x318] sm:$0xff]
  %v117 = vld [vmem:[%s0 + $0x320] sm:$0xff]
  %v118 = vld [vmem:[%s0 + $0x328] sm:$0xff]
  %v119 = vld [vmem:[%s0 + $0x330] sm:$0xff]
  %v120 = vld [vmem:[%s0 + $0x338] sm:$0xff]
  %v121 = vld [vmem:[%s0 + $0x340] sm:$0xff]
  %v122 = vld [vmem:[%s0 + $0x348] sm:$0xff]
  %v123 = vld [vmem:[%s0 + $0x350] sm:$0xff]
  %v124 = vld [vmem:[%s0 + $0x358] sm:$0xff]
  %v125 = vld [vmem:[%s0 + $0x360] sm:$0xff]
  %v126 = vld [vmem:[%s0 + $0x368] sm:$0xff]
  %v127 = vld [vmem:[%s0 + $0x370] sm:$0xff]
  %v128 = vld [vmem:[%s0 + $0x378] sm:$0xff]
  %v129 = vld [vmem:[%s0 + $0x380] sm:$0xff]
  %v130 = vld [vmem:[%s0 + $0x388] sm:$0xff]
  %v131 = vld [vmem:[%s0 + $0x390] sm:$0xff]
  %v132 = vld [vmem:[%s0 + $0x398] sm:$0xff]
  %v133 = vld [vmem:[%s0 + $0x3a0] sm:$0xff]
  %v134 = vld [vmem:[%s0 + $0x3a8] sm:$0xff]
  %v135 = vld [vmem:[%s0 + $0x3b0] sm:$0xff]
  %v136 = vld [vmem:[%s0 + $0x3b8] sm:$0xff]
  %v137 = vld [vmem:[%s0 + $0x3c0] sm:$0xff]
  %v138 = vld [vmem:[%s1] sm:$0xff]
  %v139 = vld [vmem:[%s1 + $0x8] sm:$0xff]
  %v140 = vld [vmem:[%s1 + $0x10] sm:$0xff]
  %v141 = vld [vmem:[%s1 + $0x18] sm:$0xff]
  %v142 = vld [vmem:[%s1 + $0x20] sm:$0xff]
  %v143 = vld [vmem:[%s1 + $0x28] sm:$0xff]
  %v144 = vld [vmem:[%s1 + $0x30] sm:$0x1]
  %vm145 = vcmask 400384
  %v147 = vsel %vm145, %v17, 0
  %v150 = vsel %vm145, %v18, 0
  %v153 = vsel %vm145, %v19, 0
  %v156 = vsel %vm145, %v20, 0
  %v159 = vsel %vm145, %v21, 0
  %v162 = vsel %vm145, %v22, 0
  %v165 = vsel %vm145, %v23, 0
  %v168 = vsel %vm145, %v24, 0
  %v171 = vsel %vm145, %v25, 0
  %v174 = vsel %vm145, %v26, 0
  %v177 = vsel %vm145, %v27, 0
  %v180 = vsel %vm145, %v28, 0
  %v183 = vsel %vm145, %v29, 0
  %v186 = vsel %vm145, %v30, 0
  %v189 = vsel %vm145, %v31, 0
  %v192 = vsel %vm145, %v32, 0
  %v195 = vsel %vm145, %v33, 0
  %v198 = vsel %vm145, %v34, 0
  %v201 = vsel %vm145, %v35, 0
  %v204 = vsel %vm145, %v36, 0
  %v207 = vsel %vm145, %v37, 0
  %v210 = vsel %vm145, %v38, 0
  %v213 = vsel %vm145, %v39, 0
  %v216 = vsel %vm145, %v40, 0
  %v219 = vsel %vm145, %v41, 0
  %v222 = vsel %vm145, %v42, 0
  %v225 = vsel %vm145, %v43, 0
  %v228 = vsel %vm145, %v44, 0
  %v231 = vsel %vm145, %v45, 0
  %v234 = vsel %vm145, %v46, 0
  %v237 = vsel %vm145, %v47, 0
  %v240 = vsel %vm145, %v48, 0
  %v243 = vsel %vm145, %v49, 0
  %v246 = vsel %vm145, %v50, 0
  %v249 = vsel %vm145, %v51, 0
  %v252 = vsel %vm145, %v52, 0
  %v255 = vsel %vm145, %v53, 0
  %v258 = vsel %vm145, %v54, 0
  %v261 = vsel %vm145, %v55, 0
  %v264 = vsel %vm145, %v56, 0
  %v267 = vsel %vm145, %v57, 0
  %v270 = vsel %vm145, %v58, 0
  %v273 = vsel %vm145, %v59, 0
  %v276 = vsel %vm145, %v60, 0
  %v279 = vsel %vm145, %v61, 0
  %v282 = vsel %vm145, %v62, 0
  %v285 = vsel %vm145, %v63, 0
  %v288 = vsel %vm145, %v64, 0
  %v291 = vsel %vm145, %v65, 0
  %v294 = vsel %vm145, %v66, 0
  %v297 = vsel %vm145, %v67, 0
  %v300 = vsel %vm145, %v68, 0
  %v303 = vsel %vm145, %v69, 0
  %v306 = vsel %vm145, %v70, 0
  %v309 = vsel %vm145, %v71, 0
  %v312 = vsel %vm145, %v72, 0
  %v315 = vsel %vm145, %v73, 0
  %v318 = vsel %vm145, %v74, 0
  %v321 = vsel %vm145, %v75, 0
  %v324 = vsel %vm145, %v76, 0
  %v327 = vsel %vm145, %v77, 0
  %v330 = vsel %vm145, %v78, 0
  %v333 = vsel %vm145, %v79, 0
  %v336 = vsel %vm145, %v80, 0
  %v339 = vsel %vm145, %v81, 0
  %v342 = vsel %vm145, %v82, 0
  %v345 = vsel %vm145, %v83, 0
  %v348 = vsel %vm145, %v84, 0
  %v351 = vsel %vm145, %v85, 0
  %v354 = vsel %vm145, %v86, 0
  %v357 = vsel %vm145, %v87, 0
  %v360 = vsel %vm145, %v88, 0
  %v363 = vsel %vm145, %v89, 0
  %v366 = vsel %vm145, %v90, 0
  %v369 = vsel %vm145, %v91, 0
  %v372 = vsel %vm145, %v92, 0
  %v375 = vsel %vm145, %v93, 0
  %v378 = vsel %vm145, %v94, 0
  %v381 = vsel %vm145, %v95, 0
  %v384 = vsel %vm145, %v96, 0
  %v387 = vsel %vm145, %v97, 0
  %v390 = vsel %vm145, %v98, 0
  %v393 = vsel %vm145, %v99, 0
  %v396 = vsel %vm145, %v100, 0
  %v399 = vsel %vm145, %v101, 0
  %v402 = vsel %vm145, %v102, 0
  %v405 = vsel %vm145, %v103, 0
  %v408 = vsel %vm145, %v104, 0
  %v411 = vsel %vm145, %v105, 0
  %v414 = vsel %vm145, %v106, 0
  %v417 = vsel %vm145, %v107, 0
  %v420 = vsel %vm145, %v108, 0
  %v423 = vsel %vm145, %v109, 0
  %v426 = vsel %vm145, %v110, 0
  %v429 = vsel %vm145, %v111, 0
  %v432 = vsel %vm145, %v112, 0
  %v435 = vsel %vm145, %v113, 0
  %v438 = vsel %vm145, %v114, 0
  %v441 = vsel %vm145, %v115, 0
  %v444 = vsel %vm145, %v116, 0
  %v447 = vsel %vm145, %v117, 0
  %v450 = vsel %vm145, %v118, 0
  %v453 = vsel %vm145, %v119, 0
  %v456 = vsel %vm145, %v120, 0
  %v459 = vsel %vm145, %v121, 0
  %v462 = vsel %vm145, %v122, 0
  %v465 = vsel %vm145, %v123, 0
  %v468 = vsel %vm145, %v124, 0
  %v471 = vsel %vm145, %v125, 0
  %v474 = vsel %vm145, %v126, 0
  %v477 = vsel %vm145, %v127, 0
  %v480 = vsel %vm145, %v128, 0
  %v483 = vsel %vm145, %v129, 0
  %v486 = vsel %vm145, %v130, 0
  %v489 = vsel %vm145, %v131, 0
  %v492 = vsel %vm145, %v132, 0
  %v495 = vsel %vm145, %v133, 0
  %v498 = vsel %vm145, %v134, 0
  %v501 = vsel %vm145, %v135, 0
  %v504 = vsel %vm145, %v136, 0
  %v507 = vsel %vm145, %v137, 0
  %vm509 = vcmask 1040384
  %v511 = vsel %vm509, %v144, 0
  %513 = vmatprep.subr.mxu0 0.0
  %514 = vmatpush1.msra.mxu0 %v138
  %515 = vmatprep.subr.mxu0 0.0
  %516 = vmatpush1.msra.mxu0 %v139
  %517 = vmatprep.subr.mxu0 0.0
  %518 = vmatpush1.msra.mxu0 %v140
  %519 = vmatprep.subr.mxu0 0.0
  %520 = vmatpush1.msra.mxu0 %v141
  %521 = vmatprep.subr.mxu0 0.0
  %522 = vmatpush1.msra.mxu0 %v142
  %523 = vmatprep.subr.mxu0 0.0
  %524 = vmatpush1.msra.mxu0 %v143
  %525 = vmatprep.subr.mxu0 0.0
  %526 = vmatpush1.msra.mxu0 %v511
  %527 = vmatprep.subr.mxu0 0.0
  %528 = vmatpush1.msra.mxu0 0.0
  %529 = vmatprep.subr.mxu0 0.0
  %530 = vmatpush1.msra.mxu0 0.0
  %531 = vmatprep.subr.mxu0 0.0
  %532 = vmatpush1.msra.mxu0 0.0
  %533 = vmatprep.subr.mxu0 0.0
  %534 = vmatpush1.msra.mxu0 0.0
  %535 = vmatprep.subr.mxu0 0.0
  %536 = vmatpush1.msra.mxu0 0.0
  %537 = vmatprep.subr.mxu0 0.0
  %538 = vmatpush1.msra.mxu0 0.0
  %539 = vmatprep.subr.mxu0 0.0
  %540 = vmatpush1.msra.mxu0 0.0
  %541 = vmatprep.subr.mxu0 0.0
  %542 = vmatpush1.msra.mxu0 0.0
  %543 = vmatprep.subr.mxu0 0.0
  %544 = vmatpush1.msra.mxu0 0.0
  %545 = vmatprep.subr.mxu0 0.0
  %546 = vmatpush1.msra.mxu0 0.0
  %547 = vmatprep.subr.mxu0 0.0
  %548 = vmatpush1.msra.mxu0 0.0
  %549 = vmatprep.subr.mxu0 0.0
  %550 = vmatpush1.msra.mxu0 0.0
  %551 = vmatprep.subr.mxu0 0.0
  %552 = vmatpush1.msra.mxu0 0.0
  %553 = vmatprep.subr.mxu0 0.0
  %554 = vmatpush1.msra.mxu0 0.0
  %555 = vmatprep.subr.mxu0 0.0
  %556 = vmatpush1.msra.mxu0 0.0
  %557 = vmatprep.subr.mxu0 0.0
  %558 = vmatpush1.msra.mxu0 0.0
  %559 = vmatprep.subr.mxu0 0.0
  %560 = vmatpush1.msra.mxu0 0.0
  %561 = vmatprep.subr.mxu0 0.0
  %562 = vmatpush1.msra.mxu0 0.0
  %563 = vmatprep.subr.mxu0 0.0
  %564 = vmatpush1.msra.mxu0 0.0
  %565 = vmatprep.subr.mxu0 0.0
  %566 = vmatpush1.msra.mxu0 0.0
  %567 = vmatprep.subr.mxu0 0.0
  %568 = vmatpush1.msra.mxu0 0.0
  %569 = vmatprep.subr.mxu0 0.0
  %570 = vmatpush1.msra.mxu0 0.0
  %571 = vmatprep.subr.mxu0 0.0
  %572 = vmatpush1.msra.mxu0 0.0
  %573 = vmatprep.subr.mxu0 0.0
  %574 = vmatpush1.msra.mxu0 0.0
  %575 = vmatprep.subr.mxu0 0.0
  %576 = vmatpush1.msra.mxu0 0.0
  %577 = vmatprep.mubr.f32.mxu0 0.0
  %578 = vmatmul.mubr.f32.gmra.mrb[0].mxu0 %v147
  %v579 = vpop.f32.mrb[0].mxu0
  %v580 = vadd.f32 0.0, %v579
  %v581 = vpop.f32.mrb[0].mxu0
  %582 = vmatprep.mubr.f32.mxu0 0.0
  %583 = vmatmul.mubr.f32.gmra.mrb[0].mxu0 %v150
  %v584 = vpop.f32.mrb[0].mxu0
  %v585 = vadd.f32 0.0, %v584
  %v586 = vpop.f32.mrb[0].mxu0
  %587 = vmatprep.mubr.f32.mxu0 0.0
  %588 = vmatmul.mubr.f32.gmra.mrb[0].mxu0 %v153
  %v589 = vpop.f32.mrb[0].mxu0
  %v590 = vadd.f32 0.0, %v589
  %v591 = vpop.f32.mrb[0].mxu0
  %592 = vmatprep.mubr.f32.mxu0 0.0
  %593 = vmatmul.mubr.f32.gmra.mrb[0].mxu0 %v156
  %v594 = vpop.f32.mrb[0].mxu0
  %v595 = vadd.f32 0.0, %v594
  %v596 = vpop.f32.mrb[0].mxu0
  %597 = vmatprep.mubr.f32.mxu0 0.0
  %598 = vmatmul.mubr.f32.gmra.mrb[0].mxu0 %v159
  %v599 = vpop.f32.mrb[0].mxu0
  %v600 = vadd.f32 0.0, %v599
  %v601 = vpop.f32.mrb[0].mxu0
  %602 = vmatprep.mubr.f32.mxu0 0.0
  %603 = vmatmul.mubr.f32.gmra.mrb[0].mxu0 %v162
  %v604 = vpop.f32.mrb[0].mxu0
  %v605 = vadd.f32 0.0, %v604
  %v606 = vpop.f32.mrb[0].mxu0
  %607 = vmatprep.mubr.f32.mxu0 0.0
  %608 = vmatmul.mubr.f32.gmra.mrb[0].mxu0 %v165
  %v609 = vpop.f32.mrb[0].mxu0
  %v610 = vadd.f32 0.0, %v609
  %v611 = vpop.f32.mrb[0].mxu0
  %612 = vmatprep.mubr.f32.mxu0 0.0
  %613 = vmatmul.mubr.f32.gmra.mrb[0].mxu0 %v168
  %v614 = vpop.f32.mrb[0].mxu0
  %v615 = vadd.f32 0.0, %v614
  %v616 = vpop.f32.mrb[0].mxu0
  %617 = vmatprep.mubr.f32.mxu0 0.0
  %618 = vmatmul.mubr.f32.gmra.mrb[0].mxu0 %v171
  %v619 = vpop.f32.mrb[0].mxu0
  %v620 = vadd.f32 0.0, %v619
  %v621 = vpop.f32.mrb[0].mxu0
  %622 = vmatprep.mubr.f32.mxu0 0.0
  %623 = vmatmul.mubr.f32.gmra.mrb[0].mxu0 %v174
  %v624 = vpop.f32.mrb[0].mxu0
  %v625 = vadd.f32 0.0, %v624
  %v626 = vpop.f32.mrb[0].mxu0
  %627 = vmatprep.mubr.f32.mxu0 0.0
  %628 = vmatmul.mubr.f32.gmra.mrb[0].mxu0 %v177
  %v629 = vpop.f32.mrb[0].mxu0
  %v630 = vadd.f32 0.0, %v629
  %v631 = vpop.f32.mrb[0].mxu0
  %632 = vmatprep.mubr.f32.mxu0 0.0
  %633 = vmatmul.mubr.f32.gmra.mrb[0].mxu0 %v180
  %v634 = vpop.f32.mrb[0].mxu0
  %v635 = vadd.f32 0.0, %v634
  %v636 = vpop.f32.mrb[0].mxu0
  %637 = vmatprep.mubr.f32.mxu0 0.0
  %638 = vmatmul.mubr.f32.gmra.mrb[0].mxu0 %v183
  %v639 = vpop.f32.mrb[0].mxu0
  %v640 = vadd.f32 0.0, %v639
  %v641 = vpop.f32.mrb[0].mxu0
  %642 = vmatprep.mubr.f32.mxu0 0.0
  %643 = vmatmul.mubr.f32.gmra.mrb[0].mxu0 %v186
  %v644 = vpop.f32.mrb[0].mxu0
  %v645 = vadd.f32 0.0, %v644
  %v646 = vpop.f32.mrb[0].mxu0
  %647 = vmatprep.mubr.f32.mxu0 0.0
  %648 = vmatmul.mubr.f32.gmra.mrb[0].mxu0 %v189
  %v649 = vpop.f32.mrb[0].mxu0
  %v650 = vadd.f32 0.0, %v649
  %v651 = vpop.f32.mrb[0].mxu0
  %652 = vmatprep.mubr.f32.mxu0 0.0
  %653 = vmatmul.mubr.f32.gmra.mrb[0].mxu0 %v192
  %v654 = vpop.f32.mrb[0].mxu0
  %v655 = vadd.f32 0.0, %v654
  %v656 = vpop.f32.mrb[0].mxu0
  %657 = vmatprep.mubr.f32.mxu0 0.0
  %658 = vmatmul.mubr.f32.gmra.mrb[0].mxu0 %v195
  %v659 = vpop.f32.mrb[0].mxu0
  %v660 = vadd.f32 0.0, %v659
  %v661 = vpop.f32.mrb[0].mxu0
  %662 = vmatprep.mubr.f32.mxu0 0.0
  %663 = vmatmul.mubr.f32.gmra.mrb[0].mxu0 %v198
  %v664 = vpop.f32.mrb[0].mxu0
  %v665 = vadd.f32 0.0, %v664
  %v666 = vpop.f32.mrb[0].mxu0
  %667 = vmatprep.mubr.f32.mxu0 0.0
  %668 = vmatmul.mubr.f32.gmra.mrb[0].mxu0 %v201
  %v669 = vpop.f32.mrb[0].mxu0
  %v670 = vadd.f32 0.0, %v669
  %v671 = vpop.f32.mrb[0].mxu0
  %672 = vmatprep.mubr.f32.mxu0 0.0
  %673 = vmatmul.mubr.f32.gmra.mrb[0].mxu0 %v204
  %v674 = vpop.f32.mrb[0].mxu0
  %v675 = vadd.f32 0.0, %v674
  %v676 = vpop.f32.mrb[0].mxu0
  %677 = vmatprep.mubr.f32.mxu0 0.0
  %678 = vmatmul.mubr.f32.gmra.mrb[0].mxu0 %v207
  %v679 = vpop.f32.mrb[0].mxu0
  %v680 = vadd.f32 0.0, %v679
  %v681 = vpop.f32.mrb[0].mxu0
  %682 = vmatprep.mubr.f32.mxu0 0.0
  %683 = vmatmul.mubr.f32.gmra.mrb[0].mxu0 %v210
  %v684 = vpop.f32.mrb[0].mxu0
  %v685 = vadd.f32 0.0, %v684
  %v686 = vpop.f32.mrb[0].mxu0
  %687 = vmatprep.mubr.f32.mxu0 0.0
  %688 = vmatmul.mubr.f32.gmra.mrb[0].mxu0 %v213
  %v689 = vpop.f32.mrb[0].mxu0
  %v690 = vadd.f32 0.0, %v689
  %v691 = vpop.f32.mrb[0].mxu0
  %692 = vmatprep.mubr.f32.mxu0 0.0
  %693 = vmatmul.mubr.f32.gmra.mrb[0].mxu0 %v216
  %v694 = vpop.f32.mrb[0].mxu0
  %v695 = vadd.f32 0.0, %v694
  %v696 = vpop.f32.mrb[0].mxu0
  %697 = vmatprep.mubr.f32.mxu0 0.0
  %698 = vmatmul.mubr.f32.gmra.mrb[0].mxu0 %v219
  %v699 = vpop.f32.mrb[0].mxu0
  %v700 = vadd.f32 0.0, %v699
  %v701 = vpop.f32.mrb[0].mxu0
  %702 = vmatprep.mubr.f32.mxu0 0.0
  %703 = vmatmul.mubr.f32.gmra.mrb[0].mxu0 %v222
  %v704 = vpop.f32.mrb[0].mxu0
  %v705 = vadd.f32 0.0, %v704
  %v706 = vpop.f32.mrb[0].mxu0
  %707 = vmatprep.mubr.f32.mxu0 0.0
  %708 = vmatmul.mubr.f32.gmra.mrb[0].mxu0 %v225
  %v709 = vpop.f32.mrb[0].mxu0
  %v710 = vadd.f32 0.0, %v709
  %v711 = vpop.f32.mrb[0].mxu0
  %712 = vmatprep.mubr.f32.mxu0 0.0
  %713 = vmatmul.mubr.f32.gmra.mrb[0].mxu0 %v228
  %v714 = vpop.f32.mrb[0].mxu0
  %v715 = vadd.f32 0.0, %v714
  %v716 = vpop.f32.mrb[0].mxu0
  %717 = vmatprep.mubr.f32.mxu0 0.0
  %718 = vmatmul.mubr.f32.gmra.mrb[0].mxu0 %v231
  %v719 = vpop.f32.mrb[0].mxu0
  %v720 = vadd.f32 0.0, %v719
  %v721 = vpop.f32.mrb[0].mxu0
  %722 = vmatprep.mubr.f32.mxu0 0.0
  %723 = vmatmul.mubr.f32.gmra.mrb[0].mxu0 %v234
  %v724 = vpop.f32.mrb[0].mxu0
  %v725 = vadd.f32 0.0, %v724
  %v726 = vpop.f32.mrb[0].mxu0
  %727 = vmatprep.mubr.f32.mxu0 0.0
  %728 = vmatmul.mubr.f32.gmra.mrb[0].mxu0 %v237
  %v729 = vpop.f32.mrb[0].mxu0
  %v730 = vadd.f32 0.0, %v729
  %v731 = vpop.f32.mrb[0].mxu0
  %732 = vmatprep.mubr.f32.mxu0 0.0
  %733 = vmatmul.mubr.f32.gmra.mrb[0].mxu0 %v240
  %v734 = vpop.f32.mrb[0].mxu0
  %v735 = vadd.f32 0.0, %v734
  %v736 = vpop.f32.mrb[0].mxu0
  %737 = vmatprep.mubr.f32.mxu0 0.0
  %738 = vmatmul.mubr.f32.gmra.mrb[0].mxu0 %v243
  %v739 = vpop.f32.mrb[0].mxu0
  %v740 = vadd.f32 0.0, %v739
  %v741 = vpop.f32.mrb[0].mxu0
  %742 = vmatprep.mubr.f32.mxu0 0.0
  %743 = vmatmul.mubr.f32.gmra.mrb[0].mxu0 %v246
  %v744 = vpop.f32.mrb[0].mxu0
  %v745 = vadd.f32 0.0, %v744
  %v746 = vpop.f32.mrb[0].mxu0
  %747 = vmatprep.mubr.f32.mxu0 0.0
  %748 = vmatmul.mubr.f32.gmra.mrb[0].mxu0 %v249
  %v749 = vpop.f32.mrb[0].mxu0
  %v750 = vadd.f32 0.0, %v749
  %v751 = vpop.f32.mrb[0].mxu0
  %752 = vmatprep.mubr.f32.mxu0 0.0
  %753 = vmatmul.mubr.f32.gmra.mrb[0].mxu0 %v252
  %v754 = vpop.f32.mrb[0].mxu0
  %v755 = vadd.f32 0.0, %v754
  %v756 = vpop.f32.mrb[0].mxu0
  %757 = vmatprep.mubr.f32.mxu0 0.0
  %758 = vmatmul.mubr.f32.gmra.mrb[0].mxu0 %v255
  %v759 = vpop.f32.mrb[0].mxu0
  %v760 = vadd.f32 0.0, %v759
  %v761 = vpop.f32.mrb[0].mxu0
  %762 = vmatprep.mubr.f32.mxu0 0.0
  %763 = vmatmul.mubr.f32.gmra.mrb[0].mxu0 %v258
  %v764 = vpop.f32.mrb[0].mxu0
  %v765 = vadd.f32 0.0, %v764
  %v766 = vpop.f32.mrb[0].mxu0
  %767 = vmatprep.mubr.f32.mxu0 0.0
  %768 = vmatmul.mubr.f32.gmra.mrb[0].mxu0 %v261
  %v769 = vpop.f32.mrb[0].mxu0
  %v770 = vadd.f32 0.0, %v769
  %v771 = vpop.f32.mrb[0].mxu0
  %772 = vmatprep.mubr.f32.mxu0 0.0
  %773 = vmatmul.mubr.f32.gmra.mrb[0].mxu0 %v264
  %v774 = vpop.f32.mrb[0].mxu0
  %v775 = vadd.f32 0.0, %v774
  %v776 = vpop.f32.mrb[0].mxu0
  %777 = vmatprep.mubr.f32.mxu0 0.0
  %778 = vmatmul.mubr.f32.gmra.mrb[0].mxu0 %v267
  %v779 = vpop.f32.mrb[0].mxu0
  %v780 = vadd.f32 0.0, %v779
  %v781 = vpop.f32.mrb[0].mxu0
  %782 = vmatprep.mubr.f32.mxu0 0.0
  %783 = vmatmul.mubr.f32.gmra.mrb[0].mxu0 %v270
  %v784 = vpop.f32.mrb[0].mxu0
  %v785 = vadd.f32 0.0, %v784
  %v786 = vpop.f32.mrb[0].mxu0
  %787 = vmatprep.mubr.f32.mxu0 0.0
  %788 = vmatmul.mubr.f32.gmra.mrb[0].mxu0 %v273
  %v789 = vpop.f32.mrb[0].mxu0
  %v790 = vadd.f32 0.0, %v789
  %v791 = vpop.f32.mrb[0].mxu0
  %792 = vmatprep.mubr.f32.mxu0 0.0
  %793 = vmatmul.mubr.f32.gmra.mrb[0].mxu0 %v276
  %v794 = vpop.f32.mrb[0].mxu0
  %v795 = vadd.f32 0.0, %v794
  %v796 = vpop.f32.mrb[0].mxu0
  %797 = vmatprep.mubr.f32.mxu0 0.0
  %798 = vmatmul.mubr.f32.gmra.mrb[0].mxu0 %v279
  %v799 = vpop.f32.mrb[0].mxu0
  %v800 = vadd.f32 0.0, %v799
  %v801 = vpop.f32.mrb[0].mxu0
  %802 = vmatprep.mubr.f32.mxu0 0.0
  %803 = vmatmul.mubr.f32.gmra.mrb[0].mxu0 %v282
  %v804 = vpop.f32.mrb[0].mxu0
  %v805 = vadd.f32 0.0, %v804
  %v806 = vpop.f32.mrb[0].mxu0
  %807 = vmatprep.mubr.f32.mxu0 0.0
  %808 = vmatmul.mubr.f32.gmra.mrb[0].mxu0 %v285
  %v809 = vpop.f32.mrb[0].mxu0
  %v810 = vadd.f32 0.0, %v809
  %v811 = vpop.f32.mrb[0].mxu0
  %812 = vmatprep.mubr.f32.mxu0 0.0
  %813 = vmatmul.mubr.f32.gmra.mrb[0].mxu0 %v288
  %v814 = vpop.f32.mrb[0].mxu0
  %v815 = vadd.f32 0.0, %v814
  %v816 = vpop.f32.mrb[0].mxu0
  %817 = vmatprep.mubr.f32.mxu0 0.0
  %818 = vmatmul.mubr.f32.gmra.mrb[0].mxu0 %v291
  %v819 = vpop.f32.mrb[0].mxu0
  %v820 = vadd.f32 0.0, %v819
  %v821 = vpop.f32.mrb[0].mxu0
  %822 = vmatprep.mubr.f32.mxu0 0.0
  %823 = vmatmul.mubr.f32.gmra.mrb[0].mxu0 %v294
  %v824 = vpop.f32.mrb[0].mxu0
  %v825 = vadd.f32 0.0, %v824
  %v826 = vpop.f32.mrb[0].mxu0
  %827 = vmatprep.mubr.f32.mxu0 0.0
  %828 = vmatmul.mubr.f32.gmra.mrb[0].mxu0 %v297
  %v829 = vpop.f32.mrb[0].mxu0
  %v830 = vadd.f32 0.0, %v829
  %v831 = vpop.f32.mrb[0].mxu0
  %832 = vmatprep.mubr.f32.mxu0 0.0
  %833 = vmatmul.mubr.f32.gmra.mrb[0].mxu0 %v300
  %v834 = vpop.f32.mrb[0].mxu0
  %v835 = vadd.f32 0.0, %v834
  %v836 = vpop.f32.mrb[0].mxu0
  %837 = vmatprep.mubr.f32.mxu0 0.0
  %838 = vmatmul.mubr.f32.gmra.mrb[0].mxu0 %v303
  %v839 = vpop.f32.mrb[0].mxu0
  %v840 = vadd.f32 0.0, %v839
  %v841 = vpop.f32.mrb[0].mxu0
  %842 = vmatprep.mubr.f32.mxu0 0.0
  %843 = vmatmul.mubr.f32.gmra.mrb[0].mxu0 %v306
  %v844 = vpop.f32.mrb[0].mxu0
  %v845 = vadd.f32 0.0, %v844
  %v846 = vpop.f32.mrb[0].mxu0
  %847 = vmatprep.mubr.f32.mxu0 0.0
  %848 = vmatmul.mubr.f32.gmra.mrb[0].mxu0 %v309
  %v849 = vpop.f32.mrb[0].mxu0
  %v850 = vadd.f32 0.0, %v849
  %v851 = vpop.f32.mrb[0].mxu0
  %852 = vmatprep.mubr.f32.mxu0 0.0
  %853 = vmatmul.mubr.f32.gmra.mrb[0].mxu0 %v312
  %v854 = vpop.f32.mrb[0].mxu0
  %v855 = vadd.f32 0.0, %v854
  %v856 = vpop.f32.mrb[0].mxu0
  %857 = vmatprep.mubr.f32.mxu0 0.0
  %858 = vmatmul.mubr.f32.gmra.mrb[0].mxu0 %v315
  %v859 = vpop.f32.mrb[0].mxu0
  %v860 = vadd.f32 0.0, %v859
  %v861 = vpop.f32.mrb[0].mxu0
  %862 = vmatprep.mubr.f32.mxu0 0.0
  %863 = vmatmul.mubr.f32.gmra.mrb[0].mxu0 %v318
  %v864 = vpop.f32.mrb[0].mxu0
  %v865 = vadd.f32 0.0, %v864
  %v866 = vpop.f32.mrb[0].mxu0
  %867 = vmatprep.mubr.f32.mxu0 0.0
  %868 = vmatmul.mubr.f32.gmra.mrb[0].mxu0 %v321
  %v869 = vpop.f32.mrb[0].mxu0
  %v870 = vadd.f32 0.0, %v869
  %v871 = vpop.f32.mrb[0].mxu0
  %872 = vmatprep.mubr.f32.mxu0 0.0
  %873 = vmatmul.mubr.f32.gmra.mrb[0].mxu0 %v324
  %v874 = vpop.f32.mrb[0].mxu0
  %v875 = vadd.f32 0.0, %v874
  %v876 = vpop.f32.mrb[0].mxu0
  %877 = vmatprep.mubr.f32.mxu0 0.0
  %878 = vmatmul.mubr.f32.gmra.mrb[0].mxu0 %v327
  %v879 = vpop.f32.mrb[0].mxu0
  %v880 = vadd.f32 0.0, %v879
  %v881 = vpop.f32.mrb[0].mxu0
  %882 = vmatprep.mubr.f32.mxu0 0.0
  %883 = vmatmul.mubr.f32.gmra.mrb[0].mxu0 %v330
  %v884 = vpop.f32.mrb[0].mxu0
  %v885 = vadd.f32 0.0, %v884
  %v886 = vpop.f32.mrb[0].mxu0
  %887 = vmatprep.mubr.f32.mxu0 0.0
  %888 = vmatmul.mubr.f32.gmra.mrb[0].mxu0 %v333
  %v889 = vpop.f32.mrb[0].mxu0
  %v890 = vadd.f32 0.0, %v889
  %v891 = vpop.f32.mrb[0].mxu0
  %892 = vmatprep.mubr.f32.mxu0 0.0
  %893 = vmatmul.mubr.f32.gmra.mrb[0].mxu0 %v336
  %v894 = vpop.f32.mrb[0].mxu0
  %v895 = vadd.f32 0.0, %v894
  %v896 = vpop.f32.mrb[0].mxu0
  %897 = vmatprep.mubr.f32.mxu0 0.0
  %898 = vmatmul.mubr.f32.gmra.mrb[0].mxu0 %v339
  %v899 = vpop.f32.mrb[0].mxu0
  %v900 = vadd.f32 0.0, %v899
  %v901 = vpop.f32.mrb[0].mxu0
  %902 = vmatprep.mubr.f32.mxu0 0.0
  %903 = vmatmul.mubr.f32.gmra.mrb[0].mxu0 %v342
  %v904 = vpop.f32.mrb[0].mxu0
  %v905 = vadd.f32 0.0, %v904
  %v906 = vpop.f32.mrb[0].mxu0
  %907 = vmatprep.mubr.f32.mxu0 0.0
  %908 = vmatmul.mubr.f32.gmra.mrb[0].mxu0 %v345
  %v909 = vpop.f32.mrb[0].mxu0
  %v910 = vadd.f32 0.0, %v909
  %v911 = vpop.f32.mrb[0].mxu0
  %912 = vmatprep.mubr.f32.mxu0 0.0
  %913 = vmatmul.mubr.f32.gmra.mrb[0].mxu0 %v348
  %v914 = vpop.f32.mrb[0].mxu0
  %v915 = vadd.f32 0.0, %v914
  %v916 = vpop.f32.mrb[0].mxu0
  %917 = vmatprep.mubr.f32.mxu0 0.0
  %918 = vmatmul.mubr.f32.gmra.mrb[0].mxu0 %v351
  %v919 = vpop.f32.mrb[0].mxu0
  %v920 = vadd.f32 0.0, %v919
  %v921 = vpop.f32.mrb[0].mxu0
  %922 = vmatprep.mubr.f32.mxu0 0.0
  %923 = vmatmul.mubr.f32.gmra.mrb[0].mxu0 %v354
  %v924 = vpop.f32.mrb[0].mxu0
  %v925 = vadd.f32 0.0, %v924
  %v926 = vpop.f32.mrb[0].mxu0
  %927 = vmatprep.mubr.f32.mxu0 0.0
  %928 = vmatmul.mubr.f32.gmra.mrb[0].mxu0 %v357
  %v929 = vpop.f32.mrb[0].mxu0
  %v930 = vadd.f32 0.0, %v929
  %v931 = vpop.f32.mrb[0].mxu0
  %932 = vmatprep.mubr.f32.mxu0 0.0
  %933 = vmatmul.mubr.f32.gmra.mrb[0].mxu0 %v360
  %v934 = vpop.f32.mrb[0].mxu0
  %v935 = vadd.f32 0.0, %v934
  %v936 = vpop.f32.mrb[0].mxu0
  %937 = vmatprep.mubr.f32.mxu0 0.0
  %938 = vmatmul.mubr.f32.gmra.mrb[0].mxu0 %v363
  %v939 = vpop.f32.mrb[0].mxu0
  %v940 = vadd.f32 0.0, %v939
  %v941 = vpop.f32.mrb[0].mxu0
  %942 = vmatprep.mubr.f32.mxu0 0.0
  %943 = vmatmul.mubr.f32.gmra.mrb[0].mxu0 %v366
  %v944 = vpop.f32.mrb[0].mxu0
  %v945 = vadd.f32 0.0, %v944
  %v946 = vpop.f32.mrb[0].mxu0
  %947 = vmatprep.mubr.f32.mxu0 0.0
  %948 = vmatmul.mubr.f32.gmra.mrb[0].mxu0 %v369
  %v949 = vpop.f32.mrb[0].mxu0
  %v950 = vadd.f32 0.0, %v949
  %v951 = vpop.f32.mrb[0].mxu0
  %952 = vmatprep.mubr.f32.mxu0 0.0
  %953 = vmatmul.mubr.f32.gmra.mrb[0].mxu0 %v372
  %v954 = vpop.f32.mrb[0].mxu0
  %v955 = vadd.f32 0.0, %v954
  %v956 = vpop.f32.mrb[0].mxu0
  %957 = vmatprep.mubr.f32.mxu0 0.0
  %958 = vmatmul.mubr.f32.gmra.mrb[0].mxu0 %v375
  %v959 = vpop.f32.mrb[0].mxu0
  %v960 = vadd.f32 0.0, %v959
  %v961 = vpop.f32.mrb[0].mxu0
  %962 = vmatprep.mubr.f32.mxu0 0.0
  %963 = vmatmul.mubr.f32.gmra.mrb[0].mxu0 %v378
  %v964 = vpop.f32.mrb[0].mxu0
  %v965 = vadd.f32 0.0, %v964
  %v966 = vpop.f32.mrb[0].mxu0
  %967 = vmatprep.mubr.f32.mxu0 0.0
  %968 = vmatmul.mubr.f32.gmra.mrb[0].mxu0 %v381
  %v969 = vpop.f32.mrb[0].mxu0
  %v970 = vadd.f32 0.0, %v969
  %v971 = vpop.f32.mrb[0].mxu0
  %972 = vmatprep.mubr.f32.mxu0 0.0
  %973 = vmatmul.mubr.f32.gmra.mrb[0].mxu0 %v384
  %v974 = vpop.f32.mrb[0].mxu0
  %v975 = vadd.f32 0.0, %v974
  %v976 = vpop.f32.mrb[0].mxu0
  %977 = vmatprep.mubr.f32.mxu0 0.0
  %978 = vmatmul.mubr.f32.gmra.mrb[0].mxu0 %v387
  %v979 = vpop.f32.mrb[0].mxu0
  %v980 = vadd.f32 0.0, %v979
  %v981 = vpop.f32.mrb[0].mxu0
  %982 = vmatprep.mubr.f32.mxu0 0.0
  %983 = vmatmul.mubr.f32.gmra.mrb[0].mxu0 %v390
  %v984 = vpop.f32.mrb[0].mxu0
  %v985 = vadd.f32 0.0, %v984
  %v986 = vpop.f32.mrb[0].mxu0
  %987 = vmatprep.mubr.f32.mxu0 0.0
  %988 = vmatmul.mubr.f32.gmra.mrb[0].mxu0 %v393
  %v989 = vpop.f32.mrb[0].mxu0
  %v990 = vadd.f32 0.0, %v989
  %v991 = vpop.f32.mrb[0].mxu0
  %992 = vmatprep.mubr.f32.mxu0 0.0
  %993 = vmatmul.mubr.f32.gmra.mrb[0].mxu0 %v396
  %v994 = vpop.f32.mrb[0].mxu0
  %v995 = vadd.f32 0.0, %v994
  %v996 = vpop.f32.mrb[0].mxu0
  %997 = vmatprep.mubr.f32.mxu0 0.0
  %998 = vmatmul.mubr.f32.gmra.mrb[0].mxu0 %v399
  %v999 = vpop.f32.mrb[0].mxu0
  %v1000 = vadd.f32 0.0, %v999
  %v1001 = vpop.f32.mrb[0].mxu0
  %1002 = vmatprep.mubr.f32.mxu0 0.0
  %1003 = vmatmul.mubr.f32.gmra.mrb[0].mxu0 %v402
  %v1004 = vpop.f32.mrb[0].mxu0
  %v1005 = vadd.f32 0.0, %v1004
  %v1006 = vpop.f32.mrb[0].mxu0
  %1007 = vmatprep.mubr.f32.mxu0 0.0
  %1008 = vmatmul.mubr.f32.gmra.mrb[0].mxu0 %v405
  %v1009 = vpop.f32.mrb[0].mxu0
  %v1010 = vadd.f32 0.0, %v1009
  %v1011 = vpop.f32.mrb[0].mxu0
  %1012 = vmatprep.mubr.f32.mxu0 0.0
  %1013 = vmatmul.mubr.f32.gmra.mrb[0].mxu0 %v408
  %v1014 = vpop.f32.mrb[0].mxu0
  %v1015 = vadd.f32 0.0, %v1014
  %v1016 = vpop.f32.mrb[0].mxu0
  %1017 = vmatprep.mubr.f32.mxu0 0.0
  %1018 = vmatmul.mubr.f32.gmra.mrb[0].mxu0 %v411
  %v1019 = vpop.f32.mrb[0].mxu0
  %v1020 = vadd.f32 0.0, %v1019
  %v1021 = vpop.f32.mrb[0].mxu0
  %1022 = vmatprep.mubr.f32.mxu0 0.0
  %1023 = vmatmul.mubr.f32.gmra.mrb[0].mxu0 %v414
  %v1024 = vpop.f32.mrb[0].mxu0
  %v1025 = vadd.f32 0.0, %v1024
  %v1026 = vpop.f32.mrb[0].mxu0
  %1027 = vmatprep.mubr.f32.mxu0 0.0
  %1028 = vmatmul.mubr.f32.gmra.mrb[0].mxu0 %v417
  %v1029 = vpop.f32.mrb[0].mxu0
  %v1030 = vadd.f32 0.0, %v1029
  %v1031 = vpop.f32.mrb[0].mxu0
  %1032 = vmatprep.mubr.f32.mxu0 0.0
  %1033 = vmatmul.mubr.f32.gmra.mrb[0].mxu0 %v420
  %v1034 = vpop.f32.mrb[0].mxu0
  %v1035 = vadd.f32 0.0, %v1034
  %v1036 = vpop.f32.mrb[0].mxu0
  %1037 = vmatprep.mubr.f32.mxu0 0.0
  %1038 = vmatmul.mubr.f32.gmra.mrb[0].mxu0 %v423
  %v1039 = vpop.f32.mrb[0].mxu0
  %v1040 = vadd.f32 0.0, %v1039
  %v1041 = vpop.f32.mrb[0].mxu0
  %1042 = vmatprep.mubr.f32.mxu0 0.0
  %1043 = vmatmul.mubr.f32.gmra.mrb[0].mxu0 %v426
  %v1044 = vpop.f32.mrb[0].mxu0
  %v1045 = vadd.f32 0.0, %v1044
  %v1046 = vpop.f32.mrb[0].mxu0
  %1047 = vmatprep.mubr.f32.mxu0 0.0
  %1048 = vmatmul.mubr.f32.gmra.mrb[0].mxu0 %v429
  %v1049 = vpop.f32.mrb[0].mxu0
  %v1050 = vadd.f32 0.0, %v1049
  %v1051 = vpop.f32.mrb[0].mxu0
  %1052 = vmatprep.mubr.f32.mxu0 0.0
  %1053 = vmatmul.mubr.f32.gmra.mrb[0].mxu0 %v432
  %v1054 = vpop.f32.mrb[0].mxu0
  %v1055 = vadd.f32 0.0, %v1054
  %v1056 = vpop.f32.mrb[0].mxu0
  %1057 = vmatprep.mubr.f32.mxu0 0.0
  %1058 = vmatmul.mubr.f32.gmra.mrb[0].mxu0 %v435
  %v1059 = vpop.f32.mrb[0].mxu0
  %v1060 = vadd.f32 0.0, %v1059
  %v1061 = vpop.f32.mrb[0].mxu0
  %1062 = vmatprep.mubr.f32.mxu0 0.0
  %1063 = vmatmul.mubr.f32.gmra.mrb[0].mxu0 %v438
  %v1064 = vpop.f32.mrb[0].mxu0
  %v1065 = vadd.f32 0.0, %v1064
  %v1066 = vpop.f32.mrb[0].mxu0
  %1067 = vmatprep.mubr.f32.mxu0 0.0
  %1068 = vmatmul.mubr.f32.gmra.mrb[0].mxu0 %v441
  %v1069 = vpop.f32.mrb[0].mxu0
  %v1070 = vadd.f32 0.0, %v1069
  %v1071 = vpop.f32.mrb[0].mxu0
  %1072 = vmatprep.mubr.f32.mxu0 0.0
  %1073 = vmatmul.mubr.f32.gmra.mrb[0].mxu0 %v444
  %v1074 = vpop.f32.mrb[0].mxu0
  %v1075 = vadd.f32 0.0, %v1074
  %v1076 = vpop.f32.mrb[0].mxu0
  %1077 = vmatprep.mubr.f32.mxu0 0.0
  %1078 = vmatmul.mubr.f32.gmra.mrb[0].mxu0 %v447
  %v1079 = vpop.f32.mrb[0].mxu0
  %v1080 = vadd.f32 0.0, %v1079
  %v1081 = vpop.f32.mrb[0].mxu0
  %1082 = vmatprep.mubr.f32.mxu0 0.0
  %1083 = vmatmul.mubr.f32.gmra.mrb[0].mxu0 %v450
  %v1084 = vpop.f32.mrb[0].mxu0
  %v1085 = vadd.f32 0.0, %v1084
  %v1086 = vpop.f32.mrb[0].mxu0
  %1087 = vmatprep.mubr.f32.mxu0 0.0
  %1088 = vmatmul.mubr.f32.gmra.mrb[0].mxu0 %v453
  %v1089 = vpop.f32.mrb[0].mxu0
  %v1090 = vadd.f32 0.0, %v1089
  %v1091 = vpop.f32.mrb[0].mxu0
  %1092 = vmatprep.mubr.f32.mxu0 0.0
  %1093 = vmatmul.mubr.f32.gmra.mrb[0].mxu0 %v456
  %v1094 = vpop.f32.mrb[0].mxu0
  %v1095 = vadd.f32 0.0, %v1094
  %v1096 = vpop.f32.mrb[0].mxu0
  %1097 = vmatprep.mubr.f32.mxu0 0.0
  %1098 = vmatmul.mubr.f32.gmra.mrb[0].mxu0 %v459
  %v1099 = vpop.f32.mrb[0].mxu0
  %v1100 = vadd.f32 0.0, %v1099
  %v1101 = vpop.f32.mrb[0].mxu0
  %1102 = vmatprep.mubr.f32.mxu0 0.0
  %1103 = vmatmul.mubr.f32.gmra.mrb[0].mxu0 %v462
  %v1104 = vpop.f32.mrb[0].mxu0
  %v1105 = vadd.f32 0.0, %v1104
  %v1106 = vpop.f32.mrb[0].mxu0
  %1107 = vmatprep.mubr.f32.mxu0 0.0
  %1108 = vmatmul.mubr.f32.gmra.mrb[0].mxu0 %v465
  %v1109 = vpop.f32.mrb[0].mxu0
  %v1110 = vadd.f32 0.0, %v1109
  %v1111 = vpop.f32.mrb[0].mxu0
  %1112 = vmatprep.mubr.f32.mxu0 0.0
  %1113 = vmatmul.mubr.f32.gmra.mrb[0].mxu0 %v468
  %v1114 = vpop.f32.mrb[0].mxu0
  %v1115 = vadd.f32 0.0, %v1114
  %v1116 = vpop.f32.mrb[0].mxu0
  %1117 = vmatprep.mubr.f32.mxu0 0.0
  %1118 = vmatmul.mubr.f32.gmra.mrb[0].mxu0 %v471
  %v1119 = vpop.f32.mrb[0].mxu0
  %v1120 = vadd.f32 0.0, %v1119
  %v1121 = vpop.f32.mrb[0].mxu0
  %1122 = vmatprep.mubr.f32.mxu0 0.0
  %1123 = vmatmul.mubr.f32.gmra.mrb[0].mxu0 %v474
  %v1124 = vpop.f32.mrb[0].mxu0
  %v1125 = vadd.f32 0.0, %v1124
  %v1126 = vpop.f32.mrb[0].mxu0
  %1127 = vmatprep.mubr.f32.mxu0 0.0
  %1128 = vmatmul.mubr.f32.gmra.mrb[0].mxu0 %v477
  %v1129 = vpop.f32.mrb[0].mxu0
  %v1130 = vadd.f32 0.0, %v1129
  %v1131 = vpop.f32.mrb[0].mxu0
  %1132 = vmatprep.mubr.f32.mxu0 0.0
  %1133 = vmatmul.mubr.f32.gmra.mrb[0].mxu0 %v480
  %v1134 = vpop.f32.mrb[0].mxu0
  %v1135 = vadd.f32 0.0, %v1134
  %v1136 = vpop.f32.mrb[0].mxu0
  %1137 = vmatprep.mubr.f32.mxu0 0.0
  %1138 = vmatmul.mubr.f32.gmra.mrb[0].mxu0 %v483
  %v1139 = vpop.f32.mrb[0].mxu0
  %v1140 = vadd.f32 0.0, %v1139
  %v1141 = vpop.f32.mrb[0].mxu0
  %1142 = vmatprep.mubr.f32.mxu0 0.0
  %1143 = vmatmul.mubr.f32.gmra.mrb[0].mxu0 %v486
  %v1144 = vpop.f32.mrb[0].mxu0
  %v1145 = vadd.f32 0.0, %v1144
  %v1146 = vpop.f32.mrb[0].mxu0
  %1147 = vmatprep.mubr.f32.mxu0 0.0
  %1148 = vmatmul.mubr.f32.gmra.mrb[0].mxu0 %v489
  %v1149 = vpop.f32.mrb[0].mxu0
  %v1150 = vadd.f32 0.0, %v1149
  %v1151 = vpop.f32.mrb[0].mxu0
  %1152 = vmatprep.mubr.f32.mxu0 0.0
  %1153 = vmatmul.mubr.f32.gmra.mrb[0].mxu0 %v492
  %v1154 = vpop.f32.mrb[0].mxu0
  %v1155 = vadd.f32 0.0, %v1154
  %v1156 = vpop.f32.mrb[0].mxu0
  %1157 = vmatprep.mubr.f32.mxu0 0.0
  %1158 = vmatmul.mubr.f32.gmra.mrb[0].mxu0 %v495
  %v1159 = vpop.f32.mrb[0].mxu0
  %v1160 = vadd.f32 0.0, %v1159
  %v1161 = vpop.f32.mrb[0].mxu0
  %1162 = vmatprep.mubr.f32.mxu0 0.0
  %1163 = vmatmul.mubr.f32.gmra.mrb[0].mxu0 %v498
  %v1164 = vpop.f32.mrb[0].mxu0
  %v1165 = vadd.f32 0.0, %v1164
  %v1166 = vpop.f32.mrb[0].mxu0
  %1167 = vmatprep.mubr.f32.mxu0 0.0
  %1168 = vmatmul.mubr.f32.gmra.mrb[0].mxu0 %v501
  %v1169 = vpop.f32.mrb[0].mxu0
  %v1170 = vadd.f32 0.0, %v1169
  %v1171 = vpop.f32.mrb[0].mxu0
  %1172 = vmatprep.mubr.f32.mxu0 0.0
  %1173 = vmatmul.mubr.f32.gmra.mrb[0].mxu0 %v504
  %v1174 = vpop.f32.mrb[0].mxu0
  %v1175 = vadd.f32 0.0, %v1174
  %v1176 = vpop.f32.mrb[0].mxu0
  %1177 = vmatprep.mubr.f32.mxu0 0.0
  %1178 = vmatmul.mubr.f32.gmra.mrb[0].mxu0 %v507
  %v1179 = vpop.f32.mrb[0].mxu0
  %v1180 = vadd.f32 0.0, %v1179
  %v1181 = vpop.f32.mrb[0].mxu0
  %1182 = vdwg.mxu0
  %vm1183 = vcmask 64512
  %v1184 = vsel %vm1183, %v580, 0.0
  %v1185 = vsel %vm1183, %v585, 0.0
  %v1186 = vadd.f32 %v1184, %v1185
  %v1187 = vsel %vm1183, %v590, 0.0
  %v1188 = vadd.f32 %v1186, %v1187
  %v1189 = vsel %vm1183, %v595, 0.0
  %v1190 = vadd.f32 %v1188, %v1189
  %v1191 = vsel %vm1183, %v600, 0.0
  %v1192 = vadd.f32 %v1190, %v1191
  %v1193 = vsel %vm1183, %v605, 0.0
  %v1194 = vadd.f32 %v1192, %v1193
  %v1195 = vsel %vm1183, %v610, 0.0
  %v1196 = vadd.f32 %v1194, %v1195
  %v1197 = vsel %vm1183, %v615, 0.0
  %v1198 = vadd.f32 %v1196, %v1197
  %v1199 = vsel %vm1183, %v620, 0.0
  %v1200 = vadd.f32 %v1198, %v1199
  %v1201 = vsel %vm1183, %v625, 0.0
  %v1202 = vadd.f32 %v1200, %v1201
  %v1203 = vsel %vm1183, %v630, 0.0
  %v1204 = vadd.f32 %v1202, %v1203
  %v1205 = vsel %vm1183, %v635, 0.0
  %v1206 = vadd.f32 %v1204, %v1205
  %v1207 = vsel %vm1183, %v640, 0.0
  %v1208 = vadd.f32 %v1206, %v1207
  %v1209 = vsel %vm1183, %v645, 0.0
  %v1210 = vadd.f32 %v1208, %v1209
  %v1211 = vsel %vm1183, %v650, 0.0
  %v1212 = vadd.f32 %v1210, %v1211
  %v1213 = vsel %vm1183, %v655, 0.0
  %v1214 = vadd.f32 %v1212, %v1213
  %v1215 = vsel %vm1183, %v660, 0.0
  %v1216 = vadd.f32 %v1214, %v1215
  %v1217 = vsel %vm1183, %v665, 0.0
  %v1218 = vadd.f32 %v1216, %v1217
  %v1219 = vsel %vm1183, %v670, 0.0
  %v1220 = vadd.f32 %v1218, %v1219
  %v1221 = vsel %vm1183, %v675, 0.0
  %v1222 = vadd.f32 %v1220, %v1221
  %v1223 = vsel %vm1183, %v680, 0.0
  %v1224 = vadd.f32 %v1222, %v1223
  %v1225 = vsel %vm1183, %v685, 0.0
  %v1226 = vadd.f32 %v1224, %v1225
  %v1227 = vsel %vm1183, %v690, 0.0
  %v1228 = vadd.f32 %v1226, %v1227
  %v1229 = vsel %vm1183, %v695, 0.0
  %v1230 = vadd.f32 %v1228, %v1229
  %v1231 = vsel %vm1183, %v700, 0.0
  %v1232 = vadd.f32 %v1230, %v1231
  %v1233 = vsel %vm1183, %v705, 0.0
  %v1234 = vadd.f32 %v1232, %v1233
  %v1235 = vsel %vm1183, %v710, 0.0
  %v1236 = vadd.f32 %v1234, %v1235
  %v1237 = vsel %vm1183, %v715, 0.0
  %v1238 = vadd.f32 %v1236, %v1237
  %v1239 = vsel %vm1183, %v720, 0.0
  %v1240 = vadd.f32 %v1238, %v1239
  %v1241 = vsel %vm1183, %v725, 0.0
  %v1242 = vadd.f32 %v1240, %v1241
  %v1243 = vsel %vm1183, %v730, 0.0
  %v1244 = vadd.f32 %v1242, %v1243
  %v1245 = vsel %vm1183, %v735, 0.0
  %v1246 = vadd.f32 %v1244, %v1245
  %v1247 = vsel %vm1183, %v740, 0.0
  %v1248 = vadd.f32 %v1246, %v1247
  %v1249 = vsel %vm1183, %v745, 0.0
  %v1250 = vadd.f32 %v1248, %v1249
  %v1251 = vsel %vm1183, %v750, 0.0
  %v1252 = vadd.f32 %v1250, %v1251
  %v1253 = vsel %vm1183, %v755, 0.0
  %v1254 = vadd.f32 %v1252, %v1253
  %v1255 = vsel %vm1183, %v760, 0.0
  %v1256 = vadd.f32 %v1254, %v1255
  %v1257 = vsel %vm1183, %v765, 0.0
  %v1258 = vadd.f32 %v1256, %v1257
  %v1259 = vsel %vm1183, %v770, 0.0
  %v1260 = vadd.f32 %v1258, %v1259
  %v1261 = vsel %vm1183, %v775, 0.0
  %v1262 = vadd.f32 %v1260, %v1261
  %v1263 = vsel %vm1183, %v780, 0.0
  %v1264 = vadd.f32 %v1262, %v1263
  %v1265 = vsel %vm1183, %v785, 0.0
  %v1266 = vadd.f32 %v1264, %v1265
  %v1267 = vsel %vm1183, %v790, 0.0
  %v1268 = vadd.f32 %v1266, %v1267
  %v1269 = vsel %vm1183, %v795, 0.0
  %v1270 = vadd.f32 %v1268, %v1269
  %v1271 = vsel %vm1183, %v800, 0.0
  %v1272 = vadd.f32 %v1270, %v1271
  %v1273 = vsel %vm1183, %v805, 0.0
  %v1274 = vadd.f32 %v1272, %v1273
  %v1275 = vsel %vm1183, %v810, 0.0
  %v1276 = vadd.f32 %v1274, %v1275
  %v1277 = vsel %vm1183, %v815, 0.0
  %v1278 = vadd.f32 %v1276, %v1277
  %v1279 = vsel %vm1183, %v820, 0.0
  %v1280 = vadd.f32 %v1278, %v1279
  %v1281 = vsel %vm1183, %v825, 0.0
  %v1282 = vadd.f32 %v1280, %v1281
  %v1283 = vsel %vm1183, %v830, 0.0
  %v1284 = vadd.f32 %v1282, %v1283
  %v1285 = vsel %vm1183, %v835, 0.0
  %v1286 = vadd.f32 %v1284, %v1285
  %v1287 = vsel %vm1183, %v840, 0.0
  %v1288 = vadd.f32 %v1286, %v1287
  %v1289 = vsel %vm1183, %v845, 0.0
  %v1290 = vadd.f32 %v1288, %v1289
  %v1291 = vsel %vm1183, %v850, 0.0
  %v1292 = vadd.f32 %v1290, %v1291
  %v1293 = vsel %vm1183, %v855, 0.0
  %v1294 = vadd.f32 %v1292, %v1293
  %v1295 = vsel %vm1183, %v860, 0.0
  %v1296 = vadd.f32 %v1294, %v1295
  %v1297 = vsel %vm1183, %v865, 0.0
  %v1298 = vadd.f32 %v1296, %v1297
  %v1299 = vsel %vm1183, %v870, 0.0
  %v1300 = vadd.f32 %v1298, %v1299
  %v1301 = vsel %vm1183, %v875, 0.0
  %v1302 = vadd.f32 %v1300, %v1301
  %v1303 = vsel %vm1183, %v880, 0.0
  %v1304 = vadd.f32 %v1302, %v1303
  %v1305 = vsel %vm1183, %v885, 0.0
  %v1306 = vadd.f32 %v1304, %v1305
  %v1307 = vsel %vm1183, %v890, 0.0
  %v1308 = vadd.f32 %v1306, %v1307
  %v1309 = vsel %vm1183, %v895, 0.0
  %v1310 = vadd.f32 %v1308, %v1309
  %v1311 = vsel %vm1183, %v900, 0.0
  %v1312 = vadd.f32 %v1310, %v1311
  %v1313 = vsel %vm1183, %v905, 0.0
  %v1314 = vadd.f32 %v1312, %v1313
  %v1315 = vsel %vm1183, %v910, 0.0
  %v1316 = vadd.f32 %v1314, %v1315
  %v1317 = vsel %vm1183, %v915, 0.0
  %v1318 = vadd.f32 %v1316, %v1317
  %v1319 = vsel %vm1183, %v920, 0.0
  %v1320 = vadd.f32 %v1318, %v1319
  %v1321 = vsel %vm1183, %v925, 0.0
  %v1322 = vadd.f32 %v1320, %v1321
  %v1323 = vsel %vm1183, %v930, 0.0
  %v1324 = vadd.f32 %v1322, %v1323
  %v1325 = vsel %vm1183, %v935, 0.0
  %v1326 = vadd.f32 %v1324, %v1325
  %v1327 = vsel %vm1183, %v940, 0.0
  %v1328 = vadd.f32 %v1326, %v1327
  %v1329 = vsel %vm1183, %v945, 0.0
  %v1330 = vadd.f32 %v1328, %v1329
  %v1331 = vsel %vm1183, %v950, 0.0
  %v1332 = vadd.f32 %v1330, %v1331
  %v1333 = vsel %vm1183, %v955, 0.0
  %v1334 = vadd.f32 %v1332, %v1333
  %v1335 = vsel %vm1183, %v960, 0.0
  %v1336 = vadd.f32 %v1334, %v1335
  %v1337 = vsel %vm1183, %v965, 0.0
  %v1338 = vadd.f32 %v1336, %v1337
  %v1339 = vsel %vm1183, %v970, 0.0
  %v1340 = vadd.f32 %v1338, %v1339
  %v1341 = vsel %vm1183, %v975, 0.0
  %v1342 = vadd.f32 %v1340, %v1341
  %v1343 = vsel %vm1183, %v980, 0.0
  %v1344 = vadd.f32 %v1342, %v1343
  %v1345 = vsel %vm1183, %v985, 0.0
  %v1346 = vadd.f32 %v1344, %v1345
  %v1347 = vsel %vm1183, %v990, 0.0
  %v1348 = vadd.f32 %v1346, %v1347
  %v1349 = vsel %vm1183, %v995, 0.0
  %v1350 = vadd.f32 %v1348, %v1349
  %v1351 = vsel %vm1183, %v1000, 0.0
  %v1352 = vadd.f32 %v1350, %v1351
  %v1353 = vsel %vm1183, %v1005, 0.0
  %v1354 = vadd.f32 %v1352, %v1353
  %v1355 = vsel %vm1183, %v1010, 0.0
  %v1356 = vadd.f32 %v1354, %v1355
  %v1357 = vsel %vm1183, %v1015, 0.0
  %v1358 = vadd.f32 %v1356, %v1357
  %v1359 = vsel %vm1183, %v1020, 0.0
  %v1360 = vadd.f32 %v1358, %v1359
  %v1361 = vsel %vm1183, %v1025, 0.0
  %v1362 = vadd.f32 %v1360, %v1361
  %v1363 = vsel %vm1183, %v1030, 0.0
  %v1364 = vadd.f32 %v1362, %v1363
  %v1365 = vsel %vm1183, %v1035, 0.0
  %v1366 = vadd.f32 %v1364, %v1365
  %v1367 = vsel %vm1183, %v1040, 0.0
  %v1368 = vadd.f32 %v1366, %v1367
  %v1369 = vsel %vm1183, %v1045, 0.0
  %v1370 = vadd.f32 %v1368, %v1369
  %v1371 = vsel %vm1183, %v1050, 0.0
  %v1372 = vadd.f32 %v1370, %v1371
  %v1373 = vsel %vm1183, %v1055, 0.0
  %v1374 = vadd.f32 %v1372, %v1373
  %v1375 = vsel %vm1183, %v1060, 0.0
  %v1376 = vadd.f32 %v1374, %v1375
  %v1377 = vsel %vm1183, %v1065, 0.0
  %v1378 = vadd.f32 %v1376, %v1377
  %v1379 = vsel %vm1183, %v1070, 0.0
  %v1380 = vadd.f32 %v1378, %v1379
  %v1381 = vsel %vm1183, %v1075, 0.0
  %v1382 = vadd.f32 %v1380, %v1381
  %v1383 = vsel %vm1183, %v1080, 0.0
  %v1384 = vadd.f32 %v1382, %v1383
  %v1385 = vsel %vm1183, %v1085, 0.0
  %v1386 = vadd.f32 %v1384, %v1385
  %v1387 = vsel %vm1183, %v1090, 0.0
  %v1388 = vadd.f32 %v1386, %v1387
  %v1389 = vsel %vm1183, %v1095, 0.0
  %v1390 = vadd.f32 %v1388, %v1389
  %v1391 = vsel %vm1183, %v1100, 0.0
  %v1392 = vadd.f32 %v1390, %v1391
  %v1393 = vsel %vm1183, %v1105, 0.0
  %v1394 = vadd.f32 %v1392, %v1393
  %v1395 = vsel %vm1183, %v1110, 0.0
  %v1396 = vadd.f32 %v1394, %v1395
  %v1397 = vsel %vm1183, %v1115, 0.0
  %v1398 = vadd.f32 %v1396, %v1397
  %v1399 = vsel %vm1183, %v1120, 0.0
  %v1400 = vadd.f32 %v1398, %v1399
  %v1401 = vsel %vm1183, %v1125, 0.0
  %v1402 = vadd.f32 %v1400, %v1401
  %v1403 = vsel %vm1183, %v1130, 0.0
  %v1404 = vadd.f32 %v1402, %v1403
  %v1405 = vsel %vm1183, %v1135, 0.0
  %v1406 = vadd.f32 %v1404, %v1405
  %v1407 = vsel %vm1183, %v1140, 0.0
  %v1408 = vadd.f32 %v1406, %v1407
  %v1409 = vsel %vm1183, %v1145, 0.0
  %v1410 = vadd.f32 %v1408, %v1409
  %v1411 = vsel %vm1183, %v1150, 0.0
  %v1412 = vadd.f32 %v1410, %v1411
  %v1413 = vsel %vm1183, %v1155, 0.0
  %v1414 = vadd.f32 %v1412, %v1413
  %v1415 = vsel %vm1183, %v1160, 0.0
  %v1416 = vadd.f32 %v1414, %v1415
  %v1417 = vsel %vm1183, %v1165, 0.0
  %v1418 = vadd.f32 %v1416, %v1417
  %v1419 = vsel %vm1183, %v1170, 0.0
  %v1420 = vadd.f32 %v1418, %v1419
  %v1421 = vsel %vm1183, %v1175, 0.0
  %v1422 = vadd.f32 %v1420, %v1421
  %v1423 = vsel %vm1183, %v1180, 0.0
  %v1424 = vadd.f32 %v1422, %v1423
  %v1425 = vrot.slane %v1424, 4
  %v1426 = vadd.f32 %v1424, %v1425
  %v1427 = vrot.slane %v1426, 2
  %v1428 = vadd.f32 %v1426, %v1427
  %v1429 = vrot.slane %v1428, 1
  %v1430 = vadd.f32 %v1428, %v1429
  %v1431 = vmul.f32 %v1430, 0.0010330578
  %v1432 = vsub.f32 %v580, %v1431
  %v1433 = vsub.f32 %v585, %v1431
  %v1434 = vsub.f32 %v590, %v1431
  %v1435 = vsub.f32 %v595, %v1431
  %v1436 = vsub.f32 %v600, %v1431
  %v1437 = vsub.f32 %v605, %v1431
  %v1438 = vsub.f32 %v610, %v1431
  %v1439 = vsub.f32 %v615, %v1431
  %v1440 = vsub.f32 %v620, %v1431
  %v1441 = vsub.f32 %v625, %v1431
  %v1442 = vsub.f32 %v630, %v1431
  %v1443 = vsub.f32 %v635, %v1431
  %v1444 = vsub.f32 %v640, %v1431
  %v1445 = vsub.f32 %v645, %v1431
  %v1446 = vsub.f32 %v650, %v1431
  %v1447 = vsub.f32 %v655, %v1431
  %v1448 = vsub.f32 %v660, %v1431
  %v1449 = vsub.f32 %v665, %v1431
  %v1450 = vsub.f32 %v670, %v1431
  %v1451 = vsub.f32 %v675, %v1431
  %v1452 = vsub.f32 %v680, %v1431
  %v1453 = vsub.f32 %v685, %v1431
  %v1454 = vsub.f32 %v690, %v1431
  %v1455 = vsub.f32 %v695, %v1431
  %v1456 = vsub.f32 %v700, %v1431
  %v1457 = vsub.f32 %v705, %v1431
  %v1458 = vsub.f32 %v710, %v1431
  %v1459 = vsub.f32 %v715, %v1431
  %v1460 = vsub.f32 %v720, %v1431
  %v1461 = vsub.f32 %v725, %v1431
  %v1462 = vsub.f32 %v730, %v1431
  %v1463 = vsub.f32 %v735, %v1431
  %v1464 = vsub.f32 %v740, %v1431
  %v1465 = vsub.f32 %v745, %v1431
  %v1466 = vsub.f32 %v750, %v1431
  %v1467 = vsub.f32 %v755, %v1431
  %v1468 = vsub.f32 %v760, %v1431
  %v1469 = vsub.f32 %v765, %v1431
  %v1470 = vsub.f32 %v770, %v1431
  %v1471 = vsub.f32 %v775, %v1431
  %v1472 = vsub.f32 %v780, %v1431
  %v1473 = vsub.f32 %v785, %v1431
  %v1474 = vsub.f32 %v790, %v1431
  %v1475 = vsub.f32 %v795, %v1431
  %v1476 = vsub.f32 %v800, %v1431
  %v1477 = vsub.f32 %v805, %v1431
  %v1478 = vsub.f32 %v810, %v1431
  %v1479 = vsub.f32 %v815, %v1431
  %v1480 = vsub.f32 %v820, %v1431
  %v1481 = vsub.f32 %v825, %v1431
  %v1482 = vsub.f32 %v830, %v1431
  %v1483 = vsub.f32 %v835, %v1431
  %v1484 = vsub.f32 %v840, %v1431
  %v1485 = vsub.f32 %v845, %v1431
  %v1486 = vsub.f32 %v850, %v1431
  %v1487 = vsub.f32 %v855, %v1431
  %v1488 = vsub.f32 %v860, %v1431
  %v1489 = vsub.f32 %v865, %v1431
  %v1490 = vsub.f32 %v870, %v1431
  %v1491 = vsub.f32 %v875, %v1431
  %v1492 = vsub.f32 %v880, %v1431
  %v1493 = vsub.f32 %v885, %v1431
  %v1494 = vsub.f32 %v890, %v1431
  %v1495 = vsub.f32 %v895, %v1431
  %v1496 = vsub.f32 %v900, %v1431
  %v1497 = vsub.f32 %v905, %v1431
  %v1498 = vsub.f32 %v910, %v1431
  %v1499 = vsub.f32 %v915, %v1431
  %v1500 = vsub.f32 %v920, %v1431
  %v1501 = vsub.f32 %v925, %v1431
  %v1502 = vsub.f32 %v930, %v1431
  %v1503 = vsub.f32 %v935, %v1431
  %v1504 = vsub.f32 %v940, %v1431
  %v1505 = vsub.f32 %v945, %v1431
  %v1506 = vsub.f32 %v950, %v1431
  %v1507 = vsub.f32 %v955, %v1431
  %v1508 = vsub.f32 %v960, %v1431
  %v1509 = vsub.f32 %v965, %v1431
  %v1510 = vsub.f32 %v970, %v1431
  %v1511 = vsub.f32 %v975, %v1431
  %v1512 = vsub.f32 %v980, %v1431
  %v1513 = vsub.f32 %v985, %v1431
  %v1514 = vsub.f32 %v990, %v1431
  %v1515 = vsub.f32 %v995, %v1431
  %v1516 = vsub.f32 %v1000, %v1431
  %v1517 = vsub.f32 %v1005, %v1431
  %v1518 = vsub.f32 %v1010, %v1431
  %v1519 = vsub.f32 %v1015, %v1431
  %v1520 = vsub.f32 %v1020, %v1431
  %v1521 = vsub.f32 %v1025, %v1431
  %v1522 = vsub.f32 %v1030, %v1431
  %v1523 = vsub.f32 %v1035, %v1431
  %v1524 = vsub.f32 %v1040, %v1431
  %v1525 = vsub.f32 %v1045, %v1431
  %v1526 = vsub.f32 %v1050, %v1431
  %v1527 = vsub.f32 %v1055, %v1431
  %v1528 = vsub.f32 %v1060, %v1431
  %v1529 = vsub.f32 %v1065, %v1431
  %v1530 = vsub.f32 %v1070, %v1431
  %v1531 = vsub.f32 %v1075, %v1431
  %v1532 = vsub.f32 %v1080, %v1431
  %v1533 = vsub.f32 %v1085, %v1431
  %v1534 = vsub.f32 %v1090, %v1431
  %v1535 = vsub.f32 %v1095, %v1431
  %v1536 = vsub.f32 %v1100, %v1431
  %v1537 = vsub.f32 %v1105, %v1431
  %v1538 = vsub.f32 %v1110, %v1431
  %v1539 = vsub.f32 %v1115, %v1431
  %v1540 = vsub.f32 %v1120, %v1431
  %v1541 = vsub.f32 %v1125, %v1431
  %v1542 = vsub.f32 %v1130, %v1431
  %v1543 = vsub.f32 %v1135, %v1431
  %v1544 = vsub.f32 %v1140, %v1431
  %v1545 = vsub.f32 %v1145, %v1431
  %v1546 = vsub.f32 %v1150, %v1431
  %v1547 = vsub.f32 %v1155, %v1431
  %v1548 = vsub.f32 %v1160, %v1431
  %v1549 = vsub.f32 %v1165, %v1431
  %v1550 = vsub.f32 %v1170, %v1431
  %v1551 = vsub.f32 %v1175, %v1431
  %v1552 = vsub.f32 %v1180, %v1431
  %v1553 = vmul.f32 %v1432, %v1432
  %v1554 = vmul.f32 %v1433, %v1433
  %v1555 = vmul.f32 %v1434, %v1434
  %v1556 = vmul.f32 %v1435, %v1435
  %v1557 = vmul.f32 %v1436, %v1436
  %v1558 = vmul.f32 %v1437, %v1437
  %v1559 = vmul.f32 %v1438, %v1438
  %v1560 = vmul.f32 %v1439, %v1439
  %v1561 = vmul.f32 %v1440, %v1440
  %v1562 = vmul.f32 %v1441, %v1441
  %v1563 = vmul.f32 %v1442, %v1442
  %v1564 = vmul.f32 %v1443, %v1443
  %v1565 = vmul.f32 %v1444, %v1444
  %v1566 = vmul.f32 %v1445, %v1445
  %v1567 = vmul.f32 %v1446, %v1446
  %v1568 = vmul.f32 %v1447, %v1447
  %v1569 = vmul.f32 %v1448, %v1448
  %v1570 = vmul.f32 %v1449, %v1449
  %v1571 = vmul.f32 %v1450, %v1450
  %v1572 = vmul.f32 %v1451, %v1451
  %v1573 = vmul.f32 %v1452, %v1452
  %v1574 = vmul.f32 %v1453, %v1453
  %v1575 = vmul.f32 %v1454, %v1454
  %v1576 = vmul.f32 %v1455, %v1455
  %v1577 = vmul.f32 %v1456, %v1456
  %v1578 = vmul.f32 %v1457, %v1457
  %v1579 = vmul.f32 %v1458, %v1458
  %v1580 = vmul.f32 %v1459, %v1459
  %v1581 = vmul.f32 %v1460, %v1460
  %v1582 = vmul.f32 %v1461, %v1461
  %v1583 = vmul.f32 %v1462, %v1462
  %v1584 = vmul.f32 %v1463, %v1463
  %v1585 = vmul.f32 %v1464, %v1464
  %v1586 = vmul.f32 %v1465, %v1465
  %v1587 = vmul.f32 %v1466, %v1466
  %v1588 = vmul.f32 %v1467, %v1467
  %v1589 = vmul.f32 %v1468, %v1468
  %v1590 = vmul.f32 %v1469, %v1469
  %v1591 = vmul.f32 %v1470, %v1470
  %v1592 = vmul.f32 %v1471, %v1471
  %v1593 = vmul.f32 %v1472, %v1472
  %v1594 = vmul.f32 %v1473, %v1473
  %v1595 = vmul.f32 %v1474, %v1474
  %v1596 = vmul.f32 %v1475, %v1475
  %v1597 = vmul.f32 %v1476, %v1476
  %v1598 = vmul.f32 %v1477, %v1477
  %v1599 = vmul.f32 %v1478, %v1478
  %v1600 = vmul.f32 %v1479, %v1479
  %v1601 = vmul.f32 %v1480, %v1480
  %v1602 = vmul.f32 %v1481, %v1481
  %v1603 = vmul.f32 %v1482, %v1482
  %v1604 = vmul.f32 %v1483, %v1483
  %v1605 = vmul.f32 %v1484, %v1484
  %v1606 = vmul.f32 %v1485, %v1485
  %v1607 = vmul.f32 %v1486, %v1486
  %v1608 = vmul.f32 %v1487, %v1487
  %v1609 = vmul.f32 %v1488, %v1488
  %v1610 = vmul.f32 %v1489, %v1489
  %v1611 = vmul.f32 %v1490, %v1490
  %v1612 = vmul.f32 %v1491, %v1491
  %v1613 = vmul.f32 %v1492, %v1492
  %v1614 = vmul.f32 %v1493, %v1493
  %v1615 = vmul.f32 %v1494, %v1494
  %v1616 = vmul.f32 %v1495, %v1495
  %v1617 = vmul.f32 %v1496, %v1496
  %v1618 = vmul.f32 %v1497, %v1497
  %v1619 = vmul.f32 %v1498, %v1498
  %v1620 = vmul.f32 %v1499, %v1499
  %v1621 = vmul.f32 %v1500, %v1500
  %v1622 = vmul.f32 %v1501, %v1501
  %v1623 = vmul.f32 %v1502, %v1502
  %v1624 = vmul.f32 %v1503, %v1503
  %v1625 = vmul.f32 %v1504, %v1504
  %v1626 = vmul.f32 %v1505, %v1505
  %v1627 = vmul.f32 %v1506, %v1506
  %v1628 = vmul.f32 %v1507, %v1507
  %v1629 = vmul.f32 %v1508, %v1508
  %v1630 = vmul.f32 %v1509, %v1509
  %v1631 = vmul.f32 %v1510, %v1510
  %v1632 = vmul.f32 %v1511, %v1511
  %v1633 = vmul.f32 %v1512, %v1512
  %v1634 = vmul.f32 %v1513, %v1513
  %v1635 = vmul.f32 %v1514, %v1514
  %v1636 = vmul.f32 %v1515, %v1515
  %v1637 = vmul.f32 %v1516, %v1516
  %v1638 = vmul.f32 %v1517, %v1517
  %v1639 = vmul.f32 %v1518, %v1518
  %v1640 = vmul.f32 %v1519, %v1519
  %v1641 = vmul.f32 %v1520, %v1520
  %v1642 = vmul.f32 %v1521, %v1521
  %v1643 = vmul.f32 %v1522, %v1522
  %v1644 = vmul.f32 %v1523, %v1523
  %v1645 = vmul.f32 %v1524, %v1524
  %v1646 = vmul.f32 %v1525, %v1525
  %v1647 = vmul.f32 %v1526, %v1526
  %v1648 = vmul.f32 %v1527, %v1527
  %v1649 = vmul.f32 %v1528, %v1528
  %v1650 = vmul.f32 %v1529, %v1529
  %v1651 = vmul.f32 %v1530, %v1530
  %v1652 = vmul.f32 %v1531, %v1531
  %v1653 = vmul.f32 %v1532, %v1532
  %v1654 = vmul.f32 %v1533, %v1533
  %v1655 = vmul.f32 %v1534, %v1534
  %v1656 = vmul.f32 %v1535, %v1535
  %v1657 = vmul.f32 %v1536, %v1536
  %v1658 = vmul.f32 %v1537, %v1537
  %v1659 = vmul.f32 %v1538, %v1538
  %v1660 = vmul.f32 %v1539, %v1539
  %v1661 = vmul.f32 %v1540, %v1540
  %v1662 = vmul.f32 %v1541, %v1541
  %v1663 = vmul.f32 %v1542, %v1542
  %v1664 = vmul.f32 %v1543, %v1543
  %v1665 = vmul.f32 %v1544, %v1544
  %v1666 = vmul.f32 %v1545, %v1545
  %v1667 = vmul.f32 %v1546, %v1546
  %v1668 = vmul.f32 %v1547, %v1547
  %v1669 = vmul.f32 %v1548, %v1548
  %v1670 = vmul.f32 %v1549, %v1549
  %v1671 = vmul.f32 %v1550, %v1550
  %v1672 = vmul.f32 %v1551, %v1551
  %v1673 = vmul.f32 %v1552, %v1552
  %v1674 = vsel %vm1183, %v1553, 0.0
  %v1675 = vsel %vm1183, %v1554, 0.0
  %v1676 = vadd.f32 %v1674, %v1675
  %v1677 = vsel %vm1183, %v1555, 0.0
  %v1678 = vadd.f32 %v1676, %v1677
  %v1679 = vsel %vm1183, %v1556, 0.0
  %v1680 = vadd.f32 %v1678, %v1679
  %v1681 = vsel %vm1183, %v1557, 0.0
  %v1682 = vadd.f32 %v1680, %v1681
  %v1683 = vsel %vm1183, %v1558, 0.0
  %v1684 = vadd.f32 %v1682, %v1683
  %v1685 = vsel %vm1183, %v1559, 0.0
  %v1686 = vadd.f32 %v1684, %v1685
  %v1687 = vsel %vm1183, %v1560, 0.0
  %v1688 = vadd.f32 %v1686, %v1687
  %v1689 = vsel %vm1183, %v1561, 0.0
  %v1690 = vadd.f32 %v1688, %v1689
  %v1691 = vsel %vm1183, %v1562, 0.0
  %v1692 = vadd.f32 %v1690, %v1691
  %v1693 = vsel %vm1183, %v1563, 0.0
  %v1694 = vadd.f32 %v1692, %v1693
  %v1695 = vsel %vm1183, %v1564, 0.0
  %v1696 = vadd.f32 %v1694, %v1695
  %v1697 = vsel %vm1183, %v1565, 0.0
  %v1698 = vadd.f32 %v1696, %v1697
  %v1699 = vsel %vm1183, %v1566, 0.0
  %v1700 = vadd.f32 %v1698, %v1699
  %v1701 = vsel %vm1183, %v1567, 0.0
  %v1702 = vadd.f32 %v1700, %v1701
  %v1703 = vsel %vm1183, %v1568, 0.0
  %v1704 = vadd.f32 %v1702, %v1703
  %v1705 = vsel %vm1183, %v1569, 0.0
  %v1706 = vadd.f32 %v1704, %v1705
  %v1707 = vsel %vm1183, %v1570, 0.0
  %v1708 = vadd.f32 %v1706, %v1707
  %v1709 = vsel %vm1183, %v1571, 0.0
  %v1710 = vadd.f32 %v1708, %v1709
  %v1711 = vsel %vm1183, %v1572, 0.0
  %v1712 = vadd.f32 %v1710, %v1711
  %v1713 = vsel %vm1183, %v1573, 0.0
  %v1714 = vadd.f32 %v1712, %v1713
  %v1715 = vsel %vm1183, %v1574, 0.0
  %v1716 = vadd.f32 %v1714, %v1715
  %v1717 = vsel %vm1183, %v1575, 0.0
  %v1718 = vadd.f32 %v1716, %v1717
  %v1719 = vsel %vm1183, %v1576, 0.0
  %v1720 = vadd.f32 %v1718, %v1719
  %v1721 = vsel %vm1183, %v1577, 0.0
  %v1722 = vadd.f32 %v1720, %v1721
  %v1723 = vsel %vm1183, %v1578, 0.0
  %v1724 = vadd.f32 %v1722, %v1723
  %v1725 = vsel %vm1183, %v1579, 0.0
  %v1726 = vadd.f32 %v1724, %v1725
  %v1727 = vsel %vm1183, %v1580, 0.0
  %v1728 = vadd.f32 %v1726, %v1727
  %v1729 = vsel %vm1183, %v1581, 0.0
  %v1730 = vadd.f32 %v1728, %v1729
  %v1731 = vsel %vm1183, %v1582, 0.0
  %v1732 = vadd.f32 %v1730, %v1731
  %v1733 = vsel %vm1183, %v1583, 0.0
  %v1734 = vadd.f32 %v1732, %v1733
  %v1735 = vsel %vm1183, %v1584, 0.0
  %v1736 = vadd.f32 %v1734, %v1735
  %v1737 = vsel %vm1183, %v1585, 0.0
  %v1738 = vadd.f32 %v1736, %v1737
  %v1739 = vsel %vm1183, %v1586, 0.0
  %v1740 = vadd.f32 %v1738, %v1739
  %v1741 = vsel %vm1183, %v1587, 0.0
  %v1742 = vadd.f32 %v1740, %v1741
  %v1743 = vsel %vm1183, %v1588, 0.0
  %v1744 = vadd.f32 %v1742, %v1743
  %v1745 = vsel %vm1183, %v1589, 0.0
  %v1746 = vadd.f32 %v1744, %v1745
  %v1747 = vsel %vm1183, %v1590, 0.0
  %v1748 = vadd.f32 %v1746, %v1747
  %v1749 = vsel %vm1183, %v1591, 0.0
  %v1750 = vadd.f32 %v1748, %v1749
  %v1751 = vsel %vm1183, %v1592, 0.0
  %v1752 = vadd.f32 %v1750, %v1751
  %v1753 = vsel %vm1183, %v1593, 0.0
  %v1754 = vadd.f32 %v1752, %v1753
  %v1755 = vsel %vm1183, %v1594, 0.0
  %v1756 = vadd.f32 %v1754, %v1755
  %v1757 = vsel %vm1183, %v1595, 0.0
  %v1758 = vadd.f32 %v1756, %v1757
  %v1759 = vsel %vm1183, %v1596, 0.0
  %v1760 = vadd.f32 %v1758, %v1759
  %v1761 = vsel %vm1183, %v1597, 0.0
  %v1762 = vadd.f32 %v1760, %v1761
  %v1763 = vsel %vm1183, %v1598, 0.0
  %v1764 = vadd.f32 %v1762, %v1763
  %v1765 = vsel %vm1183, %v1599, 0.0
  %v1766 = vadd.f32 %v1764, %v1765
  %v1767 = vsel %vm1183, %v1600, 0.0
  %v1768 = vadd.f32 %v1766, %v1767
  %v1769 = vsel %vm1183, %v1601, 0.0
  %v1770 = vadd.f32 %v1768, %v1769
  %v1771 = vsel %vm1183, %v1602, 0.0
  %v1772 = vadd.f32 %v1770, %v1771
  %v1773 = vsel %vm1183, %v1603, 0.0
  %v1774 = vadd.f32 %v1772, %v1773
  %v1775 = vsel %vm1183, %v1604, 0.0
  %v1776 = vadd.f32 %v1774, %v1775
  %v1777 = vsel %vm1183, %v1605, 0.0
  %v1778 = vadd.f32 %v1776, %v1777
  %v1779 = vsel %vm1183, %v1606, 0.0
  %v1780 = vadd.f32 %v1778, %v1779
  %v1781 = vsel %vm1183, %v1607, 0.0
  %v1782 = vadd.f32 %v1780, %v1781
  %v1783 = vsel %vm1183, %v1608, 0.0
  %v1784 = vadd.f32 %v1782, %v1783
  %v1785 = vsel %vm1183, %v1609, 0.0
  %v1786 = vadd.f32 %v1784, %v1785
  %v1787 = vsel %vm1183, %v1610, 0.0
  %v1788 = vadd.f32 %v1786, %v1787
  %v1789 = vsel %vm1183, %v1611, 0.0
  %v1790 = vadd.f32 %v1788, %v1789
  %v1791 = vsel %vm1183, %v1612, 0.0
  %v1792 = vadd.f32 %v1790, %v1791
  %v1793 = vsel %vm1183, %v1613, 0.0
  %v1794 = vadd.f32 %v1792, %v1793
  %v1795 = vsel %vm1183, %v1614, 0.0
  %v1796 = vadd.f32 %v1794, %v1795
  %v1797 = vsel %vm1183, %v1615, 0.0
  %v1798 = vadd.f32 %v1796, %v1797
  %v1799 = vsel %vm1183, %v1616, 0.0
  %v1800 = vadd.f32 %v1798, %v1799
  %v1801 = vsel %vm1183, %v1617, 0.0
  %v1802 = vadd.f32 %v1800, %v1801
  %v1803 = vsel %vm1183, %v1618, 0.0
  %v1804 = vadd.f32 %v1802, %v1803
  %v1805 = vsel %vm1183, %v1619, 0.0
  %v1806 = vadd.f32 %v1804, %v1805
  %v1807 = vsel %vm1183, %v1620, 0.0
  %v1808 = vadd.f32 %v1806, %v1807
  %v1809 = vsel %vm1183, %v1621, 0.0
  %v1810 = vadd.f32 %v1808, %v1809
  %v1811 = vsel %vm1183, %v1622, 0.0
  %v1812 = vadd.f32 %v1810, %v1811
  %v1813 = vsel %vm1183, %v1623, 0.0
  %v1814 = vadd.f32 %v1812, %v1813
  %v1815 = vsel %vm1183, %v1624, 0.0
  %v1816 = vadd.f32 %v1814, %v1815
  %v1817 = vsel %vm1183, %v1625, 0.0
  %v1818 = vadd.f32 %v1816, %v1817
  %v1819 = vsel %vm1183, %v1626, 0.0
  %v1820 = vadd.f32 %v1818, %v1819
  %v1821 = vsel %vm1183, %v1627, 0.0
  %v1822 = vadd.f32 %v1820, %v1821
  %v1823 = vsel %vm1183, %v1628, 0.0
  %v1824 = vadd.f32 %v1822, %v1823
  %v1825 = vsel %vm1183, %v1629, 0.0
  %v1826 = vadd.f32 %v1824, %v1825
  %v1827 = vsel %vm1183, %v1630, 0.0
  %v1828 = vadd.f32 %v1826, %v1827
  %v1829 = vsel %vm1183, %v1631, 0.0
  %v1830 = vadd.f32 %v1828, %v1829
  %v1831 = vsel %vm1183, %v1632, 0.0
  %v1832 = vadd.f32 %v1830, %v1831
  %v1833 = vsel %vm1183, %v1633, 0.0
  %v1834 = vadd.f32 %v1832, %v1833
  %v1835 = vsel %vm1183, %v1634, 0.0
  %v1836 = vadd.f32 %v1834, %v1835
  %v1837 = vsel %vm1183, %v1635, 0.0
  %v1838 = vadd.f32 %v1836, %v1837
  %v1839 = vsel %vm1183, %v1636, 0.0
  %v1840 = vadd.f32 %v1838, %v1839
  %v1841 = vsel %vm1183, %v1637, 0.0
  %v1842 = vadd.f32 %v1840, %v1841
  %v1843 = vsel %vm1183, %v1638, 0.0
  %v1844 = vadd.f32 %v1842, %v1843
  %v1845 = vsel %vm1183, %v1639, 0.0
  %v1846 = vadd.f32 %v1844, %v1845
  %v1847 = vsel %vm1183, %v1640, 0.0
  %v1848 = vadd.f32 %v1846, %v1847
  %v1849 = vsel %vm1183, %v1641, 0.0
  %v1850 = vadd.f32 %v1848, %v1849
  %v1851 = vsel %vm1183, %v1642, 0.0
  %v1852 = vadd.f32 %v1850, %v1851
  %v1853 = vsel %vm1183, %v1643, 0.0
  %v1854 = vadd.f32 %v1852, %v1853
  %v1855 = vsel %vm1183, %v1644, 0.0
  %v1856 = vadd.f32 %v1854, %v1855
  %v1857 = vsel %vm1183, %v1645, 0.0
  %v1858 = vadd.f32 %v1856, %v1857
  %v1859 = vsel %vm1183, %v1646, 0.0
  %v1860 = vadd.f32 %v1858, %v1859
  %v1861 = vsel %vm1183, %v1647, 0.0
  %v1862 = vadd.f32 %v1860, %v1861
  %v1863 = vsel %vm1183, %v1648, 0.0
  %v1864 = vadd.f32 %v1862, %v1863
  %v1865 = vsel %vm1183, %v1649, 0.0
  %v1866 = vadd.f32 %v1864, %v1865
  %v1867 = vsel %vm1183, %v1650, 0.0
  %v1868 = vadd.f32 %v1866, %v1867
  %v1869 = vsel %vm1183, %v1651, 0.0
  %v1870 = vadd.f32 %v1868, %v1869
  %v1871 = vsel %vm1183, %v1652, 0.0
  %v1872 = vadd.f32 %v1870, %v1871
  %v1873 = vsel %vm1183, %v1653, 0.0
  %v1874 = vadd.f32 %v1872, %v1873
  %v1875 = vsel %vm1183, %v1654, 0.0
  %v1876 = vadd.f32 %v1874, %v1875
  %v1877 = vsel %vm1183, %v1655, 0.0
  %v1878 = vadd.f32 %v1876, %v1877
  %v1879 = vsel %vm1183, %v1656, 0.0
  %v1880 = vadd.f32 %v1878, %v1879
  %v1881 = vsel %vm1183, %v1657, 0.0
  %v1882 = vadd.f32 %v1880, %v1881
  %v1883 = vsel %vm1183, %v1658, 0.0
  %v1884 = vadd.f32 %v1882, %v1883
  %v1885 = vsel %vm1183, %v1659, 0.0
  %v1886 = vadd.f32 %v1884, %v1885
  %v1887 = vsel %vm1183, %v1660, 0.0
  %v1888 = vadd.f32 %v1886, %v1887
  %v1889 = vsel %vm1183, %v1661, 0.0
  %v1890 = vadd.f32 %v1888, %v1889
  %v1891 = vsel %vm1183, %v1662, 0.0
  %v1892 = vadd.f32 %v1890, %v1891
  %v1893 = vsel %vm1183, %v1663, 0.0
  %v1894 = vadd.f32 %v1892, %v1893
  %v1895 = vsel %vm1183, %v1664, 0.0
  %v1896 = vadd.f32 %v1894, %v1895
  %v1897 = vsel %vm1183, %v1665, 0.0
  %v1898 = vadd.f32 %v1896, %v1897
  %v1899 = vsel %vm1183, %v1666, 0.0
  %v1900 = vadd.f32 %v1898, %v1899
  %v1901 = vsel %vm1183, %v1667, 0.0
  %v1902 = vadd.f32 %v1900, %v1901
  %v1903 = vsel %vm1183, %v1668, 0.0
  %v1904 = vadd.f32 %v1902, %v1903
  %v1905 = vsel %vm1183, %v1669, 0.0
  %v1906 = vadd.f32 %v1904, %v1905
  %v1907 = vsel %vm1183, %v1670, 0.0
  %v1908 = vadd.f32 %v1906, %v1907
  %v1909 = vsel %vm1183, %v1671, 0.0
  %v1910 = vadd.f32 %v1908, %v1909
  %v1911 = vsel %vm1183, %v1672, 0.0
  %v1912 = vadd.f32 %v1910, %v1911
  %v1913 = vsel %vm1183, %v1673, 0.0
  %v1914 = vadd.f32 %v1912, %v1913
  %v1915 = vrot.slane %v1914, 4
  %v1916 = vadd.f32 %v1914, %v1915
  %v1917 = vrot.slane %v1916, 2
  %v1918 = vadd.f32 %v1916, %v1917
  %v1919 = vrot.slane %v1918, 1
  %v1920 = vadd.f32 %v1918, %v1919
  %v1921 = vmul.f32 %v1920, 0.0010330578
  %v1922 = vadd.f32 %v1921, 1e-05
  %v1923 = vrsqrt.pop %v1922
  %v1924 = vmul.f32 %v1432, %v1923
  %v1925 = vmul.f32 %v1433, %v1923
  %v1926 = vmul.f32 %v1434, %v1923
  %v1927 = vmul.f32 %v1435, %v1923
  %v1928 = vmul.f32 %v1436, %v1923
  %v1929 = vmul.f32 %v1437, %v1923
  %v1930 = vmul.f32 %v1438, %v1923
  %v1931 = vmul.f32 %v1439, %v1923
  %v1932 = vmul.f32 %v1440, %v1923
  %v1933 = vmul.f32 %v1441, %v1923
  %v1934 = vmul.f32 %v1442, %v1923
  %v1935 = vmul.f32 %v1443, %v1923
  %v1936 = vmul.f32 %v1444, %v1923
  %v1937 = vmul.f32 %v1445, %v1923
  %v1938 = vmul.f32 %v1446, %v1923
  %v1939 = vmul.f32 %v1447, %v1923
  %v1940 = vmul.f32 %v1448, %v1923
  %v1941 = vmul.f32 %v1449, %v1923
  %v1942 = vmul.f32 %v1450, %v1923
  %v1943 = vmul.f32 %v1451, %v1923
  %v1944 = vmul.f32 %v1452, %v1923
  %v1945 = vmul.f32 %v1453, %v1923
  %v1946 = vmul.f32 %v1454, %v1923
  %v1947 = vmul.f32 %v1455, %v1923
  %v1948 = vmul.f32 %v1456, %v1923
  %v1949 = vmul.f32 %v1457, %v1923
  %v1950 = vmul.f32 %v1458, %v1923
  %v1951 = vmul.f32 %v1459, %v1923
  %v1952 = vmul.f32 %v1460, %v1923
  %v1953 = vmul.f32 %v1461, %v1923
  %v1954 = vmul.f32 %v1462, %v1923
  %v1955 = vmul.f32 %v1463, %v1923
  %v1956 = vmul.f32 %v1464, %v1923
  %v1957 = vmul.f32 %v1465, %v1923
  %v1958 = vmul.f32 %v1466, %v1923
  %v1959 = vmul.f32 %v1467, %v1923
  %v1960 = vmul.f32 %v1468, %v1923
  %v1961 = vmul.f32 %v1469, %v1923
  %v1962 = vmul.f32 %v1470, %v1923
  %v1963 = vmul.f32 %v1471, %v1923
  %v1964 = vmul.f32 %v1472, %v1923
  %v1965 = vmul.f32 %v1473, %v1923
  %v1966 = vmul.f32 %v1474, %v1923
  %v1967 = vmul.f32 %v1475, %v1923
  %v1968 = vmul.f32 %v1476, %v1923
  %v1969 = vmul.f32 %v1477, %v1923
  %v1970 = vmul.f32 %v1478, %v1923
  %v1971 = vmul.f32 %v1479, %v1923
  %v1972 = vmul.f32 %v1480, %v1923
  %v1973 = vmul.f32 %v1481, %v1923
  %v1974 = vmul.f32 %v1482, %v1923
  %v1975 = vmul.f32 %v1483, %v1923
  %v1976 = vmul.f32 %v1484, %v1923
  %v1977 = vmul.f32 %v1485, %v1923
  %v1978 = vmul.f32 %v1486, %v1923
  %v1979 = vmul.f32 %v1487, %v1923
  %v1980 = vmul.f32 %v1488, %v1923
  %v1981 = vmul.f32 %v1489, %v1923
  %v1982 = vmul.f32 %v1490, %v1923
  %v1983 = vmul.f32 %v1491, %v1923
  %v1984 = vmul.f32 %v1492, %v1923
  %v1985 = vmul.f32 %v1493, %v1923
  %v1986 = vmul.f32 %v1494, %v1923
  %v1987 = vmul.f32 %v1495, %v1923
  %v1988 = vmul.f32 %v1496, %v1923
  %v1989 = vmul.f32 %v1497, %v1923
  %v1990 = vmul.f32 %v1498, %v1923
  %v1991 = vmul.f32 %v1499, %v1923
  %v1992 = vmul.f32 %v1500, %v1923
  %v1993 = vmul.f32 %v1501, %v1923
  %v1994 = vmul.f32 %v1502, %v1923
  %v1995 = vmul.f32 %v1503, %v1923
  %v1996 = vmul.f32 %v1504, %v1923
  %v1997 = vmul.f32 %v1505, %v1923
  %v1998 = vmul.f32 %v1506, %v1923
  %v1999 = vmul.f32 %v1507, %v1923
  %v2000 = vmul.f32 %v1508, %v1923
  %v2001 = vmul.f32 %v1509, %v1923
  %v2002 = vmul.f32 %v1510, %v1923
  %v2003 = vmul.f32 %v1511, %v1923
  %v2004 = vmul.f32 %v1512, %v1923
  %v2005 = vmul.f32 %v1513, %v1923
  %v2006 = vmul.f32 %v1514, %v1923
  %v2007 = vmul.f32 %v1515, %v1923
  %v2008 = vmul.f32 %v1516, %v1923
  %v2009 = vmul.f32 %v1517, %v1923
  %v2010 = vmul.f32 %v1518, %v1923
  %v2011 = vmul.f32 %v1519, %v1923
  %v2012 = vmul.f32 %v1520, %v1923
  %v2013 = vmul.f32 %v1521, %v1923
  %v2014 = vmul.f32 %v1522, %v1923
  %v2015 = vmul.f32 %v1523, %v1923
  %v2016 = vmul.f32 %v1524, %v1923
  %v2017 = vmul.f32 %v1525, %v1923
  %v2018 = vmul.f32 %v1526, %v1923
  %v2019 = vmul.f32 %v1527, %v1923
  %v2020 = vmul.f32 %v1528, %v1923
  %v2021 = vmul.f32 %v1529, %v1923
  %v2022 = vmul.f32 %v1530, %v1923
  %v2023 = vmul.f32 %v1531, %v1923
  %v2024 = vmul.f32 %v1532, %v1923
  %v2025 = vmul.f32 %v1533, %v1923
  %v2026 = vmul.f32 %v1534, %v1923
  %v2027 = vmul.f32 %v1535, %v1923
  %v2028 = vmul.f32 %v1536, %v1923
  %v2029 = vmul.f32 %v1537, %v1923
  %v2030 = vmul.f32 %v1538, %v1923
  %v2031 = vmul.f32 %v1539, %v1923
  %v2032 = vmul.f32 %v1540, %v1923
  %v2033 = vmul.f32 %v1541, %v1923
  %v2034 = vmul.f32 %v1542, %v1923
  %v2035 = vmul.f32 %v1543, %v1923
  %v2036 = vmul.f32 %v1544, %v1923
  %v2037 = vmul.f32 %v1545, %v1923
  %v2038 = vmul.f32 %v1546, %v1923
  %v2039 = vmul.f32 %v1547, %v1923
  %v2040 = vmul.f32 %v1548, %v1923
  %v2041 = vmul.f32 %v1549, %v1923
  %v2042 = vmul.f32 %v1550, %v1923
  %v2043 = vmul.f32 %v1551, %v1923
  %v2044 = vmul.f32 %v1552, %v1923
  %v2045 = vld [vmem:[%s2] sm:$0x1]
  %v2047 = vlaneseq
  %v2048 = vshrl.u32 %v2047, 7
  %v2049 = vsub.s32 0, %v2048
  %v2050 = vrot.slane %v2045, %v2049
  %v2052 = vmul.f32 %v1924, %v2050
  %v2053 = vmul.f32 %v1925, %v2050
  %v2054 = vmul.f32 %v1926, %v2050
  %v2055 = vmul.f32 %v1927, %v2050
  %v2056 = vmul.f32 %v1928, %v2050
  %v2057 = vmul.f32 %v1929, %v2050
  %v2058 = vmul.f32 %v1930, %v2050
  %v2059 = vmul.f32 %v1931, %v2050
  %v2060 = vmul.f32 %v1932, %v2050
  %v2061 = vmul.f32 %v1933, %v2050
  %v2062 = vmul.f32 %v1934, %v2050
  %v2063 = vmul.f32 %v1935, %v2050
  %v2064 = vmul.f32 %v1936, %v2050
  %v2065 = vmul.f32 %v1937, %v2050
  %v2066 = vmul.f32 %v1938, %v2050
  %v2067 = vmul.f32 %v1939, %v2050
  %v2068 = vmul.f32 %v1940, %v2050
  %v2069 = vmul.f32 %v1941, %v2050
  %v2070 = vmul.f32 %v1942, %v2050
  %v2071 = vmul.f32 %v1943, %v2050
  %v2072 = vmul.f32 %v1944, %v2050
  %v2073 = vmul.f32 %v1945, %v2050
  %v2074 = vmul.f32 %v1946, %v2050
  %v2075 = vmul.f32 %v1947, %v2050
  %v2076 = vmul.f32 %v1948, %v2050
  %v2077 = vmul.f32 %v1949, %v2050
  %v2078 = vmul.f32 %v1950, %v2050
  %v2079 = vmul.f32 %v1951, %v2050
  %v2080 = vmul.f32 %v1952, %v2050
  %v2081 = vmul.f32 %v1953, %v2050
  %v2082 = vmul.f32 %v1954, %v2050
  %v2083 = vmul.f32 %v1955, %v2050
  %v2084 = vmul.f32 %v1956, %v2050
  %v2085 = vmul.f32 %v1957, %v2050
  %v2086 = vmul.f32 %v1958, %v2050
  %v2087 = vmul.f32 %v1959, %v2050
  %v2088 = vmul.f32 %v1960, %v2050
  %v2089 = vmul.f32 %v1961, %v2050
  %v2090 = vmul.f32 %v1962, %v2050
  %v2091 = vmul.f32 %v1963, %v2050
  %v2092 = vmul.f32 %v1964, %v2050
  %v2093 = vmul.f32 %v1965, %v2050
  %v2094 = vmul.f32 %v1966, %v2050
  %v2095 = vmul.f32 %v1967, %v2050
  %v2096 = vmul.f32 %v1968, %v2050
  %v2097 = vmul.f32 %v1969, %v2050
  %v2098 = vmul.f32 %v1970, %v2050
  %v2099 = vmul.f32 %v1971, %v2050
  %v2100 = vmul.f32 %v1972, %v2050
  %v2101 = vmul.f32 %v1973, %v2050
  %v2102 = vmul.f32 %v1974, %v2050
  %v2103 = vmul.f32 %v1975, %v2050
  %v2104 = vmul.f32 %v1976, %v2050
  %v2105 = vmul.f32 %v1977, %v2050
  %v2106 = vmul.f32 %v1978, %v2050
  %v2107 = vmul.f32 %v1979, %v2050
  %v2108 = vmul.f32 %v1980, %v2050
  %v2109 = vmul.f32 %v1981, %v2050
  %v2110 = vmul.f32 %v1982, %v2050
  %v2111 = vmul.f32 %v1983, %v2050
  %v2112 = vmul.f32 %v1984, %v2050
  %v2113 = vmul.f32 %v1985, %v2050
  %v2114 = vmul.f32 %v1986, %v2050
  %v2115 = vmul.f32 %v1987, %v2050
  %v2116 = vmul.f32 %v1988, %v2050
  %v2117 = vmul.f32 %v1989, %v2050
  %v2118 = vmul.f32 %v1990, %v2050
  %v2119 = vmul.f32 %v1991, %v2050
  %v2120 = vmul.f32 %v1992, %v2050
  %v2121 = vmul.f32 %v1993, %v2050
  %v2122 = vmul.f32 %v1994, %v2050
  %v2123 = vmul.f32 %v1995, %v2050
  %v2124 = vmul.f32 %v1996, %v2050
  %v2125 = vmul.f32 %v1997, %v2050
  %v2126 = vmul.f32 %v1998, %v2050
  %v2127 = vmul.f32 %v1999, %v2050
  %v2128 = vmul.f32 %v2000, %v2050
  %v2129 = vmul.f32 %v2001, %v2050
  %v2130 = vmul.f32 %v2002, %v2050
  %v2131 = vmul.f32 %v2003, %v2050
  %v2132 = vmul.f32 %v2004, %v2050
  %v2133 = vmul.f32 %v2005, %v2050
  %v2134 = vmul.f32 %v2006, %v2050
  %v2135 = vmul.f32 %v2007, %v2050
  %v2136 = vmul.f32 %v2008, %v2050
  %v2137 = vmul.f32 %v2009, %v2050
  %v2138 = vmul.f32 %v2010, %v2050
  %v2139 = vmul.f32 %v2011, %v2050
  %v2140 = vmul.f32 %v2012, %v2050
  %v2141 = vmul.f32 %v2013, %v2050
  %v2142 = vmul.f32 %v2014, %v2050
  %v2143 = vmul.f32 %v2015, %v2050
  %v2144 = vmul.f32 %v2016, %v2050
  %v2145 = vmul.f32 %v2017, %v2050
  %v2146 = vmul.f32 %v2018, %v2050
  %v2147 = vmul.f32 %v2019, %v2050
  %v2148 = vmul.f32 %v2020, %v2050
  %v2149 = vmul.f32 %v2021, %v2050
  %v2150 = vmul.f32 %v2022, %v2050
  %v2151 = vmul.f32 %v2023, %v2050
  %v2152 = vmul.f32 %v2024, %v2050
  %v2153 = vmul.f32 %v2025, %v2050
  %v2154 = vmul.f32 %v2026, %v2050
  %v2155 = vmul.f32 %v2027, %v2050
  %v2156 = vmul.f32 %v2028, %v2050
  %v2157 = vmul.f32 %v2029, %v2050
  %v2158 = vmul.f32 %v2030, %v2050
  %v2159 = vmul.f32 %v2031, %v2050
  %v2160 = vmul.f32 %v2032, %v2050
  %v2161 = vmul.f32 %v2033, %v2050
  %v2162 = vmul.f32 %v2034, %v2050
  %v2163 = vmul.f32 %v2035, %v2050
  %v2164 = vmul.f32 %v2036, %v2050
  %v2165 = vmul.f32 %v2037, %v2050
  %v2166 = vmul.f32 %v2038, %v2050
  %v2167 = vmul.f32 %v2039, %v2050
  %v2168 = vmul.f32 %v2040, %v2050
  %v2169 = vmul.f32 %v2041, %v2050
  %v2170 = vmul.f32 %v2042, %v2050
  %v2171 = vmul.f32 %v2043, %v2050
  %v2172 = vmul.f32 %v2044, %v2050
  %v2173 = vld [vmem:[%s3] sm:$0x1]
  %v2175 = vlaneseq
  %v2176 = vshrl.u32 %v2175, 7
  %v2177 = vsub.s32 0, %v2176
  %v2178 = vrot.slane %v2173, %v2177
  %v2180 = vadd.f32 %v2052, %v2178
  %v2181 = vadd.f32 %v2053, %v2178
  %v2182 = vadd.f32 %v2054, %v2178
  %v2183 = vadd.f32 %v2055, %v2178
  %v2184 = vadd.f32 %v2056, %v2178
  %v2185 = vadd.f32 %v2057, %v2178
  %v2186 = vadd.f32 %v2058, %v2178
  %v2187 = vadd.f32 %v2059, %v2178
  %v2188 = vadd.f32 %v2060, %v2178
  %v2189 = vadd.f32 %v2061, %v2178
  %v2190 = vadd.f32 %v2062, %v2178
  %v2191 = vadd.f32 %v2063, %v2178
  %v2192 = vadd.f32 %v2064, %v2178
  %v2193 = vadd.f32 %v2065, %v2178
  %v2194 = vadd.f32 %v2066, %v2178
  %v2195 = vadd.f32 %v2067, %v2178
  %v2196 = vadd.f32 %v2068, %v2178
  %v2197 = vadd.f32 %v2069, %v2178
  %v2198 = vadd.f32 %v2070, %v2178
  %v2199 = vadd.f32 %v2071, %v2178
  %v2200 = vadd.f32 %v2072, %v2178
  %v2201 = vadd.f32 %v2073, %v2178
  %v2202 = vadd.f32 %v2074, %v2178
  %v2203 = vadd.f32 %v2075, %v2178
  %v2204 = vadd.f32 %v2076, %v2178
  %v2205 = vadd.f32 %v2077, %v2178
  %v2206 = vadd.f32 %v2078, %v2178
  %v2207 = vadd.f32 %v2079, %v2178
  %v2208 = vadd.f32 %v2080, %v2178
  %v2209 = vadd.f32 %v2081, %v2178
  %v2210 = vadd.f32 %v2082, %v2178
  %v2211 = vadd.f32 %v2083, %v2178
  %v2212 = vadd.f32 %v2084, %v2178
  %v2213 = vadd.f32 %v2085, %v2178
  %v2214 = vadd.f32 %v2086, %v2178
  %v2215 = vadd.f32 %v2087, %v2178
  %v2216 = vadd.f32 %v2088, %v2178
  %v2217 = vadd.f32 %v2089, %v2178
  %v2218 = vadd.f32 %v2090, %v2178
  %v2219 = vadd.f32 %v2091, %v2178
  %v2220 = vadd.f32 %v2092, %v2178
  %v2221 = vadd.f32 %v2093, %v2178
  %v2222 = vadd.f32 %v2094, %v2178
  %v2223 = vadd.f32 %v2095, %v2178
  %v2224 = vadd.f32 %v2096, %v2178
  %v2225 = vadd.f32 %v2097, %v2178
  %v2226 = vadd.f32 %v2098, %v2178
  %v2227 = vadd.f32 %v2099, %v2178
  %v2228 = vadd.f32 %v2100, %v2178
  %v2229 = vadd.f32 %v2101, %v2178
  %v2230 = vadd.f32 %v2102, %v2178
  %v2231 = vadd.f32 %v2103, %v2178
  %v2232 = vadd.f32 %v2104, %v2178
  %v2233 = vadd.f32 %v2105, %v2178
  %v2234 = vadd.f32 %v2106, %v2178
  %v2235 = vadd.f32 %v2107, %v2178
  %v2236 = vadd.f32 %v2108, %v2178
  %v2237 = vadd.f32 %v2109, %v2178
  %v2238 = vadd.f32 %v2110, %v2178
  %v2239 = vadd.f32 %v2111, %v2178
  %v2240 = vadd.f32 %v2112, %v2178
  %v2241 = vadd.f32 %v2113, %v2178
  %v2242 = vadd.f32 %v2114, %v2178
  %v2243 = vadd.f32 %v2115, %v2178
  %v2244 = vadd.f32 %v2116, %v2178
  %v2245 = vadd.f32 %v2117, %v2178
  %v2246 = vadd.f32 %v2118, %v2178
  %v2247 = vadd.f32 %v2119, %v2178
  %v2248 = vadd.f32 %v2120, %v2178
  %v2249 = vadd.f32 %v2121, %v2178
  %v2250 = vadd.f32 %v2122, %v2178
  %v2251 = vadd.f32 %v2123, %v2178
  %v2252 = vadd.f32 %v2124, %v2178
  %v2253 = vadd.f32 %v2125, %v2178
  %v2254 = vadd.f32 %v2126, %v2178
  %v2255 = vadd.f32 %v2127, %v2178
  %v2256 = vadd.f32 %v2128, %v2178
  %v2257 = vadd.f32 %v2129, %v2178
  %v2258 = vadd.f32 %v2130, %v2178
  %v2259 = vadd.f32 %v2131, %v2178
  %v2260 = vadd.f32 %v2132, %v2178
  %v2261 = vadd.f32 %v2133, %v2178
  %v2262 = vadd.f32 %v2134, %v2178
  %v2263 = vadd.f32 %v2135, %v2178
  %v2264 = vadd.f32 %v2136, %v2178
  %v2265 = vadd.f32 %v2137, %v2178
  %v2266 = vadd.f32 %v2138, %v2178
  %v2267 = vadd.f32 %v2139, %v2178
  %v2268 = vadd.f32 %v2140, %v2178
  %v2269 = vadd.f32 %v2141, %v2178
  %v2270 = vadd.f32 %v2142, %v2178
  %v2271 = vadd.f32 %v2143, %v2178
  %v2272 = vadd.f32 %v2144, %v2178
  %v2273 = vadd.f32 %v2145, %v2178
  %v2274 = vadd.f32 %v2146, %v2178
  %v2275 = vadd.f32 %v2147, %v2178
  %v2276 = vadd.f32 %v2148, %v2178
  %v2277 = vadd.f32 %v2149, %v2178
  %v2278 = vadd.f32 %v2150, %v2178
  %v2279 = vadd.f32 %v2151, %v2178
  %v2280 = vadd.f32 %v2152, %v2178
  %v2281 = vadd.f32 %v2153, %v2178
  %v2282 = vadd.f32 %v2154, %v2178
  %v2283 = vadd.f32 %v2155, %v2178
  %v2284 = vadd.f32 %v2156, %v2178
  %v2285 = vadd.f32 %v2157, %v2178
  %v2286 = vadd.f32 %v2158, %v2178
  %v2287 = vadd.f32 %v2159, %v2178
  %v2288 = vadd.f32 %v2160, %v2178
  %v2289 = vadd.f32 %v2161, %v2178
  %v2290 = vadd.f32 %v2162, %v2178
  %v2291 = vadd.f32 %v2163, %v2178
  %v2292 = vadd.f32 %v2164, %v2178
  %v2293 = vadd.f32 %v2165, %v2178
  %v2294 = vadd.f32 %v2166, %v2178
  %v2295 = vadd.f32 %v2167, %v2178
  %v2296 = vadd.f32 %v2168, %v2178
  %v2297 = vadd.f32 %v2169, %v2178
  %v2298 = vadd.f32 %v2170, %v2178
  %v2299 = vadd.f32 %v2171, %v2178
  %v2300 = vadd.f32 %v2172, %v2178
  %v2301 = vmax.f32 %v2180, 0.0
  %v2302 = vmax.f32 %v2181, 0.0
  %v2303 = vmax.f32 %v2182, 0.0
  %v2304 = vmax.f32 %v2183, 0.0
  %v2305 = vmax.f32 %v2184, 0.0
  %v2306 = vmax.f32 %v2185, 0.0
  %v2307 = vmax.f32 %v2186, 0.0
  %v2308 = vmax.f32 %v2187, 0.0
  %v2309 = vmax.f32 %v2188, 0.0
  %v2310 = vmax.f32 %v2189, 0.0
  %v2311 = vmax.f32 %v2190, 0.0
  %v2312 = vmax.f32 %v2191, 0.0
  %v2313 = vmax.f32 %v2192, 0.0
  %v2314 = vmax.f32 %v2193, 0.0
  %v2315 = vmax.f32 %v2194, 0.0
  %v2316 = vmax.f32 %v2195, 0.0
  %v2317 = vmax.f32 %v2196, 0.0
  %v2318 = vmax.f32 %v2197, 0.0
  %v2319 = vmax.f32 %v2198, 0.0
  %v2320 = vmax.f32 %v2199, 0.0
  %v2321 = vmax.f32 %v2200, 0.0
  %v2322 = vmax.f32 %v2201, 0.0
  %v2323 = vmax.f32 %v2202, 0.0
  %v2324 = vmax.f32 %v2203, 0.0
  %v2325 = vmax.f32 %v2204, 0.0
  %v2326 = vmax.f32 %v2205, 0.0
  %v2327 = vmax.f32 %v2206, 0.0
  %v2328 = vmax.f32 %v2207, 0.0
  %v2329 = vmax.f32 %v2208, 0.0
  %v2330 = vmax.f32 %v2209, 0.0
  %v2331 = vmax.f32 %v2210, 0.0
  %v2332 = vmax.f32 %v2211, 0.0
  %v2333 = vmax.f32 %v2212, 0.0
  %v2334 = vmax.f32 %v2213, 0.0
  %v2335 = vmax.f32 %v2214, 0.0
  %v2336 = vmax.f32 %v2215, 0.0
  %v2337 = vmax.f32 %v2216, 0.0
  %v2338 = vmax.f32 %v2217, 0.0
  %v2339 = vmax.f32 %v2218, 0.0
  %v2340 = vmax.f32 %v2219, 0.0
  %v2341 = vmax.f32 %v2220, 0.0
  %v2342 = vmax.f32 %v2221, 0.0
  %v2343 = vmax.f32 %v2222, 0.0
  %v2344 = vmax.f32 %v2223, 0.0
  %v2345 = vmax.f32 %v2224, 0.0
  %v2346 = vmax.f32 %v2225, 0.0
  %v2347 = vmax.f32 %v2226, 0.0
  %v2348 = vmax.f32 %v2227, 0.0
  %v2349 = vmax.f32 %v2228, 0.0
  %v2350 = vmax.f32 %v2229, 0.0
  %v2351 = vmax.f32 %v2230, 0.0
  %v2352 = vmax.f32 %v2231, 0.0
  %v2353 = vmax.f32 %v2232, 0.0
  %v2354 = vmax.f32 %v2233, 0.0
  %v2355 = vmax.f32 %v2234, 0.0
  %v2356 = vmax.f32 %v2235, 0.0
  %v2357 = vmax.f32 %v2236, 0.0
  %v2358 = vmax.f32 %v2237, 0.0
  %v2359 = vmax.f32 %v2238, 0.0
  %v2360 = vmax.f32 %v2239, 0.0
  %v2361 = vmax.f32 %v2240, 0.0
  %v2362 = vmax.f32 %v2241, 0.0
  %v2363 = vmax.f32 %v2242, 0.0
  %v2364 = vmax.f32 %v2243, 0.0
  %v2365 = vmax.f32 %v2244, 0.0
  %v2366 = vmax.f32 %v2245, 0.0
  %v2367 = vmax.f32 %v2246, 0.0
  %v2368 = vmax.f32 %v2247, 0.0
  %v2369 = vmax.f32 %v2248, 0.0
  %v2370 = vmax.f32 %v2249, 0.0
  %v2371 = vmax.f32 %v2250, 0.0
  %v2372 = vmax.f32 %v2251, 0.0
  %v2373 = vmax.f32 %v2252, 0.0
  %v2374 = vmax.f32 %v2253, 0.0
  %v2375 = vmax.f32 %v2254, 0.0
  %v2376 = vmax.f32 %v2255, 0.0
  %v2377 = vmax.f32 %v2256, 0.0
  %v2378 = vmax.f32 %v2257, 0.0
  %v2379 = vmax.f32 %v2258, 0.0
  %v2380 = vmax.f32 %v2259, 0.0
  %v2381 = vmax.f32 %v2260, 0.0
  %v2382 = vmax.f32 %v2261, 0.0
  %v2383 = vmax.f32 %v2262, 0.0
  %v2384 = vmax.f32 %v2263, 0.0
  %v2385 = vmax.f32 %v2264, 0.0
  %v2386 = vmax.f32 %v2265, 0.0
  %v2387 = vmax.f32 %v2266, 0.0
  %v2388 = vmax.f32 %v2267, 0.0
  %v2389 = vmax.f32 %v2268, 0.0
  %v2390 = vmax.f32 %v2269, 0.0
  %v2391 = vmax.f32 %v2270, 0.0
  %v2392 = vmax.f32 %v2271, 0.0
  %v2393 = vmax.f32 %v2272, 0.0
  %v2394 = vmax.f32 %v2273, 0.0
  %v2395 = vmax.f32 %v2274, 0.0
  %v2396 = vmax.f32 %v2275, 0.0
  %v2397 = vmax.f32 %v2276, 0.0
  %v2398 = vmax.f32 %v2277, 0.0
  %v2399 = vmax.f32 %v2278, 0.0
  %v2400 = vmax.f32 %v2279, 0.0
  %v2401 = vmax.f32 %v2280, 0.0
  %v2402 = vmax.f32 %v2281, 0.0
  %v2403 = vmax.f32 %v2282, 0.0
  %v2404 = vmax.f32 %v2283, 0.0
  %v2405 = vmax.f32 %v2284, 0.0
  %v2406 = vmax.f32 %v2285, 0.0
  %v2407 = vmax.f32 %v2286, 0.0
  %v2408 = vmax.f32 %v2287, 0.0
  %v2409 = vmax.f32 %v2288, 0.0
  %v2410 = vmax.f32 %v2289, 0.0
  %v2411 = vmax.f32 %v2290, 0.0
  %v2412 = vmax.f32 %v2291, 0.0
  %v2413 = vmax.f32 %v2292, 0.0
  %v2414 = vmax.f32 %v2293, 0.0
  %v2415 = vmax.f32 %v2294, 0.0
  %v2416 = vmax.f32 %v2295, 0.0
  %v2417 = vmax.f32 %v2296, 0.0
  %v2418 = vmax.f32 %v2297, 0.0
  %v2419 = vmax.f32 %v2298, 0.0
  %v2420 = vmax.f32 %v2299, 0.0
  %v2421 = vmax.f32 %v2300, 0.0
  %2422 = vst.msk [vmem:[%s4] sm:$0xff] %vm1183, %v2301
  %2423 = vst.msk [vmem:[%s4 + $0x8] sm:$0xff] %vm1183, %v2302
  %2424 = vst.msk [vmem:[%s4 + $0x10] sm:$0xff] %vm1183, %v2303
  %2425 = vst.msk [vmem:[%s4 + $0x18] sm:$0xff] %vm1183, %v2304
  %2426 = vst.msk [vmem:[%s4 + $0x20] sm:$0xff] %vm1183, %v2305
  %2427 = vst.msk [vmem:[%s4 + $0x28] sm:$0xff] %vm1183, %v2306
  %2428 = vst.msk [vmem:[%s4 + $0x30] sm:$0xff] %vm1183, %v2307
  %2429 = vst.msk [vmem:[%s4 + $0x38] sm:$0xff] %vm1183, %v2308
  %2430 = vst.msk [vmem:[%s4 + $0x40] sm:$0xff] %vm1183, %v2309
  %2431 = vst.msk [vmem:[%s4 + $0x48] sm:$0xff] %vm1183, %v2310
  %2432 = vst.msk [vmem:[%s4 + $0x50] sm:$0xff] %vm1183, %v2311
  %2433 = vst.msk [vmem:[%s4 + $0x58] sm:$0xff] %vm1183, %v2312
  %2434 = vst.msk [vmem:[%s4 + $0x60] sm:$0xff] %vm1183, %v2313
  %2435 = vst.msk [vmem:[%s4 + $0x68] sm:$0xff] %vm1183, %v2314
  %2436 = vst.msk [vmem:[%s4 + $0x70] sm:$0xff] %vm1183, %v2315
  %2437 = vst.msk [vmem:[%s4 + $0x78] sm:$0xff] %vm1183, %v2316
  %2438 = vst.msk [vmem:[%s4 + $0x80] sm:$0xff] %vm1183, %v2317
  %2439 = vst.msk [vmem:[%s4 + $0x88] sm:$0xff] %vm1183, %v2318
  %2440 = vst.msk [vmem:[%s4 + $0x90] sm:$0xff] %vm1183, %v2319
  %2441 = vst.msk [vmem:[%s4 + $0x98] sm:$0xff] %vm1183, %v2320
  %2442 = vst.msk [vmem:[%s4 + $0xa0] sm:$0xff] %vm1183, %v2321
  %2443 = vst.msk [vmem:[%s4 + $0xa8] sm:$0xff] %vm1183, %v2322
  %2444 = vst.msk [vmem:[%s4 + $0xb0] sm:$0xff] %vm1183, %v2323
  %2445 = vst.msk [vmem:[%s4 + $0xb8] sm:$0xff] %vm1183, %v2324
  %2446 = vst.msk [vmem:[%s4 + $0xc0] sm:$0xff] %vm1183, %v2325
  %2447 = vst.msk [vmem:[%s4 + $0xc8] sm:$0xff] %vm1183, %v2326
  %2448 = vst.msk [vmem:[%s4 + $0xd0] sm:$0xff] %vm1183, %v2327
  %2449 = vst.msk [vmem:[%s4 + $0xd8] sm:$0xff] %vm1183, %v2328
  %2450 = vst.msk [vmem:[%s4 + $0xe0] sm:$0xff] %vm1183, %v2329
  %2451 = vst.msk [vmem:[%s4 + $0xe8] sm:$0xff] %vm1183, %v2330
  %2452 = vst.msk [vmem:[%s4 + $0xf0] sm:$0xff] %vm1183, %v2331
  %2453 = vst.msk [vmem:[%s4 + $0xf8] sm:$0xff] %vm1183, %v2332
  %2454 = vst.msk [vmem:[%s4 + $0x100] sm:$0xff] %vm1183, %v2333
  %2455 = vst.msk [vmem:[%s4 + $0x108] sm:$0xff] %vm1183, %v2334
  %2456 = vst.msk [vmem:[%s4 + $0x110] sm:$0xff] %vm1183, %v2335
  %2457 = vst.msk [vmem:[%s4 + $0x118] sm:$0xff] %vm1183, %v2336
  %2458 = vst.msk [vmem:[%s4 + $0x120] sm:$0xff] %vm1183, %v2337
  %2459 = vst.msk [vmem:[%s4 + $0x128] sm:$0xff] %vm1183, %v2338
  %2460 = vst.msk [vmem:[%s4 + $0x130] sm:$0xff] %vm1183, %v2339
  %2461 = vst.msk [vmem:[%s4 + $0x138] sm:$0xff] %vm1183, %v2340
  %2462 = vst.msk [vmem:[%s4 + $0x140] sm:$0xff] %vm1183, %v2341
  %2463 = vst.msk [vmem:[%s4 + $0x148] sm:$0xff] %vm1183, %v2342
  %2464 = vst.msk [vmem:[%s4 + $0x150] sm:$0xff] %vm1183, %v2343
  %2465 = vst.msk [vmem:[%s4 + $0x158] sm:$0xff] %vm1183, %v2344
  %2466 = vst.msk [vmem:[%s4 + $0x160] sm:$0xff] %vm1183, %v2345
  %2467 = vst.msk [vmem:[%s4 + $0x168] sm:$0xff] %vm1183, %v2346
  %2468 = vst.msk [vmem:[%s4 + $0x170] sm:$0xff] %vm1183, %v2347
  %2469 = vst.msk [vmem:[%s4 + $0x178] sm:$0xff] %vm1183, %v2348
  %2470 = vst.msk [vmem:[%s4 + $0x180] sm:$0xff] %vm1183, %v2349
  %2471 = vst.msk [vmem:[%s4 + $0x188] sm:$0xff] %vm1183, %v2350
  %2472 = vst.msk [vmem:[%s4 + $0x190] sm:$0xff] %vm1183, %v2351
  %2473 = vst.msk [vmem:[%s4 + $0x198] sm:$0xff] %vm1183, %v2352
  %2474 = vst.msk [vmem:[%s4 + $0x1a0] sm:$0xff] %vm1183, %v2353
  %2475 = vst.msk [vmem:[%s4 + $0x1a8] sm:$0xff] %vm1183, %v2354
  %2476 = vst.msk [vmem:[%s4 + $0x1b0] sm:$0xff] %vm1183, %v2355
  %2477 = vst.msk [vmem:[%s4 + $0x1b8] sm:$0xff] %vm1183, %v2356
  %2478 = vst.msk [vmem:[%s4 + $0x1c0] sm:$0xff] %vm1183, %v2357
  %2479 = vst.msk [vmem:[%s4 + $0x1c8] sm:$0xff] %vm1183, %v2358
  %2480 = vst.msk [vmem:[%s4 + $0x1d0] sm:$0xff] %vm1183, %v2359
  %2481 = vst.msk [vmem:[%s4 + $0x1d8] sm:$0xff] %vm1183, %v2360
  %2482 = vst.msk [vmem:[%s4 + $0x1e0] sm:$0xff] %vm1183, %v2361
  %2483 = vst.msk [vmem:[%s4 + $0x1e8] sm:$0xff] %vm1183, %v2362
  %2484 = vst.msk [vmem:[%s4 + $0x1f0] sm:$0xff] %vm1183, %v2363
  %2485 = vst.msk [vmem:[%s4 + $0x1f8] sm:$0xff] %vm1183, %v2364
  %2486 = vst.msk [vmem:[%s4 + $0x200] sm:$0xff] %vm1183, %v2365
  %2487 = vst.msk [vmem:[%s4 + $0x208] sm:$0xff] %vm1183, %v2366
  %2488 = vst.msk [vmem:[%s4 + $0x210] sm:$0xff] %vm1183, %v2367
  %2489 = vst.msk [vmem:[%s4 + $0x218] sm:$0xff] %vm1183, %v2368
  %2490 = vst.msk [vmem:[%s4 + $0x220] sm:$0xff] %vm1183, %v2369
  %2491 = vst.msk [vmem:[%s4 + $0x228] sm:$0xff] %vm1183, %v2370
  %2492 = vst.msk [vmem:[%s4 + $0x230] sm:$0xff] %vm1183, %v2371
  %2493 = vst.msk [vmem:[%s4 + $0x238] sm:$0xff] %vm1183, %v2372
  %2494 = vst.msk [vmem:[%s4 + $0x240] sm:$0xff] %vm1183, %v2373
  %2495 = vst.msk [vmem:[%s4 + $0x248] sm:$0xff] %vm1183, %v2374
  %2496 = vst.msk [vmem:[%s4 + $0x250] sm:$0xff] %vm1183, %v2375
  %2497 = vst.msk [vmem:[%s4 + $0x258] sm:$0xff] %vm1183, %v2376
  %2498 = vst.msk [vmem:[%s4 + $0x260] sm:$0xff] %vm1183, %v2377
  %2499 = vst.msk [vmem:[%s4 + $0x268] sm:$0xff] %vm1183, %v2378
  %2500 = vst.msk [vmem:[%s4 + $0x270] sm:$0xff] %vm1183, %v2379
  %2501 = vst.msk [vmem:[%s4 + $0x278] sm:$0xff] %vm1183, %v2380
  %2502 = vst.msk [vmem:[%s4 + $0x280] sm:$0xff] %vm1183, %v2381
  %2503 = vst.msk [vmem:[%s4 + $0x288] sm:$0xff] %vm1183, %v2382
  %2504 = vst.msk [vmem:[%s4 + $0x290] sm:$0xff] %vm1183, %v2383
  %2505 = vst.msk [vmem:[%s4 + $0x298] sm:$0xff] %vm1183, %v2384
  %2506 = vst.msk [vmem:[%s4 + $0x2a0] sm:$0xff] %vm1183, %v2385
  %2507 = vst.msk [vmem:[%s4 + $0x2a8] sm:$0xff] %vm1183, %v2386
  %2508 = vst.msk [vmem:[%s4 + $0x2b0] sm:$0xff] %vm1183, %v2387
  %2509 = vst.msk [vmem:[%s4 + $0x2b8] sm:$0xff] %vm1183, %v2388
  %2510 = vst.msk [vmem:[%s4 + $0x2c0] sm:$0xff] %vm1183, %v2389
  %2511 = vst.msk [vmem:[%s4 + $0x2c8] sm:$0xff] %vm1183, %v2390
  %2512 = vst.msk [vmem:[%s4 + $0x2d0] sm:$0xff] %vm1183, %v2391
  %2513 = vst.msk [vmem:[%s4 + $0x2d8] sm:$0xff] %vm1183, %v2392
  %2514 = vst.msk [vmem:[%s4 + $0x2e0] sm:$0xff] %vm1183, %v2393
  %2515 = vst.msk [vmem:[%s4 + $0x2e8] sm:$0xff] %vm1183, %v2394
  %2516 = vst.msk [vmem:[%s4 + $0x2f0] sm:$0xff] %vm1183, %v2395
  %2517 = vst.msk [vmem:[%s4 + $0x2f8] sm:$0xff] %vm1183, %v2396
  %2518 = vst.msk [vmem:[%s4 + $0x300] sm:$0xff] %vm1183, %v2397
  %2519 = vst.msk [vmem:[%s4 + $0x308] sm:$0xff] %vm1183, %v2398
  %2520 = vst.msk [vmem:[%s4 + $0x310] sm:$0xff] %vm1183, %v2399
  %2521 = vst.msk [vmem:[%s4 + $0x318] sm:$0xff] %vm1183, %v2400
  %2522 = vst.msk [vmem:[%s4 + $0x320] sm:$0xff] %vm1183, %v2401
  %2523 = vst.msk [vmem:[%s4 + $0x328] sm:$0xff] %vm1183, %v2402
  %2524 = vst.msk [vmem:[%s4 + $0x330] sm:$0xff] %vm1183, %v2403
  %2525 = vst.msk [vmem:[%s4 + $0x338] sm:$0xff] %vm1183, %v2404
  %2526 = vst.msk [vmem:[%s4 + $0x340] sm:$0xff] %vm1183, %v2405
  %2527 = vst.msk [vmem:[%s4 + $0x348] sm:$0xff] %vm1183, %v2406
  %2528 = vst.msk [vmem:[%s4 + $0x350] sm:$0xff] %vm1183, %v2407
  %2529 = vst.msk [vmem:[%s4 + $0x358] sm:$0xff] %vm1183, %v2408
  %2530 = vst.msk [vmem:[%s4 + $0x360] sm:$0xff] %vm1183, %v2409
  %2531 = vst.msk [vmem:[%s4 + $0x368] sm:$0xff] %vm1183, %v2410
  %2532 = vst.msk [vmem:[%s4 + $0x370] sm:$0xff] %vm1183, %v2411
  %2533 = vst.msk [vmem:[%s4 + $0x378] sm:$0xff] %vm1183, %v2412
  %2534 = vst.msk [vmem:[%s4 + $0x380] sm:$0xff] %vm1183, %v2413
  %2535 = vst.msk [vmem:[%s4 + $0x388] sm:$0xff] %vm1183, %v2414
  %2536 = vst.msk [vmem:[%s4 + $0x390] sm:$0xff] %vm1183, %v2415
  %2537 = vst.msk [vmem:[%s4 + $0x398] sm:$0xff] %vm1183, %v2416
  %2538 = vst.msk [vmem:[%s4 + $0x3a0] sm:$0xff] %vm1183, %v2417
  %2539 = vst.msk [vmem:[%s4 + $0x3a8] sm:$0xff] %vm1183, %v2418
  %2540 = vst.msk [vmem:[%s4 + $0x3b0] sm:$0xff] %vm1183, %v2419
  %2541 = vst.msk [vmem:[%s4 + $0x3b8] sm:$0xff] %vm1183, %v2420
  %2542 = vst.msk [vmem:[%s4 + $0x3c0] sm:$0xff] %vm1183, %v2421
  // Predicated region
  $region18: #{spatial_transformer_forward.4} parent=0 // pred_check
    _
  $region19: #{spatial_transformer_forward.4} parent=0 // pred_check_branch
    %2544 = sbr.rel (0) target = $region21
  $region20: #{spatial_transformer_forward.4} parent=0 // pred_region
    _
  $region21: #{spatial_transformer_forward.4} parent=0 // pred_fallthru
    _
  // Predicated region
  $region22: #{spatial_transformer_forward.4} parent=0 // pred_check
    _
  $region23: #{spatial_transformer_forward.4} parent=0 // pred_check_branch
    %2546 = sbr.rel (0) target = $region25
  $region24: #{spatial_transformer_forward.4} parent=0 // pred_region
    _
  $region25: #{spatial_transformer_forward.4} parent=0 // pred_fallthru
    _

// kernel: spatial_transformer_forward.6
$region0: #{spatial_transformer_forward.6}
  #allocation0 [shape = 'u32[]', space=smem, size = 0x4, offset = 0x4, fixed_abs, tag = 'smem constant byte address 0x4 - core index']
  #allocation1 [shape = 'u32[144,128]{1,0:T(1,128)}', space=vmem, size = 0x12000, scoped, tag = 'internal scratch']
  %s0 = inlined_call_operand.vmem [shape: f32[18,10], index: 0, kind: input, shape index: {}]
  %s1 = inlined_call_operand.vmem [shape: f32[10,256], index: 1, kind: input, shape index: {}]
  %s2 = inlined_call_operand.vmem [shape: f32[1,256], index: 2, kind: input, shape index: {}]
  %s3 = inlined_call_operand.vmem [shape: f32[1,256], index: 3, kind: input, shape index: {}]
  %s4 = inlined_call_operand.vmem [shape: f32[256,18], index: 4, kind: input, shape index: {}]
  %s5 = inlined_call_operand.vmem [shape: f32[1,18], index: 5, kind: input, shape index: {}]
  %s6 = inlined_call_operand.vmem [shape: f32[2,18], index: 6, kind: output, shape index: {}]
  %s7 = sld [smem:[#allocation0]]
  $region34: #{spatial_transformer_forward.6} parent=0
    _
  %s9 = ssub.s32 1, %s7
  %s10 = scalar_select 0, %s9, %s7
  // Predicated region
  $region2: #{spatial_transformer_forward.6} parent=0 // pred_check
    _
  $region3: #{spatial_transformer_forward.6} parent=0 // pred_check_branch
    %12 = sbr.rel (0) target = $region5
  $region4: #{spatial_transformer_forward.6} parent=0 // pred_region
    _
  $region5: #{spatial_transformer_forward.6} parent=0 // pred_fallthru
    _
  // Predicated region
  $region6: #{spatial_transformer_forward.6} parent=0 // pred_check
    _
  $region7: #{spatial_transformer_forward.6} parent=0 // pred_check_branch
    %14 = sbr.rel (0) target = $region9
  $region8: #{spatial_transformer_forward.6} parent=0 // pred_region
    _
  $region9: #{spatial_transformer_forward.6} parent=0 // pred_fallthru
    _
  // Predicated region
  $region10: #{spatial_transformer_forward.6} parent=0 // pred_check
    _
  $region11: #{spatial_transformer_forward.6} parent=0 // pred_check_branch
    %16 = sbr.rel (0) target = $region13
  $region12: #{spatial_transformer_forward.6} parent=0 // pred_region
    _
  $region13: #{spatial_transformer_forward.6} parent=0 // pred_fallthru
    _
  // Predicated region
  $region14: #{spatial_transformer_forward.6} parent=0 // pred_check
    _
  $region15: #{spatial_transformer_forward.6} parent=0 // pred_check_branch
    %18 = sbr.rel (0) target = $region17
  $region16: #{spatial_transformer_forward.6} parent=0 // pred_region
    _
  $region17: #{spatial_transformer_forward.6} parent=0 // pred_fallthru
    _
  // Predicated region
  $region18: #{spatial_transformer_forward.6} parent=0 // pred_check
    _
  $region19: #{spatial_transformer_forward.6} parent=0 // pred_check_branch
    %20 = sbr.rel (0) target = $region21
  $region20: #{spatial_transformer_forward.6} parent=0 // pred_region
    _
  $region21: #{spatial_transformer_forward.6} parent=0 // pred_fallthru
    _
  // Predicated region
  $region22: #{spatial_transformer_forward.6} parent=0 // pred_check
    _
  $region23: #{spatial_transformer_forward.6} parent=0 // pred_check_branch
    %22 = sbr.rel (0) target = $region25
  $region24: #{spatial_transformer_forward.6} parent=0 // pred_region
    _
  $region25: #{spatial_transformer_forward.6} parent=0 // pred_fallthru
    _
  %v23 = vld [vmem:[%s0] sm:$0xff]
  %v24 = vld [vmem:[%s0 + $0x8] sm:$0xff]
  %v25 = vld [vmem:[%s0 + $0x10] sm:$0x3]
  %v26 = vld [vmem:[%s1] sm:$0xff]
  %v27 = vld [vmem:[%s1 + $0x8] sm:$0xff]
  %v28 = vld [vmem:[%s1 + $0x10] sm:$0x3]
  %v29 = vld [vmem:[%s1 + $0x18] sm:$0x3]
  %vm30 = vcmask 80896
  %v32 = vsel %vm30, %v23, 0
  %v35 = vsel %vm30, %v24, 0
  %v38 = vsel %vm30, %v25, 0
  %vm40 = vcmask 1041408
  %v42 = vsel %vm40, %v28, 0
  %v45 = vsel %vm40, %v29, 0
  %47 = vmatprep.subr.mxu0 %v27
  %48 = vmatpush1.msra.mxu0 %v26
  %49 = vmatprep.subr.mxu0 %v45
  %50 = vmatpush1.msra.mxu0 %v42
  %51 = vmatprep.subr.mxu0 0.0
  %52 = vmatpush1.msra.mxu0 0.0
  %53 = vmatprep.subr.mxu0 0.0
  %54 = vmatpush1.msra.mxu0 0.0
  %55 = vmatprep.subr.mxu0 0.0
  %56 = vmatpush1.msra.mxu0 0.0
  %57 = vmatprep.subr.mxu0 0.0
  %58 = vmatpush1.msra.mxu0 0.0
  %59 = vmatprep.subr.mxu0 0.0
  %60 = vmatpush1.msra.mxu0 0.0
  %61 = vmatprep.subr.mxu0 0.0
  %62 = vmatpush1.msra.mxu0 0.0
  %63 = vmatprep.subr.mxu0 0.0
  %64 = vmatpush1.msra.mxu0 0.0
  %65 = vmatprep.subr.mxu0 0.0
  %66 = vmatpush1.msra.mxu0 0.0
  %67 = vmatprep.subr.mxu0 0.0
  %68 = vmatpush1.msra.mxu0 0.0
  %69 = vmatprep.subr.mxu0 0.0
  %70 = vmatpush1.msra.mxu0 0.0
  %71 = vmatprep.subr.mxu0 0.0
  %72 = vmatpush1.msra.mxu0 0.0
  %73 = vmatprep.subr.mxu0 0.0
  %74 = vmatpush1.msra.mxu0 0.0
  %75 = vmatprep.subr.mxu0 0.0
  %76 = vmatpush1.msra.mxu0 0.0
  %77 = vmatprep.subr.mxu0 0.0
  %78 = vmatpush1.msra.mxu0 0.0
  %79 = vmatprep.subr.mxu0 0.0
  %80 = vmatpush1.msra.mxu0 0.0
  %81 = vmatprep.subr.mxu0 0.0
  %82 = vmatpush1.msra.mxu0 0.0
  %83 = vmatprep.subr.mxu0 0.0
  %84 = vmatpush1.msra.mxu0 0.0
  %85 = vmatprep.subr.mxu0 0.0
  %86 = vmatpush1.msra.mxu0 0.0
  %87 = vmatprep.subr.mxu0 0.0
  %88 = vmatpush1.msra.mxu0 0.0
  %89 = vmatprep.subr.mxu0 0.0
  %90 = vmatpush1.msra.mxu0 0.0
  %91 = vmatprep.subr.mxu0 0.0
  %92 = vmatpush1.msra.mxu0 0.0
  %93 = vmatprep.subr.mxu0 0.0
  %94 = vmatpush1.msra.mxu0 0.0
  %95 = vmatprep.subr.mxu0 0.0
  %96 = vmatpush1.msra.mxu0 0.0
  %97 = vmatprep.subr.mxu0 0.0
  %98 = vmatpush1.msra.mxu0 0.0
  %99 = vmatprep.subr.mxu0 0.0
  %100 = vmatpush1.msra.mxu0 0.0
  %101 = vmatprep.subr.mxu0 0.0
  %102 = vmatpush1.msra.mxu0 0.0
  %103 = vmatprep.subr.mxu0 0.0
  %104 = vmatpush1.msra.mxu0 0.0
  %105 = vmatprep.subr.mxu0 0.0
  %106 = vmatpush1.msra.mxu0 0.0
  %107 = vmatprep.subr.mxu0 0.0
  %108 = vmatpush1.msra.mxu0 0.0
  %109 = vmatprep.subr.mxu0 0.0
  %110 = vmatpush1.msra.mxu0 0.0
  %111 = vmatprep.mubr.f32.mxu0 0.0
  %112 = vmatmul.mubr.f32.gmra.mrb[0].mxu0 %v32
  %v113 = vpop.f32.mrb[0].mxu0
  %v114 = vadd.f32 0.0, %v113
  %v115 = vpop.f32.mrb[0].mxu0
  %v116 = vadd.f32 0.0, %v115
  %117 = vmatprep.mubr.f32.mxu0 0.0
  %118 = vmatmul.mubr.f32.gmra.mrb[0].mxu0 %v35
  %v119 = vpop.f32.mrb[0].mxu0
  %v120 = vadd.f32 0.0, %v119
  %v121 = vpop.f32.mrb[0].mxu0
  %v122 = vadd.f32 0.0, %v121
  %123 = vmatprep.mubr.f32.mxu0 0.0
  %124 = vmatmul.mubr.f32.gmra.mrb[0].mxu0 %v38
  %v125 = vpop.f32.mrb[0].mxu0
  %v126 = vadd.f32 0.0, %v125
  %v127 = vpop.f32.mrb[0].mxu0
  %v128 = vadd.f32 0.0, %v127
  %129 = vdwg.mxu0
  %v130 = vadd.f32 %v114, %v120
  %v131 = vsel %vm40, %v126, 0.0
  %v132 = vadd.f32 %v130, %v131
  %v133 = vrot.slane %v132, 4
  %v134 = vadd.f32 %v132, %v133
  %v135 = vrot.slane %v134, 2
  %v136 = vadd.f32 %v134, %v135
  %v137 = vrot.slane %v136, 1
  %v138 = vadd.f32 %v136, %v137
  %v139 = vadd.f32 %v116, %v122
  %v140 = vsel %vm40, %v128, 0.0
  %v141 = vadd.f32 %v139, %v140
  %v142 = vrot.slane %v141, 4
  %v143 = vadd.f32 %v141, %v142
  %v144 = vrot.slane %v143, 2
  %v145 = vadd.f32 %v143, %v144
  %v146 = vrot.slane %v145, 1
  %v147 = vadd.f32 %v145, %v146
  %v148 = vmul.f32 %v138, 0.055555556
  %v149 = vmul.f32 %v147, 0.055555556
  %v150 = vsub.f32 %v114, %v148
  %v151 = vsub.f32 %v116, %v149
  %v152 = vsub.f32 %v120, %v148
  %v153 = vsub.f32 %v122, %v149
  %v154 = vsub.f32 %v126, %v148
  %v155 = vsub.f32 %v128, %v149
  %v156 = vmul.f32 %v150, %v150
  %v157 = vmul.f32 %v151, %v151
  %v158 = vmul.f32 %v152, %v152
  %v159 = vmul.f32 %v153, %v153
  %v160 = vmul.f32 %v154, %v154
  %v161 = vmul.f32 %v155, %v155
  %v162 = vadd.f32 %v156, %v158
  %v163 = vsel %vm40, %v160, 0.0
  %v164 = vadd.f32 %v162, %v163
  %v165 = vrot.slane %v164, 4
  %v166 = vadd.f32 %v164, %v165
  %v167 = vrot.slane %v166, 2
  %v168 = vadd.f32 %v166, %v167
  %v169 = vrot.slane %v168, 1
  %v170 = vadd.f32 %v168, %v169
  %v171 = vadd.f32 %v157, %v159
  %v172 = vsel %vm40, %v161, 0.0
  %v173 = vadd.f32 %v171, %v172
  %v174 = vrot.slane %v173, 4
  %v175 = vadd.f32 %v173, %v174
  %v176 = vrot.slane %v175, 2
  %v177 = vadd.f32 %v175, %v176
  %v178 = vrot.slane %v177, 1
  %v179 = vadd.f32 %v177, %v178
  %v180 = vmul.f32 %v170, 0.055555556
  %v181 = vmul.f32 %v179, 0.055555556
  %v182 = vadd.f32 %v180, 1e-05
  %v183 = vadd.f32 %v181, 1e-05
  %v184 = vrsqrt.pop %v182
  %v185 = vrsqrt.pop %v183
  %v186 = vmul.f32 %v150, %v184
  %v187 = vmul.f32 %v151, %v185
  %v188 = vmul.f32 %v152, %v184
  %v189 = vmul.f32 %v153, %v185
  %v190 = vmul.f32 %v154, %v184
  %v191 = vmul.f32 %v155, %v185
  %v192 = vld [vmem:[%s2] sm:$0x3]
  %v194 = vlaneseq
  %v195 = vshrl.u32 %v194, 7
  %v196 = vsub.s32 0, %v195
  %v197 = vrot.slane %v192, %v196
  %v198 = vlaneseq
  %v199 = vshrl.u32 %v198, 7
  %v200 = vsub.s32 1, %v199
  %v201 = vrot.slane %v192, %v200
  %v204 = vmul.f32 %v186, %v197
  %v205 = vmul.f32 %v187, %v201
  %v206 = vmul.f32 %v188, %v197
  %v207 = vmul.f32 %v189, %v201
  %v208 = vmul.f32 %v190, %v197
  %v209 = vmul.f32 %v191, %v201
  %v210 = vld [vmem:[%s3] sm:$0x3]
  %v212 = vlaneseq
  %v213 = vshrl.u32 %v212, 7
  %v214 = vsub.s32 0, %v213
  %v215 = vrot.slane %v210, %v214
  %v216 = vlaneseq
  %v217 = vshrl.u32 %v216, 7
  %v218 = vsub.s32 1, %v217
  %v219 = vrot.slane %v210, %v218
  %v222 = vadd.f32 %v204, %v215
  %v223 = vadd.f32 %v205, %v219
  %v224 = vadd.f32 %v206, %v215
  %v225 = vadd.f32 %v207, %v219
  %v226 = vadd.f32 %v208, %v215
  %v227 = vadd.f32 %v209, %v219
  %v228 = vmax.f32 %v222, 0.0
  %v229 = vmax.f32 %v223, 0.0
  %v230 = vmax.f32 %v224, 0.0
  %v231 = vmax.f32 %v225, 0.0
  %v232 = vmax.f32 %v226, 0.0
  %v233 = vmax.f32 %v227, 0.0
  %v236 = vrot.slane %v228, 2
  %v237 = vrot.slane %v229, 2
  %v240 = vadd.f32 %v228, %v236
  %v241 = vadd.f32 %v229, %v237
  %v242 = vrot.slane %v228, 4
  %v243 = vrot.slane %v229, 4
  %v246 = vadd.f32 %v240, %v242
  %v247 = vadd.f32 %v241, %v243
  %v248 = vrot.slane %v228, 6
  %v249 = vrot.slane %v229, 6
  %v252 = vadd.f32 %v246, %v248
  %v253 = vadd.f32 %v247, %v249
  %v254 = vadd.f32 %v252, %v230
  %v255 = vadd.f32 %v253, %v231
  %v258 = vrot.slane %v230, 2
  %v259 = vrot.slane %v231, 2
  %v262 = vadd.f32 %v254, %v258
  %v263 = vadd.f32 %v255, %v259
  %v264 = vrot.slane %v230, 4
  %v265 = vrot.slane %v231, 4
  %v268 = vadd.f32 %v262, %v264
  %v269 = vadd.f32 %v263, %v265
  %v270 = vrot.slane %v230, 6
  %v271 = vrot.slane %v231, 6
  %v274 = vadd.f32 %v268, %v270
  %v275 = vadd.f32 %v269, %v271
  %v276 = vadd.f32 %v274, %v232
  %v277 = vadd.f32 %v275, %v233
  %v278 = vmul.f32 %v276, 0.11111111
  %v279 = vmul.f32 %v277, 0.11111111
  %v280 = vld [vmem:[%s4] sm:$0xff]
  %v281 = vld [vmem:[%s4 + $0x8] sm:$0xff]
  %v282 = vld [vmem:[%s4 + $0x10] sm:$0xff]
  %v283 = vld [vmem:[%s4 + $0x18] sm:$0xff]
  %v284 = vld [vmem:[%s4 + $0x20] sm:$0xff]
  %v285 = vld [vmem:[%s4 + $0x28] sm:$0xff]
  %v286 = vld [vmem:[%s4 + $0x30] sm:$0xff]
  %v287 = vld [vmem:[%s4 + $0x38] sm:$0xff]
  %v288 = vld [vmem:[%s4 + $0x40] sm:$0xff]
  %v289 = vld [vmem:[%s4 + $0x48] sm:$0xff]
  %v290 = vld [vmem:[%s4 + $0x50] sm:$0xff]
  %v291 = vld [vmem:[%s4 + $0x58] sm:$0xff]
  %v292 = vld [vmem:[%s4 + $0x60] sm:$0xff]
  %v293 = vld [vmem:[%s4 + $0x68] sm:$0xff]
  %v294 = vld [vmem:[%s4 + $0x70] sm:$0xff]
  %v295 = vld [vmem:[%s4 + $0x78] sm:$0xff]
  %v296 = vld [vmem:[%s4 + $0x80] sm:$0xff]
  %v297 = vld [vmem:[%s4 + $0x88] sm:$0xff]
  %v298 = vld [vmem:[%s4 + $0x90] sm:$0xff]
  %v299 = vld [vmem:[%s4 + $0x98] sm:$0xff]
  %v300 = vld [vmem:[%s4 + $0xa0] sm:$0xff]
  %v301 = vld [vmem:[%s4 + $0xa8] sm:$0xff]
  %v302 = vld [vmem:[%s4 + $0xb0] sm:$0xff]
  %v303 = vld [vmem:[%s4 + $0xb8] sm:$0xff]
  %v304 = vld [vmem:[%s4 + $0xc0] sm:$0xff]
  %v305 = vld [vmem:[%s4 + $0xc8] sm:$0xff]
  %v306 = vld [vmem:[%s4 + $0xd0] sm:$0xff]
  %v307 = vld [vmem:[%s4 + $0xd8] sm:$0xff]
  %v308 = vld [vmem:[%s4 + $0xe0] sm:$0xff]
  %v309 = vld [vmem:[%s4 + $0xe8] sm:$0xff]
  %v310 = vld [vmem:[%s4 + $0xf0] sm:$0xff]
  %v311 = vld [vmem:[%s4 + $0xf8] sm:$0xff]
  %v312 = vld [vmem:[%s5] sm:$0x1]
  %v314 = vlaneseq
  %v315 = vshrl.u32 %v314, 7
  %v316 = vsub.s32 0, %v315
  %v317 = vrot.slane %v312, %v316
  %319 = vmatprep.subr.mxu0 0.0
  %320 = vmatpush1.msra.mxu0 %v280
  %321 = vmatprep.subr.mxu0 0.0
  %322 = vmatpush1.msra.mxu0 %v281
  %323 = vmatprep.subr.mxu0 0.0
  %324 = vmatpush1.msra.mxu0 %v282
  %325 = vmatprep.subr.mxu0 0.0
  %326 = vmatpush1.msra.mxu0 %v283
  %327 = vmatprep.subr.mxu0 0.0
  %328 = vmatpush1.msra.mxu0 %v284
  %329 = vmatprep.subr.mxu0 0.0
  %330 = vmatpush1.msra.mxu0 %v285
  %331 = vmatprep.subr.mxu0 0.0
  %332 = vmatpush1.msra.mxu0 %v286
  %333 = vmatprep.subr.mxu0 0.0
  %334 = vmatpush1.msra.mxu0 %v287
  %335 = vmatprep.subr.mxu0 0.0
  %336 = vmatpush1.msra.mxu0 %v288
  %337 = vmatprep.subr.mxu0 0.0
  %338 = vmatpush1.msra.mxu0 %v289
  %339 = vmatprep.subr.mxu0 0.0
  %340 = vmatpush1.msra.mxu0 %v290
  %341 = vmatprep.subr.mxu0 0.0
  %342 = vmatpush1.msra.mxu0 %v291
  %343 = vmatprep.subr.mxu0 0.0
  %344 = vmatpush1.msra.mxu0 %v292
  %345 = vmatprep.subr.mxu0 0.0
  %346 = vmatpush1.msra.mxu0 %v293
  %347 = vmatprep.subr.mxu0 0.0
  %348 = vmatpush1.msra.mxu0 %v294
  %349 = vmatprep.subr.mxu0 0.0
  %350 = vmatpush1.msra.mxu0 %v295
  %351 = vmatprep.subr.mxu0 0.0
  %352 = vmatpush1.msra.mxu0 %v296
  %353 = vmatprep.subr.mxu0 0.0
  %354 = vmatpush1.msra.mxu0 %v297
  %355 = vmatprep.subr.mxu0 0.0
  %356 = vmatpush1.msra.mxu0 %v298
  %357 = vmatprep.subr.mxu0 0.0
  %358 = vmatpush1.msra.mxu0 %v299
  %359 = vmatprep.subr.mxu0 0.0
  %360 = vmatpush1.msra.mxu0 %v300
  %361 = vmatprep.subr.mxu0 0.0
  %362 = vmatpush1.msra.mxu0 %v301
  %363 = vmatprep.subr.mxu0 0.0
  %364 = vmatpush1.msra.mxu0 %v302
  %365 = vmatprep.subr.mxu0 0.0
  %366 = vmatpush1.msra.mxu0 %v303
  %367 = vmatprep.subr.mxu0 0.0
  %368 = vmatpush1.msra.mxu0 %v304
  %369 = vmatprep.subr.mxu0 0.0
  %370 = vmatpush1.msra.mxu0 %v305
  %371 = vmatprep.subr.mxu0 0.0
  %372 = vmatpush1.msra.mxu0 %v306
  %373 = vmatprep.subr.mxu0 0.0
  %374 = vmatpush1.msra.mxu0 %v307
  %375 = vmatprep.subr.mxu0 0.0
  %376 = vmatpush1.msra.mxu0 %v308
  %377 = vmatprep.subr.mxu0 0.0
  %378 = vmatpush1.msra.mxu0 %v309
  %379 = vmatprep.subr.mxu0 0.0
  %380 = vmatpush1.msra.mxu0 %v310
  %381 = vmatprep.subr.mxu0 0.0
  %382 = vmatpush1.msra.mxu0 %v311
  %383 = vmatprep.mubr.f32.mxu0 %v279
  %384 = vmatmul.mubr.f32.gmra.mrb[0].mxu0 %v278
  %v385 = vpop.f32.mrb[0].mxu0
  %v386 = vadd.f32 %v317, %v385
  %v387 = vpop.f32.mrb[0].mxu0
  %388 = vdwg.mxu0
  %vm389 = vcmask 140288
  %390 = vst.msk [vmem:[%s6] sm:$0x3] %vm389, %v386
  // Predicated region
  $region26: #{spatial_transformer_forward.6} parent=0 // pred_check
    _
  $region27: #{spatial_transformer_forward.6} parent=0 // pred_check_branch
    %392 = sbr.rel (0) target = $region29
  $region28: #{spatial_transformer_forward.6} parent=0 // pred_region
    _
  $region29: #{spatial_transformer_forward.6} parent=0 // pred_fallthru
    _
  // Predicated region
  $region30: #{spatial_transformer_forward.6} parent=0 // pred_check
    _
  $region31: #{spatial_transformer_forward.6} parent=0 // pred_check_branch
    %394 = sbr.rel (0) target = $region33
  $region32: #{spatial_transformer_forward.6} parent=0 // pred_region
    _
  $region33: #{spatial_transformer_forward.6} parent=0 // pred_fallthru
    _

// kernel: spatial_transformer_forward.7
$region0: #{spatial_transformer_forward.7}
  #allocation0 [shape = 'u32[]', space=smem, size = 0x4, offset = 0x4, fixed_abs, tag = 'smem constant byte address 0x4 - core index']
  #allocation1 [shape = 'u32[144,128]{1,0:T(1,128)}', space=vmem, size = 0x12000, scoped, tag = 'internal scratch']
  %s0 = inlined_call_operand.vmem [shape: f32[2,2,9], index: 0, kind: input, shape index: {}]
  %s1 = inlined_call_operand.vmem [shape: f32[9,784], index: 1, kind: input, shape index: {}]
  %s2 = inlined_call_operand.vmem [shape: f32[2,784], index: 2, kind: input, shape index: {}]
  %s3 = inlined_call_operand.vmem [shape: f32[2,28,28], index: 3, kind: input, shape index: {}]
  %s4 = inlined_call_operand.vmem [shape: f32[2,784], index: 4, kind: output, shape index: {}]
  %s5 = sld [smem:[#allocation0]]
  $region26: #{spatial_transformer_forward.7} parent=0
    _
  %s7 = ssub.s32 1, %s5
  %s8 = scalar_select 0, %s7, %s5
  // Predicated region
  $region2: #{spatial_transformer_forward.7} parent=0 // pred_check
    _
  $region3: #{spatial_transformer_forward.7} parent=0 // pred_check_branch
    %10 = sbr.rel (0) target = $region5
  $region4: #{spatial_transformer_forward.7} parent=0 // pred_region
    _
  $region5: #{spatial_transformer_forward.7} parent=0 // pred_fallthru
    _
  // Predicated region
  $region6: #{spatial_transformer_forward.7} parent=0 // pred_check
    _
  $region7: #{spatial_transformer_forward.7} parent=0 // pred_check_branch
    %12 = sbr.rel (0) target = $region9
  $region8: #{spatial_transformer_forward.7} parent=0 // pred_region
    _
  $region9: #{spatial_transformer_forward.7} parent=0 // pred_fallthru
    _
  // Predicated region
  $region10: #{spatial_transformer_forward.7} parent=0 // pred_check
    _
  $region11: #{spatial_transformer_forward.7} parent=0 // pred_check_branch
    %14 = sbr.rel (0) target = $region13
  $region12: #{spatial_transformer_forward.7} parent=0 // pred_region
    _
  $region13: #{spatial_transformer_forward.7} parent=0 // pred_fallthru
    _
  // Predicated region
  $region14: #{spatial_transformer_forward.7} parent=0 // pred_check
    _
  $region15: #{spatial_transformer_forward.7} parent=0 // pred_check_branch
    %16 = sbr.rel (0) target = $region17
  $region16: #{spatial_transformer_forward.7} parent=0 // pred_region
    _
  $region17: #{spatial_transformer_forward.7} parent=0 // pred_fallthru
    _
  %v17 = vld [vmem:[%s1] sm:$0xff]
  %v18 = vld [vmem:[%s1 + $0x8] sm:$0xff]
  %v19 = vld [vmem:[%s1 + $0x10] sm:$0xff]
  %v20 = vld [vmem:[%s1 + $0x18] sm:$0xff]
  %v21 = vld [vmem:[%s1 + $0x20] sm:$0xff]
  %v22 = vld [vmem:[%s1 + $0x28] sm:$0xff]
  %v23 = vld [vmem:[%s1 + $0x30] sm:$0xff]
  %v24 = vld [vmem:[%s1 + $0x38] sm:$0x1]
  %v25 = vld [vmem:[%s1 + $0x40] sm:$0x1]
  %v26 = vld [vmem:[%s1 + $0x48] sm:$0x1]
  %v27 = vld [vmem:[%s1 + $0x50] sm:$0x1]
  %v28 = vld [vmem:[%s1 + $0x58] sm:$0x1]
  %v29 = vld [vmem:[%s1 + $0x60] sm:$0x1]
  %v30 = vld [vmem:[%s1 + $0x68] sm:$0x1]
  %v31 = vld [vmem:[%s2] sm:$0xff]
  %v32 = vld [vmem:[%s2 + $0x8] sm:$0x3f]
  %v33 = vlaneseq
  %v34 = vshrl.u32 %v33, 7
  %v35 = vadd.s32 %v34, 8
  %v36 = vadd.s32 %v34, 16
  %v37 = vadd.s32 %v34, 24
  %v38 = vcvt.s32.f32 %v34
  %v39 = vcvt.s32.f32 %v35
  %v40 = vcvt.s32.f32 %v36
  %v41 = vcvt.s32.f32 %v37
  %v42 = vld [vmem:[%s0] sm:$0x3]
  %vm43 = vcmask 72704
  %v45 = vsel %vm43, %v42, 0
  %vm47 = vcmask 1040384
  %v49 = vsel %vm47, %v24, 0
  %v52 = vsel %vm47, %v25, 0
  %v55 = vsel %vm47, %v26, 0
  %v58 = vsel %vm47, %v27, 0
  %v61 = vsel %vm47, %v28, 0
  %v64 = vsel %vm47, %v29, 0
  %v67 = vsel %vm47, %v30, 0
  %69 = vmatprep.subr.mxu0 %v18
  %70 = vmatpush1.msra.mxu0 %v17
  %71 = vmatprep.subr.mxu0 %v52
  %72 = vmatpush1.msra.mxu0 %v49
  %73 = vmatprep.subr.mxu0 0.0
  %74 = vmatpush1.msra.mxu0 0.0
  %75 = vmatprep.subr.mxu0 0.0
  %76 = vmatpush1.msra.mxu0 0.0
  %77 = vmatprep.subr.mxu0 0.0
  %78 = vmatpush1.msra.mxu0 0.0
  %79 = vmatprep.subr.mxu0 0.0
  %80 = vmatpush1.msra.mxu0 0.0
  %81 = vmatprep.subr.mxu0 0.0
  %82 = vmatpush1.msra.mxu0 0.0
  %83 = vmatprep.subr.mxu0 0.0
  %84 = vmatpush1.msra.mxu0 0.0
  %85 = vmatprep.subr.mxu0 0.0
  %86 = vmatpush1.msra.mxu0 0.0
  %87 = vmatprep.subr.mxu0 0.0
  %88 = vmatpush1.msra.mxu0 0.0
  %89 = vmatprep.subr.mxu0 0.0
  %90 = vmatpush1.msra.mxu0 0.0
  %91 = vmatprep.subr.mxu0 0.0
  %92 = vmatpush1.msra.mxu0 0.0
  %93 = vmatprep.subr.mxu0 0.0
  %94 = vmatpush1.msra.mxu0 0.0
  %95 = vmatprep.subr.mxu0 0.0
  %96 = vmatpush1.msra.mxu0 0.0
  %97 = vmatprep.subr.mxu0 0.0
  %98 = vmatpush1.msra.mxu0 0.0
  %99 = vmatprep.subr.mxu0 0.0
  %100 = vmatpush1.msra.mxu0 0.0
  %101 = vmatprep.subr.mxu0 0.0
  %102 = vmatpush1.msra.mxu0 0.0
  %103 = vmatprep.subr.mxu0 0.0
  %104 = vmatpush1.msra.mxu0 0.0
  %105 = vmatprep.subr.mxu0 0.0
  %106 = vmatpush1.msra.mxu0 0.0
  %107 = vmatprep.subr.mxu0 0.0
  %108 = vmatpush1.msra.mxu0 0.0
  %109 = vmatprep.subr.mxu0 0.0
  %110 = vmatpush1.msra.mxu0 0.0
  %111 = vmatprep.subr.mxu0 0.0
  %112 = vmatpush1.msra.mxu0 0.0
  %113 = vmatprep.subr.mxu0 0.0
  %114 = vmatpush1.msra.mxu0 0.0
  %115 = vmatprep.subr.mxu0 0.0
  %116 = vmatpush1.msra.mxu0 0.0
  %117 = vmatprep.subr.mxu0 0.0
  %118 = vmatpush1.msra.mxu0 0.0
  %119 = vmatprep.subr.mxu0 0.0
  %120 = vmatpush1.msra.mxu0 0.0
  %121 = vmatprep.subr.mxu0 0.0
  %122 = vmatpush1.msra.mxu0 0.0
  %123 = vmatprep.subr.mxu0 0.0
  %124 = vmatpush1.msra.mxu0 0.0
  %125 = vmatprep.subr.mxu0 0.0
  %126 = vmatpush1.msra.mxu0 0.0
  %127 = vmatprep.subr.mxu0 0.0
  %128 = vmatpush1.msra.mxu0 0.0
  %129 = vmatprep.subr.mxu0 0.0
  %130 = vmatpush1.msra.mxu0 0.0
  %131 = vmatprep.subr.mxu0 0.0
  %132 = vmatpush1.msra.mxu0 0.0
  %133 = vmatprep.mubr.f32.mxu0 0.0
  %134 = vmatmul.mubr.f32.gmra.mrb[0].mxu0 %v45
  %v135 = vpop.f32.mrb[0].mxu0
  %v136 = vadd.f32 0.0, %v135
  %v137 = vpop.f32.mrb[0].mxu0
  %v138 = vadd.f32 0.0, %v137
  %139 = vdwg.mxu0
  %140 = vmatprep.subr.mxu0 %v20
  %141 = vmatpush1.msra.mxu0 %v19
  %142 = vmatprep.subr.mxu0 %v58
  %143 = vmatpush1.msra.mxu0 %v55
  %144 = vmatprep.subr.mxu0 0.0
  %145 = vmatpush1.msra.mxu0 0.0
  %146 = vmatprep.subr.mxu0 0.0
  %147 = vmatpush1.msra.mxu0 0.0
  %148 = vmatprep.subr.mxu0 0.0
  %149 = vmatpush1.msra.mxu0 0.0
  %150 = vmatprep.subr.mxu0 0.0
  %151 = vmatpush1.msra.mxu0 0.0
  %152 = vmatprep.subr.mxu0 0.0
  %153 = vmatpush1.msra.mxu0 0.0
  %154 = vmatprep.subr.mxu0 0.0
  %155 = vmatpush1.msra.mxu0 0.0
  %156 = vmatprep.subr.mxu0 0.0
  %157 = vmatpush1.msra.mxu0 0.0
  %158 = vmatprep.subr.mxu0 0.0
  %159 = vmatpush1.msra.mxu0 0.0
  %160 = vmatprep.subr.mxu0 0.0
  %161 = vmatpush1.msra.mxu0 0.0
  %162 = vmatprep.subr.mxu0 0.0
  %163 = vmatpush1.msra.mxu0 0.0
  %164 = vmatprep.subr.mxu0 0.0
  %165 = vmatpush1.msra.mxu0 0.0
  %166 = vmatprep.subr.mxu0 0.0
  %167 = vmatpush1.msra.mxu0 0.0
  %168 = vmatprep.subr.mxu0 0.0
  %169 = vmatpush1.msra.mxu0 0.0
  %170 = vmatprep.subr.mxu0 0.0
  %171 = vmatpush1.msra.mxu0 0.0
  %172 = vmatprep.subr.mxu0 0.0
  %173 = vmatpush1.msra.mxu0 0.0
  %174 = vmatprep.subr.mxu0 0.0
  %175 = vmatpush1.msra.mxu0 0.0
  %176 = vmatprep.subr.mxu0 0.0
  %177 = vmatpush1.msra.mxu0 0.0
  %178 = vmatprep.subr.mxu0 0.0
  %179 = vmatpush1.msra.mxu0 0.0
  %180 = vmatprep.subr.mxu0 0.0
  %181 = vmatpush1.msra.mxu0 0.0
  %182 = vmatprep.subr.mxu0 0.0
  %183 = vmatpush1.msra.mxu0 0.0
  %184 = vmatprep.subr.mxu0 0.0
  %185 = vmatpush1.msra.mxu0 0.0
  %186 = vmatprep.subr.mxu0 0.0
  %187 = vmatpush1.msra.mxu0 0.0
  %188 = vmatprep.subr.mxu0 0.0
  %189 = vmatpush1.msra.mxu0 0.0
  %190 = vmatprep.subr.mxu0 0.0
  %191 = vmatpush1.msra.mxu0 0.0
  %192 = vmatprep.subr.mxu0 0.0
  %193 = vmatpush1.msra.mxu0 0.0
  %194 = vmatprep.subr.mxu0 0.0
  %195 = vmatpush1.msra.mxu0 0.0
  %196 = vmatprep.subr.mxu0 0.0
  %197 = vmatpush1.msra.mxu0 0.0
  %198 = vmatprep.subr.mxu0 0.0
  %199 = vmatpush1.msra.mxu0 0.0
  %200 = vmatprep.subr.mxu0 0.0
  %201 = vmatpush1.msra.mxu0 0.0
  %202 = vmatprep.subr.mxu0 0.0
  %203 = vmatpush1.msra.mxu0 0.0
  %204 = vmatprep.mubr.f32.mxu0 0.0
  %205 = vmatmul.mubr.f32.gmra.mrb[0].mxu0 %v45
  %v206 = vpop.f32.mrb[0].mxu0
  %v207 = vadd.f32 0.0, %v206
  %v208 = vpop.f32.mrb[0].mxu0
  %v209 = vadd.f32 0.0, %v208
  %210 = vdwg.mxu0
  %211 = vmatprep.subr.mxu0 %v22
  %212 = vmatpush1.msra.mxu0 %v21
  %213 = vmatprep.subr.mxu0 %v64
  %214 = vmatpush1.msra.mxu0 %v61
  %215 = vmatprep.subr.mxu0 0.0
  %216 = vmatpush1.msra.mxu0 0.0
  %217 = vmatprep.subr.mxu0 0.0
  %218 = vmatpush1.msra.mxu0 0.0
  %219 = vmatprep.subr.mxu0 0.0
  %220 = vmatpush1.msra.mxu0 0.0
  %221 = vmatprep.subr.mxu0 0.0
  %222 = vmatpush1.msra.mxu0 0.0
  %223 = vmatprep.subr.mxu0 0.0
  %224 = vmatpush1.msra.mxu0 0.0
  %225 = vmatprep.subr.mxu0 0.0
  %226 = vmatpush1.msra.mxu0 0.0
  %227 = vmatprep.subr.mxu0 0.0
  %228 = vmatpush1.msra.mxu0 0.0
  %229 = vmatprep.subr.mxu0 0.0
  %230 = vmatpush1.msra.mxu0 0.0
  %231 = vmatprep.subr.mxu0 0.0
  %232 = vmatpush1.msra.mxu0 0.0
  %233 = vmatprep.subr.mxu0 0.0
  %234 = vmatpush1.msra.mxu0 0.0
  %235 = vmatprep.subr.mxu0 0.0
  %236 = vmatpush1.msra.mxu0 0.0
  %237 = vmatprep.subr.mxu0 0.0
  %238 = vmatpush1.msra.mxu0 0.0
  %239 = vmatprep.subr.mxu0 0.0
  %240 = vmatpush1.msra.mxu0 0.0
  %241 = vmatprep.subr.mxu0 0.0
  %242 = vmatpush1.msra.mxu0 0.0
  %243 = vmatprep.subr.mxu0 0.0
  %244 = vmatpush1.msra.mxu0 0.0
  %245 = vmatprep.subr.mxu0 0.0
  %246 = vmatpush1.msra.mxu0 0.0
  %247 = vmatprep.subr.mxu0 0.0
  %248 = vmatpush1.msra.mxu0 0.0
  %249 = vmatprep.subr.mxu0 0.0
  %250 = vmatpush1.msra.mxu0 0.0
  %251 = vmatprep.subr.mxu0 0.0
  %252 = vmatpush1.msra.mxu0 0.0
  %253 = vmatprep.subr.mxu0 0.0
  %254 = vmatpush1.msra.mxu0 0.0
  %255 = vmatprep.subr.mxu0 0.0
  %256 = vmatpush1.msra.mxu0 0.0
  %257 = vmatprep.subr.mxu0 0.0
  %258 = vmatpush1.msra.mxu0 0.0
  %259 = vmatprep.subr.mxu0 0.0
  %260 = vmatpush1.msra.mxu0 0.0
  %261 = vmatprep.subr.mxu0 0.0
  %262 = vmatpush1.msra.mxu0 0.0
  %263 = vmatprep.subr.mxu0 0.0
  %264 = vmatpush1.msra.mxu0 0.0
  %265 = vmatprep.subr.mxu0 0.0
  %266 = vmatpush1.msra.mxu0 0.0
  %267 = vmatprep.subr.mxu0 0.0
  %268 = vmatpush1.msra.mxu0 0.0
  %269 = vmatprep.subr.mxu0 0.0
  %270 = vmatpush1.msra.mxu0 0.0
  %271 = vmatprep.subr.mxu0 0.0
  %272 = vmatpush1.msra.mxu0 0.0
  %273 = vmatprep.subr.mxu0 0.0
  %274 = vmatpush1.msra.mxu0 0.0
  %275 = vmatprep.mubr.f32.mxu0 0.0
  %276 = vmatmul.mubr.f32.gmra.mrb[0].mxu0 %v45
  %v277 = vpop.f32.mrb[0].mxu0
  %v278 = vadd.f32 0.0, %v277
  %v279 = vpop.f32.mrb[0].mxu0
  %v280 = vadd.f32 0.0, %v279
  %281 = vdwg.mxu0
  %282 = vmatprep.subr.mxu0 0.0
  %283 = vmatpush1.msra.mxu0 %v23
  %284 = vmatprep.subr.mxu0 0.0
  %285 = vmatpush1.msra.mxu0 %v67
  %286 = vmatprep.subr.mxu0 0.0
  %287 = vmatpush1.msra.mxu0 0.0
  %288 = vmatprep.subr.mxu0 0.0
  %289 = vmatpush1.msra.mxu0 0.0
  %290 = vmatprep.subr.mxu0 0.0
  %291 = vmatpush1.msra.mxu0 0.0
  %292 = vmatprep.subr.mxu0 0.0
  %293 = vmatpush1.msra.mxu0 0.0
  %294 = vmatprep.subr.mxu0 0.0
  %295 = vmatpush1.msra.mxu0 0.0
  %296 = vmatprep.subr.mxu0 0.0
  %297 = vmatpush1.msra.mxu0 0.0
  %298 = vmatprep.subr.mxu0 0.0
  %299 = vmatpush1.msra.mxu0 0.0
  %300 = vmatprep.subr.mxu0 0.0
  %301 = vmatpush1.msra.mxu0 0.0
  %302 = vmatprep.subr.mxu0 0.0
  %303 = vmatpush1.msra.mxu0 0.0
  %304 = vmatprep.subr.mxu0 0.0
  %305 = vmatpush1.msra.mxu0 0.0
  %306 = vmatprep.subr.mxu0 0.0
  %307 = vmatpush1.msra.mxu0 0.0
  %308 = vmatprep.subr.mxu0 0.0
  %309 = vmatpush1.msra.mxu0 0.0
  %310 = vmatprep.subr.mxu0 0.0
  %311 = vmatpush1.msra.mxu0 0.0
  %312 = vmatprep.subr.mxu0 0.0
  %313 = vmatpush1.msra.mxu0 0.0
  %314 = vmatprep.subr.mxu0 0.0
  %315 = vmatpush1.msra.mxu0 0.0
  %316 = vmatprep.subr.mxu0 0.0
  %317 = vmatpush1.msra.mxu0 0.0
  %318 = vmatprep.subr.mxu0 0.0
  %319 = vmatpush1.msra.mxu0 0.0
  %320 = vmatprep.subr.mxu0 0.0
  %321 = vmatpush1.msra.mxu0 0.0
  %322 = vmatprep.subr.mxu0 0.0
  %323 = vmatpush1.msra.mxu0 0.0
  %324 = vmatprep.subr.mxu0 0.0
  %325 = vmatpush1.msra.mxu0 0.0
  %326 = vmatprep.subr.mxu0 0.0
  %327 = vmatpush1.msra.mxu0 0.0
  %328 = vmatprep.subr.mxu0 0.0
  %329 = vmatpush1.msra.mxu0 0.0
  %330 = vmatprep.subr.mxu0 0.0
  %331 = vmatpush1.msra.mxu0 0.0
  %332 = vmatprep.subr.mxu0 0.0
  %333 = vmatpush1.msra.mxu0 0.0
  %334 = vmatprep.subr.mxu0 0.0
  %335 = vmatpush1.msra.mxu0 0.0
  %336 = vmatprep.subr.mxu0 0.0
  %337 = vmatpush1.msra.mxu0 0.0
  %338 = vmatprep.subr.mxu0 0.0
  %339 = vmatpush1.msra.mxu0 0.0
  %340 = vmatprep.subr.mxu0 0.0
  %341 = vmatpush1.msra.mxu0 0.0
  %342 = vmatprep.subr.mxu0 0.0
  %343 = vmatpush1.msra.mxu0 0.0
  %344 = vmatprep.subr.mxu0 0.0
  %345 = vmatpush1.msra.mxu0 0.0
  %346 = vmatprep.mubr.f32.mxu0 0.0
  %347 = vmatmul.mubr.f32.gmra.mrb[0].mxu0 %v45
  %v348 = vpop.f32.mrb[0].mxu0
  %v349 = vadd.f32 0.0, %v348
  %v350 = vpop.f32.mrb[0].mxu0
  %351 = vdwg.mxu0
  %v359 = vcombine.low %v136, %v138
  %v360 = vcombine.low %v207, %v209
  %v362 = vunpack.c.l.s4 1983009808
  %v363 = vunpack.c.0.s8 %v362
  %v364 = vlaneseq
  %v365 = vshrl.u32 %v364, 7
  %v366 = vsub.s32 %v363, %v365
  %v367 = vrot.slane %v359, %v366
  %v369 = vunpack.c.l.s4 1983009808
  %v370 = vunpack.c.0.s8 %v369
  %v371 = vlaneseq
  %v372 = vshrl.u32 %v371, 7
  %v373 = vsub.s32 %v370, %v372
  %v374 = vrot.slane %v360, %v373
  %v375 = vcombine.low %v367, %v374
  %v376 = vcombine.low %v278, %v280
  %v378 = vunpack.c.l.s4 1983009808
  %v379 = vunpack.c.0.s8 %v378
  %v380 = vlaneseq
  %v381 = vshrl.u32 %v380, 7
  %v382 = vsub.s32 %v379, %v381
  %v383 = vrot.slane %v376, %v382
  %v385 = vunpack.c.l.s4 1983009808
  %v386 = vunpack.c.0.s8 %v385
  %v387 = vlaneseq
  %v388 = vshrl.u32 %v387, 7
  %v389 = vsub.s32 %v386, %v388
  %v390 = vrot.slane %v349, %v389
  %v391 = vcombine.low %v383, %v390
  %v394 = vadd.f32 %v31, %v375
  %v395 = vadd.f32 %v32, %v391
  %v396 = vadd.f32 %v394, 1.0
  %v397 = vadd.f32 %v395, 1.0
  %v398 = vmul.f32 %v396, 13.5
  %v399 = vmul.f32 %v397, 13.5
  %v402 = vlaneseq
  %v403 = vshrl.u32 %v402, 7
  %v404 = vsub.s32 0, %v403
  %v405 = vrot.slane %v398, %v404
  %v406 = vlaneseq
  %v407 = vshrl.u32 %v406, 7
  %v408 = vsub.s32 2, %v407
  %v409 = vrot.slane %v398, %v408
  %v410 = vlaneseq
  %v411 = vshrl.u32 %v410, 7
  %v412 = vsub.s32 4, %v411
  %v413 = vrot.slane %v398, %v412
  %v414 = vlaneseq
  %v415 = vshrl.u32 %v414, 7
  %v416 = vsub.s32 6, %v415
  %v417 = vrot.slane %v398, %v416
  %v418 = vlaneseq
  %v419 = vshrl.u32 %v418, 7
  %v420 = vsub.s32 0, %v419
  %v421 = vrot.slane %v399, %v420
  %v422 = vlaneseq
  %v423 = vshrl.u32 %v422, 7
  %v424 = vsub.s32 2, %v423
  %v425 = vrot.slane %v399, %v424
  %v426 = vlaneseq
  %v427 = vshrl.u32 %v426, 7
  %v428 = vsub.s32 4, %v427
  %v429 = vrot.slane %v399, %v428
  %v437 = vlaneseq
  %v438 = vshrl.u32 %v437, 7
  %v439 = vsub.s32 0, %v438
  %v440 = vrot.slane %v405, %v439
  %v441 = vlaneseq
  %v442 = vshrl.u32 %v441, 7
  %v443 = vsub.s32 0, %v442
  %v444 = vrot.slane %v409, %v443
  %v445 = vlaneseq
  %v446 = vshrl.u32 %v445, 7
  %v447 = vsub.s32 0, %v446
  %v448 = vrot.slane %v413, %v447
  %v449 = vlaneseq
  %v450 = vshrl.u32 %v449, 7
  %v451 = vsub.s32 0, %v450
  %v452 = vrot.slane %v417, %v451
  %v453 = vlaneseq
  %v454 = vshrl.u32 %v453, 7
  %v455 = vsub.s32 0, %v454
  %v456 = vrot.slane %v421, %v455
  %v457 = vlaneseq
  %v458 = vshrl.u32 %v457, 7
  %v459 = vsub.s32 0, %v458
  %v460 = vrot.slane %v425, %v459
  %v461 = vlaneseq
  %v462 = vshrl.u32 %v461, 7
  %v463 = vsub.s32 0, %v462
  %v464 = vrot.slane %v429, %v463
  %v465 = vsub.f32 %v38, %v440
  %v466 = vsub.f32 %v38, %v444
  %v467 = vsub.f32 %v38, %v448
  %v468 = vsub.f32 %v38, %v452
  %v469 = vsub.f32 %v38, %v456
  %v470 = vsub.f32 %v38, %v460
  %v471 = vsub.f32 %v38, %v464
  %v472 = vsub.f32 %v39, %v440
  %v473 = vsub.f32 %v39, %v444
  %v474 = vsub.f32 %v39, %v448
  %v475 = vsub.f32 %v39, %v452
  %v476 = vsub.f32 %v39, %v456
  %v477 = vsub.f32 %v39, %v460
  %v478 = vsub.f32 %v39, %v464
  %v479 = vsub.f32 %v40, %v440
  %v480 = vsub.f32 %v40, %v444
  %v481 = vsub.f32 %v40, %v448
  %v482 = vsub.f32 %v40, %v452
  %v483 = vsub.f32 %v40, %v456
  %v484 = vsub.f32 %v40, %v460
  %v485 = vsub.f32 %v40, %v464
  %v486 = vsub.f32 %v41, %v440
  %v487 = vsub.f32 %v41, %v444
  %v488 = vsub.f32 %v41, %v448
  %v489 = vsub.f32 %v41, %v452
  %v490 = vsub.f32 %v41, %v456
  %v491 = vsub.f32 %v41, %v460
  %v492 = vsub.f32 %v41, %v464
  %v493 = vand.u32 2147483647, %v465
  %v494 = vand.u32 2147483647, %v466
  %v495 = vand.u32 2147483647, %v467
  %v496 = vand.u32 2147483647, %v468
  %v497 = vand.u32 2147483647, %v469
  %v498 = vand.u32 2147483647, %v470
  %v499 = vand.u32 2147483647, %v471
  %v500 = vand.u32 2147483647, %v472
  %v501 = vand.u32 2147483647, %v473
  %v502 = vand.u32 2147483647, %v474
  %v503 = vand.u32 2147483647, %v475
  %v504 = vand.u32 2147483647, %v476
  %v505 = vand.u32 2147483647, %v477
  %v506 = vand.u32 2147483647, %v478
  %v507 = vand.u32 2147483647, %v479
  %v508 = vand.u32 2147483647, %v480
  %v509 = vand.u32 2147483647, %v481
  %v510 = vand.u32 2147483647, %v482
  %v511 = vand.u32 2147483647, %v483
  %v512 = vand.u32 2147483647, %v484
  %v513 = vand.u32 2147483647, %v485
  %v514 = vand.u32 2147483647, %v486
  %v515 = vand.u32 2147483647, %v487
  %v516 = vand.u32 2147483647, %v488
  %v517 = vand.u32 2147483647, %v489
  %v518 = vand.u32 2147483647, %v490
  %v519 = vand.u32 2147483647, %v491
  %v520 = vand.u32 2147483647, %v492
  %v521 = vsub.f32 1.0, %v493
  %v522 = vsub.f32 1.0, %v494
  %v523 = vsub.f32 1.0, %v495
  %v524 = vsub.f32 1.0, %v496
  %v525 = vsub.f32 1.0, %v497
  %v526 = vsub.f32 1.0, %v498
  %v527 = vsub.f32 1.0, %v499
  %v528 = vsub.f32 1.0, %v500
  %v529 = vsub.f32 1.0, %v501
  %v530 = vsub.f32 1.0, %v502
  %v531 = vsub.f32 1.0, %v503
  %v532 = vsub.f32 1.0, %v504
  %v533 = vsub.f32 1.0, %v505
  %v534 = vsub.f32 1.0, %v506
  %v535 = vsub.f32 1.0, %v507
  %v536 = vsub.f32 1.0, %v508
  %v537 = vsub.f32 1.0, %v509
  %v538 = vsub.f32 1.0, %v510
  %v539 = vsub.f32 1.0, %v511
  %v540 = vsub.f32 1.0, %v512
  %v541 = vsub.f32 1.0, %v513
  %v542 = vsub.f32 1.0, %v514
  %v543 = vsub.f32 1.0, %v515
  %v544 = vsub.f32 1.0, %v516
  %v545 = vsub.f32 1.0, %v517
  %v546 = vsub.f32 1.0, %v518
  %v547 = vsub.f32 1.0, %v519
  %v548 = vsub.f32 1.0, %v520
  %v549 = vmax.f32 %v521, 0.0
  %v550 = vmax.f32 %v522, 0.0
  %v551 = vmax.f32 %v523, 0.0
  %v552 = vmax.f32 %v524, 0.0
  %v553 = vmax.f32 %v525, 0.0
  %v554 = vmax.f32 %v526, 0.0
  %v555 = vmax.f32 %v527, 0.0
  %v556 = vmax.f32 %v528, 0.0
  %v557 = vmax.f32 %v529, 0.0
  %v558 = vmax.f32 %v530, 0.0
  %v559 = vmax.f32 %v531, 0.0
  %v560 = vmax.f32 %v532, 0.0
  %v561 = vmax.f32 %v533, 0.0
  %v562 = vmax.f32 %v534, 0.0
  %v563 = vmax.f32 %v535, 0.0
  %v564 = vmax.f32 %v536, 0.0
  %v565 = vmax.f32 %v537, 0.0
  %v566 = vmax.f32 %v538, 0.0
  %v567 = vmax.f32 %v539, 0.0
  %v568 = vmax.f32 %v540, 0.0
  %v569 = vmax.f32 %v541, 0.0
  %v570 = vmax.f32 %v542, 0.0
  %v571 = vmax.f32 %v543, 0.0
  %v572 = vmax.f32 %v544, 0.0
  %v573 = vmax.f32 %v545, 0.0
  %v574 = vmax.f32 %v546, 0.0
  %v575 = vmax.f32 %v547, 0.0
  %v576 = vmax.f32 %v548, 0.0
  %v577 = vlaneseq
  %v578 = vshrl.u32 %v577, 7
  %v579 = vsub.s32 1, %v578
  %v580 = vrot.slane %v398, %v579
  %v581 = vlaneseq
  %v582 = vshrl.u32 %v581, 7
  %v583 = vsub.s32 3, %v582
  %v584 = vrot.slane %v398, %v583
  %v585 = vlaneseq
  %v586 = vshrl.u32 %v585, 7
  %v587 = vsub.s32 5, %v586
  %v588 = vrot.slane %v398, %v587
  %v589 = vlaneseq
  %v590 = vshrl.u32 %v589, 7
  %v591 = vsub.s32 7, %v590
  %v592 = vrot.slane %v398, %v591
  %v593 = vlaneseq
  %v594 = vshrl.u32 %v593, 7
  %v595 = vsub.s32 1, %v594
  %v596 = vrot.slane %v399, %v595
  %v597 = vlaneseq
  %v598 = vshrl.u32 %v597, 7
  %v599 = vsub.s32 3, %v598
  %v600 = vrot.slane %v399, %v599
  %v601 = vlaneseq
  %v602 = vshrl.u32 %v601, 7
  %v603 = vsub.s32 5, %v602
  %v604 = vrot.slane %v399, %v603
  %v612 = vlaneseq
  %v613 = vshrl.u32 %v612, 7
  %v614 = vsub.s32 1, %v613
  %v615 = vrot.slane %v580, %v614
  %v616 = vlaneseq
  %v617 = vshrl.u32 %v616, 7
  %v618 = vsub.s32 1, %v617
  %v619 = vrot.slane %v584, %v618
  %v620 = vlaneseq
  %v621 = vshrl.u32 %v620, 7
  %v622 = vsub.s32 1, %v621
  %v623 = vrot.slane %v588, %v622
  %v624 = vlaneseq
  %v625 = vshrl.u32 %v624, 7
  %v626 = vsub.s32 1, %v625
  %v627 = vrot.slane %v592, %v626
  %v628 = vlaneseq
  %v629 = vshrl.u32 %v628, 7
  %v630 = vsub.s32 1, %v629
  %v631 = vrot.slane %v596, %v630
  %v632 = vlaneseq
  %v633 = vshrl.u32 %v632, 7
  %v634 = vsub.s32 1, %v633
  %v635 = vrot.slane %v600, %v634
  %v636 = vlaneseq
  %v637 = vshrl.u32 %v636, 7
  %v638 = vsub.s32 1, %v637
  %v639 = vrot.slane %v604, %v638
  %v640 = vsub.f32 %v38, %v615
  %v641 = vsub.f32 %v38, %v619
  %v642 = vsub.f32 %v38, %v623
  %v643 = vsub.f32 %v38, %v627
  %v644 = vsub.f32 %v38, %v631
  %v645 = vsub.f32 %v38, %v635
  %v646 = vsub.f32 %v38, %v639
  %v647 = vsub.f32 %v39, %v615
  %v648 = vsub.f32 %v39, %v619
  %v649 = vsub.f32 %v39, %v623
  %v650 = vsub.f32 %v39, %v627
  %v651 = vsub.f32 %v39, %v631
  %v652 = vsub.f32 %v39, %v635
  %v653 = vsub.f32 %v39, %v639
  %v654 = vsub.f32 %v40, %v615
  %v655 = vsub.f32 %v40, %v619
  %v656 = vsub.f32 %v40, %v623
  %v657 = vsub.f32 %v40, %v627
  %v658 = vsub.f32 %v40, %v631
  %v659 = vsub.f32 %v40, %v635
  %v660 = vsub.f32 %v40, %v639
  %v661 = vsub.f32 %v41, %v615
  %v662 = vsub.f32 %v41, %v619
  %v663 = vsub.f32 %v41, %v623
  %v664 = vsub.f32 %v41, %v627
  %v665 = vsub.f32 %v41, %v631
  %v666 = vsub.f32 %v41, %v635
  %v667 = vsub.f32 %v41, %v639
  %v668 = vand.u32 2147483647, %v640
  %v669 = vand.u32 2147483647, %v641
  %v670 = vand.u32 2147483647, %v642
  %v671 = vand.u32 2147483647, %v643
  %v672 = vand.u32 2147483647, %v644
  %v673 = vand.u32 2147483647, %v645
  %v674 = vand.u32 2147483647, %v646
  %v675 = vand.u32 2147483647, %v647
  %v676 = vand.u32 2147483647, %v648
  %v677 = vand.u32 2147483647, %v649
  %v678 = vand.u32 2147483647, %v650
  %v679 = vand.u32 2147483647, %v651
  %v680 = vand.u32 2147483647, %v652
  %v681 = vand.u32 2147483647, %v653
  %v682 = vand.u32 2147483647, %v654
  %v683 = vand.u32 2147483647, %v655
  %v684 = vand.u32 2147483647, %v656
  %v685 = vand.u32 2147483647, %v657
  %v686 = vand.u32 2147483647, %v658
  %v687 = vand.u32 2147483647, %v659
  %v688 = vand.u32 2147483647, %v660
  %v689 = vand.u32 2147483647, %v661
  %v690 = vand.u32 2147483647, %v662
  %v691 = vand.u32 2147483647, %v663
  %v692 = vand.u32 2147483647, %v664
  %v693 = vand.u32 2147483647, %v665
  %v694 = vand.u32 2147483647, %v666
  %v695 = vand.u32 2147483647, %v667
  %v696 = vsub.f32 1.0, %v668
  %v697 = vsub.f32 1.0, %v669
  %v698 = vsub.f32 1.0, %v670
  %v699 = vsub.f32 1.0, %v671
  %v700 = vsub.f32 1.0, %v672
  %v701 = vsub.f32 1.0, %v673
  %v702 = vsub.f32 1.0, %v674
  %v703 = vsub.f32 1.0, %v675
  %v704 = vsub.f32 1.0, %v676
  %v705 = vsub.f32 1.0, %v677
  %v706 = vsub.f32 1.0, %v678
  %v707 = vsub.f32 1.0, %v679
  %v708 = vsub.f32 1.0, %v680
  %v709 = vsub.f32 1.0, %v681
  %v710 = vsub.f32 1.0, %v682
  %v711 = vsub.f32 1.0, %v683
  %v712 = vsub.f32 1.0, %v684
  %v713 = vsub.f32 1.0, %v685
  %v714 = vsub.f32 1.0, %v686
  %v715 = vsub.f32 1.0, %v687
  %v716 = vsub.f32 1.0, %v688
  %v717 = vsub.f32 1.0, %v689
  %v718 = vsub.f32 1.0, %v690
  %v719 = vsub.f32 1.0, %v691
  %v720 = vsub.f32 1.0, %v692
  %v721 = vsub.f32 1.0, %v693
  %v722 = vsub.f32 1.0, %v694
  %v723 = vsub.f32 1.0, %v695
  %v724 = vmax.f32 %v696, 0.0
  %v725 = vmax.f32 %v697, 0.0
  %v726 = vmax.f32 %v698, 0.0
  %v727 = vmax.f32 %v699, 0.0
  %v728 = vmax.f32 %v700, 0.0
  %v729 = vmax.f32 %v701, 0.0
  %v730 = vmax.f32 %v702, 0.0
  %v731 = vmax.f32 %v703, 0.0
  %v732 = vmax.f32 %v704, 0.0
  %v733 = vmax.f32 %v705, 0.0
  %v734 = vmax.f32 %v706, 0.0
  %v735 = vmax.f32 %v707, 0.0
  %v736 = vmax.f32 %v708, 0.0
  %v737 = vmax.f32 %v709, 0.0
  %v738 = vmax.f32 %v710, 0.0
  %v739 = vmax.f32 %v711, 0.0
  %v740 = vmax.f32 %v712, 0.0
  %v741 = vmax.f32 %v713, 0.0
  %v742 = vmax.f32 %v714, 0.0
  %v743 = vmax.f32 %v715, 0.0
  %v744 = vmax.f32 %v716, 0.0
  %v745 = vmax.f32 %v717, 0.0
  %v746 = vmax.f32 %v718, 0.0
  %v747 = vmax.f32 %v719, 0.0
  %v748 = vmax.f32 %v720, 0.0
  %v749 = vmax.f32 %v721, 0.0
  %v750 = vmax.f32 %v722, 0.0
  %v751 = vmax.f32 %v723, 0.0
  %v752 = vld [vmem:[%s3] sm:$0xff]
  %v753 = vld [vmem:[%s3 + $0x8] sm:$0xff]
  %v754 = vld [vmem:[%s3 + $0x10] sm:$0xff]
  %v755 = vld [vmem:[%s3 + $0x18] sm:$0xf]
  %vm756 = vcmask 228352
  %v758 = vsel %vm756, %v752, 0
  %v761 = vsel %vm756, %v753, 0
  %v764 = vsel %vm756, %v754, 0
  %v767 = vsel %vm756, %v755, 0
  %vm769 = vcmask 1043456
  %v771 = vsel %vm769, %v570, 0
  %v774 = vsel %vm769, %v571, 0
  %v777 = vsel %vm769, %v572, 0
  %v780 = vsel %vm769, %v573, 0
  %v783 = vsel %vm769, %v574, 0
  %v786 = vsel %vm769, %v575, 0
  %v789 = vsel %vm769, %v576, 0
  %791 = vmatprep.subr.mxu0 %v550
  %792 = vmatpush1.msra.mxu0 %v549
  %793 = vmatprep.subr.mxu0 %v557
  %794 = vmatpush1.msra.mxu0 %v556
  %795 = vmatprep.subr.mxu0 %v564
  %796 = vmatpush1.msra.mxu0 %v563
  %797 = vmatprep.subr.mxu0 %v774
  %798 = vmatpush1.msra.mxu0 %v771
  %799 = vmatprep.subr.mxu0 0.0
  %800 = vmatpush1.msra.mxu0 0.0
  %801 = vmatprep.subr.mxu0 0.0
  %802 = vmatpush1.msra.mxu0 0.0
  %803 = vmatprep.subr.mxu0 0.0
  %804 = vmatpush1.msra.mxu0 0.0
  %805 = vmatprep.subr.mxu0 0.0
  %806 = vmatpush1.msra.mxu0 0.0
  %807 = vmatprep.subr.mxu0 0.0
  %808 = vmatpush1.msra.mxu0 0.0
  %809 = vmatprep.subr.mxu0 0.0
  %810 = vmatpush1.msra.mxu0 0.0
  %811 = vmatprep.subr.mxu0 0.0
  %812 = vmatpush1.msra.mxu0 0.0
  %813 = vmatprep.subr.mxu0 0.0
  %814 = vmatpush1.msra.mxu0 0.0
  %815 = vmatprep.subr.mxu0 0.0
  %816 = vmatpush1.msra.mxu0 0.0
  %817 = vmatprep.subr.mxu0 0.0
  %818 = vmatpush1.msra.mxu0 0.0
  %819 = vmatprep.subr.mxu0 0.0
  %820 = vmatpush1.msra.mxu0 0.0
  %821 = vmatprep.subr.mxu0 0.0
  %822 = vmatpush1.msra.mxu0 0.0
  %823 = vmatprep.subr.mxu0 0.0
  %824 = vmatpush1.msra.mxu0 0.0
  %825 = vmatprep.subr.mxu0 0.0
  %826 = vmatpush1.msra.mxu0 0.0
  %827 = vmatprep.subr.mxu0 0.0
  %828 = vmatpush1.msra.mxu0 0.0
  %829 = vmatprep.subr.mxu0 0.0
  %830 = vmatpush1.msra.mxu0 0.0
  %831 = vmatprep.subr.mxu0 0.0
  %832 = vmatpush1.msra.mxu0 0.0
  %833 = vmatprep.subr.mxu0 0.0
  %834 = vmatpush1.msra.mxu0 0.0
  %835 = vmatprep.subr.mxu0 0.0
  %836 = vmatpush1.msra.mxu0 0.0
  %837 = vmatprep.subr.mxu0 0.0
  %838 = vmatpush1.msra.mxu0 0.0
  %839 = vmatprep.subr.mxu0 0.0
  %840 = vmatpush1.msra.mxu0 0.0
  %841 = vmatprep.subr.mxu0 0.0
  %842 = vmatpush1.msra.mxu0 0.0
  %843 = vmatprep.subr.mxu0 0.0
  %844 = vmatpush1.msra.mxu0 0.0
  %845 = vmatprep.subr.mxu0 0.0
  %846 = vmatpush1.msra.mxu0 0.0
  %847 = vmatprep.subr.mxu0 0.0
  %848 = vmatpush1.msra.mxu0 0.0
  %849 = vmatprep.subr.mxu0 0.0
  %850 = vmatpush1.msra.mxu0 0.0
  %851 = vmatprep.subr.mxu0 0.0
  %852 = vmatpush1.msra.mxu0 0.0
  %853 = vmatprep.subr.mxu0 0.0
  %854 = vmatpush1.msra.mxu0 0.0
  %855 = vmatprep.mubr.f32.mxu0 0.0
  %856 = vmatmul.mubr.f32.gmra.mrb[0].mxu0 %v758
  %v857 = vpop.f32.mrb[0].mxu0
  %v858 = vadd.f32 0.0, %v857
  %v859 = vpop.f32.mrb[0].mxu0
  %v860 = vadd.f32 0.0, %v859
  %861 = vmatprep.mubr.f32.mxu0 0.0
  %862 = vmatmul.mubr.f32.gmra.mrb[0].mxu0 %v761
  %v863 = vpop.f32.mrb[0].mxu0
  %v864 = vadd.f32 0.0, %v863
  %v865 = vpop.f32.mrb[0].mxu0
  %v866 = vadd.f32 0.0, %v865
  %867 = vmatprep.mubr.f32.mxu0 0.0
  %868 = vmatmul.mubr.f32.gmra.mrb[0].mxu0 %v764
  %v869 = vpop.f32.mrb[0].mxu0
  %v870 = vadd.f32 0.0, %v869
  %v871 = vpop.f32.mrb[0].mxu0
  %v872 = vadd.f32 0.0, %v871
  %873 = vmatprep.mubr.f32.mxu0 0.0
  %874 = vmatmul.mubr.f32.gmra.mrb[0].mxu0 %v767
  %v875 = vpop.f32.mrb[0].mxu0
  %v876 = vadd.f32 0.0, %v875
  %v877 = vpop.f32.mrb[0].mxu0
  %v878 = vadd.f32 0.0, %v877
  %879 = vdwg.mxu0
  %880 = vmatprep.subr.mxu0 %v552
  %881 = vmatpush1.msra.mxu0 %v551
  %882 = vmatprep.subr.mxu0 %v559
  %883 = vmatpush1.msra.mxu0 %v558
  %884 = vmatprep.subr.mxu0 %v566
  %885 = vmatpush1.msra.mxu0 %v565
  %886 = vmatprep.subr.mxu0 %v780
  %887 = vmatpush1.msra.mxu0 %v777
  %888 = vmatprep.subr.mxu0 0.0
  %889 = vmatpush1.msra.mxu0 0.0
  %890 = vmatprep.subr.mxu0 0.0
  %891 = vmatpush1.msra.mxu0 0.0
  %892 = vmatprep.subr.mxu0 0.0
  %893 = vmatpush1.msra.mxu0 0.0
  %894 = vmatprep.subr.mxu0 0.0
  %895 = vmatpush1.msra.mxu0 0.0
  %896 = vmatprep.subr.mxu0 0.0
  %897 = vmatpush1.msra.mxu0 0.0
  %898 = vmatprep.subr.mxu0 0.0
  %899 = vmatpush1.msra.mxu0 0.0
  %900 = vmatprep.subr.mxu0 0.0
  %901 = vmatpush1.msra.mxu0 0.0
  %902 = vmatprep.subr.mxu0 0.0
  %903 = vmatpush1.msra.mxu0 0.0
  %904 = vmatprep.subr.mxu0 0.0
  %905 = vmatpush1.msra.mxu0 0.0
  %906 = vmatprep.subr.mxu0 0.0
  %907 = vmatpush1.msra.mxu0 0.0
  %908 = vmatprep.subr.mxu0 0.0
  %909 = vmatpush1.msra.mxu0 0.0
  %910 = vmatprep.subr.mxu0 0.0
  %911 = vmatpush1.msra.mxu0 0.0
  %912 = vmatprep.subr.mxu0 0.0
  %913 = vmatpush1.msra.mxu0 0.0
  %914 = vmatprep.subr.mxu0 0.0
  %915 = vmatpush1.msra.mxu0 0.0
  %916 = vmatprep.subr.mxu0 0.0
  %917 = vmatpush1.msra.mxu0 0.0
  %918 = vmatprep.subr.mxu0 0.0
  %919 = vmatpush1.msra.mxu0 0.0
  %920 = vmatprep.subr.mxu0 0.0
  %921 = vmatpush1.msra.mxu0 0.0
  %922 = vmatprep.subr.mxu0 0.0
  %923 = vmatpush1.msra.mxu0 0.0
  %924 = vmatprep.subr.mxu0 0.0
  %925 = vmatpush1.msra.mxu0 0.0
  %926 = vmatprep.subr.mxu0 0.0
  %927 = vmatpush1.msra.mxu0 0.0
  %928 = vmatprep.subr.mxu0 0.0
  %929 = vmatpush1.msra.mxu0 0.0
  %930 = vmatprep.subr.mxu0 0.0
  %931 = vmatpush1.msra.mxu0 0.0
  %932 = vmatprep.subr.mxu0 0.0
  %933 = vmatpush1.msra.mxu0 0.0
  %934 = vmatprep.subr.mxu0 0.0
  %935 = vmatpush1.msra.mxu0 0.0
  %936 = vmatprep.subr.mxu0 0.0
  %937 = vmatpush1.msra.mxu0 0.0
  %938 = vmatprep.subr.mxu0 0.0
  %939 = vmatpush1.msra.mxu0 0.0
  %940 = vmatprep.subr.mxu0 0.0
  %941 = vmatpush1.msra.mxu0 0.0
  %942 = vmatprep.subr.mxu0 0.0
  %943 = vmatpush1.msra.mxu0 0.0
  %944 = vmatprep.mubr.f32.mxu0 0.0
  %945 = vmatmul.mubr.f32.gmra.mrb[0].mxu0 %v758
  %v946 = vpop.f32.mrb[0].mxu0
  %v947 = vadd.f32 0.0, %v946
  %v948 = vpop.f32.mrb[0].mxu0
  %v949 = vadd.f32 0.0, %v948
  %950 = vmatprep.mubr.f32.mxu0 0.0
  %951 = vmatmul.mubr.f32.gmra.mrb[0].mxu0 %v761
  %v952 = vpop.f32.mrb[0].mxu0
  %v953 = vadd.f32 0.0, %v952
  %v954 = vpop.f32.mrb[0].mxu0
  %v955 = vadd.f32 0.0, %v954
  %956 = vmatprep.mubr.f32.mxu0 0.0
  %957 = vmatmul.mubr.f32.gmra.mrb[0].mxu0 %v764
  %v958 = vpop.f32.mrb[0].mxu0
  %v959 = vadd.f32 0.0, %v958
  %v960 = vpop.f32.mrb[0].mxu0
  %v961 = vadd.f32 0.0, %v960
  %962 = vmatprep.mubr.f32.mxu0 0.0
  %963 = vmatmul.mubr.f32.gmra.mrb[0].mxu0 %v767
  %v964 = vpop.f32.mrb[0].mxu0
  %v965 = vadd.f32 0.0, %v964
  %v966 = vpop.f32.mrb[0].mxu0
  %v967 = vadd.f32 0.0, %v966
  %968 = vdwg.mxu0
  %969 = vmatprep.subr.mxu0 %v554
  %970 = vmatpush1.msra.mxu0 %v553
  %971 = vmatprep.subr.mxu0 %v561
  %972 = vmatpush1.msra.mxu0 %v560
  %973 = vmatprep.subr.mxu0 %v568
  %974 = vmatpush1.msra.mxu0 %v567
  %975 = vmatprep.subr.mxu0 %v786
  %976 = vmatpush1.msra.mxu0 %v783
  %977 = vmatprep.subr.mxu0 0.0
  %978 = vmatpush1.msra.mxu0 0.0
  %979 = vmatprep.subr.mxu0 0.0
  %980 = vmatpush1.msra.mxu0 0.0
  %981 = vmatprep.subr.mxu0 0.0
  %982 = vmatpush1.msra.mxu0 0.0
  %983 = vmatprep.subr.mxu0 0.0
  %984 = vmatpush1.msra.mxu0 0.0
  %985 = vmatprep.subr.mxu0 0.0
  %986 = vmatpush1.msra.mxu0 0.0
  %987 = vmatprep.subr.mxu0 0.0
  %988 = vmatpush1.msra.mxu0 0.0
  %989 = vmatprep.subr.mxu0 0.0
  %990 = vmatpush1.msra.mxu0 0.0
  %991 = vmatprep.subr.mxu0 0.0
  %992 = vmatpush1.msra.mxu0 0.0
  %993 = vmatprep.subr.mxu0 0.0
  %994 = vmatpush1.msra.mxu0 0.0
  %995 = vmatprep.subr.mxu0 0.0
  %996 = vmatpush1.msra.mxu0 0.0
  %997 = vmatprep.subr.mxu0 0.0
  %998 = vmatpush1.msra.mxu0 0.0
  %999 = vmatprep.subr.mxu0 0.0
  %1000 = vmatpush1.msra.mxu0 0.0
  %1001 = vmatprep.subr.mxu0 0.0
  %1002 = vmatpush1.msra.mxu0 0.0
  %1003 = vmatprep.subr.mxu0 0.0
  %1004 = vmatpush1.msra.mxu0 0.0
  %1005 = vmatprep.subr.mxu0 0.0
  %1006 = vmatpush1.msra.mxu0 0.0
  %1007 = vmatprep.subr.mxu0 0.0
  %1008 = vmatpush1.msra.mxu0 0.0
  %1009 = vmatprep.subr.mxu0 0.0
  %1010 = vmatpush1.msra.mxu0 0.0
  %1011 = vmatprep.subr.mxu0 0.0
  %1012 = vmatpush1.msra.mxu0 0.0
  %1013 = vmatprep.subr.mxu0 0.0
  %1014 = vmatpush1.msra.mxu0 0.0
  %1015 = vmatprep.subr.mxu0 0.0
  %1016 = vmatpush1.msra.mxu0 0.0
  %1017 = vmatprep.subr.mxu0 0.0
  %1018 = vmatpush1.msra.mxu0 0.0
  %1019 = vmatprep.subr.mxu0 0.0
  %1020 = vmatpush1.msra.mxu0 0.0
  %1021 = vmatprep.subr.mxu0 0.0
  %1022 = vmatpush1.msra.mxu0 0.0
  %1023 = vmatprep.subr.mxu0 0.0
  %1024 = vmatpush1.msra.mxu0 0.0
  %1025 = vmatprep.subr.mxu0 0.0
  %1026 = vmatpush1.msra.mxu0 0.0
  %1027 = vmatprep.subr.mxu0 0.0
  %1028 = vmatpush1.msra.mxu0 0.0
  %1029 = vmatprep.subr.mxu0 0.0
  %1030 = vmatpush1.msra.mxu0 0.0
  %1031 = vmatprep.subr.mxu0 0.0
  %1032 = vmatpush1.msra.mxu0 0.0
  %1033 = vmatprep.mubr.f32.mxu0 0.0
  %1034 = vmatmul.mubr.f32.gmra.mrb[0].mxu0 %v758
  %v1035 = vpop.f32.mrb[0].mxu0
  %v1036 = vadd.f32 0.0, %v1035
  %v1037 = vpop.f32.mrb[0].mxu0
  %v1038 = vadd.f32 0.0, %v1037
  %1039 = vmatprep.mubr.f32.mxu0 0.0
  %1040 = vmatmul.mubr.f32.gmra.mrb[0].mxu0 %v761
  %v1041 = vpop.f32.mrb[0].mxu0
  %v1042 = vadd.f32 0.0, %v1041
  %v1043 = vpop.f32.mrb[0].mxu0
  %v1044 = vadd.f32 0.0, %v1043
  %1045 = vmatprep.mubr.f32.mxu0 0.0
  %1046 = vmatmul.mubr.f32.gmra.mrb[0].mxu0 %v764
  %v1047 = vpop.f32.mrb[0].mxu0
  %v1048 = vadd.f32 0.0, %v1047
  %v1049 = vpop.f32.mrb[0].mxu0
  %v1050 = vadd.f32 0.0, %v1049
  %1051 = vmatprep.mubr.f32.mxu0 0.0
  %1052 = vmatmul.mubr.f32.gmra.mrb[0].mxu0 %v767
  %v1053 = vpop.f32.mrb[0].mxu0
  %v1054 = vadd.f32 0.0, %v1053
  %v1055 = vpop.f32.mrb[0].mxu0
  %v1056 = vadd.f32 0.0, %v1055
  %1057 = vdwg.mxu0
  %1058 = vmatprep.subr.mxu0 0.0
  %1059 = vmatpush1.msra.mxu0 %v555
  %1060 = vmatprep.subr.mxu0 0.0
  %1061 = vmatpush1.msra.mxu0 %v562
  %1062 = vmatprep.subr.mxu0 0.0
  %1063 = vmatpush1.msra.mxu0 %v569
  %1064 = vmatprep.subr.mxu0 0.0
  %1065 = vmatpush1.msra.mxu0 %v789
  %1066 = vmatprep.subr.mxu0 0.0
  %1067 = vmatpush1.msra.mxu0 0.0
  %1068 = vmatprep.subr.mxu0 0.0
  %1069 = vmatpush1.msra.mxu0 0.0
  %1070 = vmatprep.subr.mxu0 0.0
  %1071 = vmatpush1.msra.mxu0 0.0
  %1072 = vmatprep.subr.mxu0 0.0
  %1073 = vmatpush1.msra.mxu0 0.0
  %1074 = vmatprep.subr.mxu0 0.0
  %1075 = vmatpush1.msra.mxu0 0.0
  %1076 = vmatprep.subr.mxu0 0.0
  %1077 = vmatpush1.msra.mxu0 0.0
  %1078 = vmatprep.subr.mxu0 0.0
  %1079 = vmatpush1.msra.mxu0 0.0
  %1080 = vmatprep.subr.mxu0 0.0
  %1081 = vmatpush1.msra.mxu0 0.0
  %1082 = vmatprep.subr.mxu0 0.0
  %1083 = vmatpush1.msra.mxu0 0.0
  %1084 = vmatprep.subr.mxu0 0.0
  %1085 = vmatpush1.msra.mxu0 0.0
  %1086 = vmatprep.subr.mxu0 0.0
  %1087 = vmatpush1.msra.mxu0 0.0
  %1088 = vmatprep.subr.mxu0 0.0
  %1089 = vmatpush1.msra.mxu0 0.0
  %1090 = vmatprep.subr.mxu0 0.0
  %1091 = vmatpush1.msra.mxu0 0.0
  %1092 = vmatprep.subr.mxu0 0.0
  %1093 = vmatpush1.msra.mxu0 0.0
  %1094 = vmatprep.subr.mxu0 0.0
  %1095 = vmatpush1.msra.mxu0 0.0
  %1096 = vmatprep.subr.mxu0 0.0
  %1097 = vmatpush1.msra.mxu0 0.0
  %1098 = vmatprep.subr.mxu0 0.0
  %1099 = vmatpush1.msra.mxu0 0.0
  %1100 = vmatprep.subr.mxu0 0.0
  %1101 = vmatpush1.msra.mxu0 0.0
  %1102 = vmatprep.subr.mxu0 0.0
  %1103 = vmatpush1.msra.mxu0 0.0
  %1104 = vmatprep.subr.mxu0 0.0
  %1105 = vmatpush1.msra.mxu0 0.0
  %1106 = vmatprep.subr.mxu0 0.0
  %1107 = vmatpush1.msra.mxu0 0.0
  %1108 = vmatprep.subr.mxu0 0.0
  %1109 = vmatpush1.msra.mxu0 0.0
  %1110 = vmatprep.subr.mxu0 0.0
  %1111 = vmatpush1.msra.mxu0 0.0
  %1112 = vmatprep.subr.mxu0 0.0
  %1113 = vmatpush1.msra.mxu0 0.0
  %1114 = vmatprep.subr.mxu0 0.0
  %1115 = vmatpush1.msra.mxu0 0.0
  %1116 = vmatprep.subr.mxu0 0.0
  %1117 = vmatpush1.msra.mxu0 0.0
  %1118 = vmatprep.subr.mxu0 0.0
  %1119 = vmatpush1.msra.mxu0 0.0
  %1120 = vmatprep.subr.mxu0 0.0
  %1121 = vmatpush1.msra.mxu0 0.0
  %1122 = vmatprep.mubr.f32.mxu0 0.0
  %1123 = vmatmul.mubr.f32.gmra.mrb[0].mxu0 %v758
  %v1124 = vpop.f32.mrb[0].mxu0
  %v1125 = vadd.f32 0.0, %v1124
  %v1126 = vpop.f32.mrb[0].mxu0
  %1127 = vmatprep.mubr.f32.mxu0 0.0
  %1128 = vmatmul.mubr.f32.gmra.mrb[0].mxu0 %v761
  %v1129 = vpop.f32.mrb[0].mxu0
  %v1130 = vadd.f32 0.0, %v1129
  %v1131 = vpop.f32.mrb[0].mxu0
  %1132 = vmatprep.mubr.f32.mxu0 0.0
  %1133 = vmatmul.mubr.f32.gmra.mrb[0].mxu0 %v764
  %v1134 = vpop.f32.mrb[0].mxu0
  %v1135 = vadd.f32 0.0, %v1134
  %v1136 = vpop.f32.mrb[0].mxu0
  %1137 = vmatprep.mubr.f32.mxu0 0.0
  %1138 = vmatmul.mubr.f32.gmra.mrb[0].mxu0 %v767
  %v1139 = vpop.f32.mrb[0].mxu0
  %v1140 = vadd.f32 0.0, %v1139
  %v1141 = vpop.f32.mrb[0].mxu0
  %1142 = vdwg.mxu0
  %v1143 = vmul.f32 %v858, %v724
  %v1144 = vmul.f32 %v860, %v725
  %v1145 = vmul.f32 %v947, %v726
  %v1146 = vmul.f32 %v949, %v727
  %v1147 = vmul.f32 %v1036, %v728
  %v1148 = vmul.f32 %v1038, %v729
  %v1149 = vmul.f32 %v1125, %v730
  %v1150 = vmul.f32 %v864, %v731
  %v1151 = vmul.f32 %v866, %v732
  %v1152 = vmul.f32 %v953, %v733
  %v1153 = vmul.f32 %v955, %v734
  %v1154 = vmul.f32 %v1042, %v735
  %v1155 = vmul.f32 %v1044, %v736
  %v1156 = vmul.f32 %v1130, %v737
  %v1157 = vmul.f32 %v870, %v738
  %v1158 = vmul.f32 %v872, %v739
  %v1159 = vmul.f32 %v959, %v740
  %v1160 = vmul.f32 %v961, %v741
  %v1161 = vmul.f32 %v1048, %v742
  %v1162 = vmul.f32 %v1050, %v743
  %v1163 = vmul.f32 %v1135, %v744
  %v1164 = vmul.f32 %v876, %v745
  %v1165 = vmul.f32 %v878, %v746
  %v1166 = vmul.f32 %v965, %v747
  %v1167 = vmul.f32 %v967, %v748
  %v1168 = vmul.f32 %v1054, %v749
  %v1169 = vmul.f32 %v1056, %v750
  %v1170 = vmul.f32 %v1140, %v751
  %v1171 = vadd.f32 %v1143, %v1150
  %v1172 = vadd.f32 %v1171, %v1157
  %v1173 = vsel %vm769, %v1164, 0.0
  %v1174 = vadd.f32 %v1172, %v1173
  %v1175 = vrot.slane %v1174, 4
  %v1176 = vadd.f32 %v1174, %v1175
  %v1177 = vrot.slane %v1176, 2
  %v1178 = vadd.f32 %v1176, %v1177
  %v1179 = vrot.slane %v1178, 1
  %v1180 = vadd.f32 %v1178, %v1179
  %v1181 = vadd.f32 %v1144, %v1151
  %v1182 = vadd.f32 %v1181, %v1158
  %v1183 = vsel %vm769, %v1165, 0.0
  %v1184 = vadd.f32 %v1182, %v1183
  %v1185 = vrot.slane %v1184, 4
  %v1186 = vadd.f32 %v1184, %v1185
  %v1187 = vrot.slane %v1186, 2
  %v1188 = vadd.f32 %v1186, %v1187
  %v1189 = vrot.slane %v1188, 1
  %v1190 = vadd.f32 %v1188, %v1189
  %v1191 = vadd.f32 %v1145, %v1152
  %v1192 = vadd.f32 %v1191, %v1159
  %v1193 = vsel %vm769, %v1166, 0.0
  %v1194 = vadd.f32 %v1192, %v1193
  %v1195 = vrot.slane %v1194, 4
  %v1196 = vadd.f32 %v1194, %v1195
  %v1197 = vrot.slane %v1196, 2
  %v1198 = vadd.f32 %v1196, %v1197
  %v1199 = vrot.slane %v1198, 1
  %v1200 = vadd.f32 %v1198, %v1199
  %v1201 = vadd.f32 %v1146, %v1153
  %v1202 = vadd.f32 %v1201, %v1160
  %v1203 = vsel %vm769, %v1167, 0.0
  %v1204 = vadd.f32 %v1202, %v1203
  %v1205 = vrot.slane %v1204, 4
  %v1206 = vadd.f32 %v1204, %v1205
  %v1207 = vrot.slane %v1206, 2
  %v1208 = vadd.f32 %v1206, %v1207
  %v1209 = vrot.slane %v1208, 1
  %v1210 = vadd.f32 %v1208, %v1209
  %v1211 = vadd.f32 %v1147, %v1154
  %v1212 = vadd.f32 %v1211, %v1161
  %v1213 = vsel %vm769, %v1168, 0.0
  %v1214 = vadd.f32 %v1212, %v1213
  %v1215 = vrot.slane %v1214, 4
  %v1216 = vadd.f32 %v1214, %v1215
  %v1217 = vrot.slane %v1216, 2
  %v1218 = vadd.f32 %v1216, %v1217
  %v1219 = vrot.slane %v1218, 1
  %v1220 = vadd.f32 %v1218, %v1219
  %v1221 = vadd.f32 %v1148, %v1155
  %v1222 = vadd.f32 %v1221, %v1162
  %v1223 = vsel %vm769, %v1169, 0.0
  %v1224 = vadd.f32 %v1222, %v1223
  %v1225 = vrot.slane %v1224, 4
  %v1226 = vadd.f32 %v1224, %v1225
  %v1227 = vrot.slane %v1226, 2
  %v1228 = vadd.f32 %v1226, %v1227
  %v1229 = vrot.slane %v1228, 1
  %v1230 = vadd.f32 %v1228, %v1229
  %vm1231 = vcmask 130048
  %v1232 = vsel %vm1231, %v1149, 0.0
  %v1233 = vsel %vm1231, %v1156, 0.0
  %v1234 = vadd.f32 %v1232, %v1233
  %v1235 = vsel %vm1231, %v1163, 0.0
  %v1236 = vadd.f32 %v1234, %v1235
  %vm1237 = vcmask 125952
  %v1238 = vsel %vm1237, %v1170, 0.0
  %v1239 = vadd.f32 %v1236, %v1238
  %v1240 = vrot.slane %v1239, 4
  %v1241 = vadd.f32 %v1239, %v1240
  %v1242 = vrot.slane %v1241, 2
  %v1243 = vadd.f32 %v1241, %v1242
  %v1244 = vrot.slane %v1243, 1
  %v1245 = vadd.f32 %v1243, %v1244
  %v1253 = vcombine.low %v1180, %v1190
  %v1254 = vcombine.low %v1200, %v1210
  %v1255 = vcombine.low %v1220, %v1230
  %v1257 = vunpack.c.l.s4 1966171168
  %v1258 = vunpack.c.0.s8 %v1257
  %v1259 = vlaneseq
  %v1260 = vshrl.u32 %v1259, 7
  %v1261 = vsub.s32 %v1258, %v1260
  %v1262 = vrot.slane %v1253, %v1261
  %v1264 = vunpack.c.l.s4 1966171168
  %v1265 = vunpack.c.0.s8 %v1264
  %v1266 = vlaneseq
  %v1267 = vshrl.u32 %v1266, 7
  %v1268 = vsub.s32 %v1265, %v1267
  %v1269 = vrot.slane %v1254, %v1268
  %v1271 = vunpack.c.l.s4 1966171168
  %v1272 = vunpack.c.0.s8 %v1271
  %v1273 = vlaneseq
  %v1274 = vshrl.u32 %v1273, 7
  %v1275 = vsub.s32 %v1272, %v1274
  %v1276 = vrot.slane %v1255, %v1275
  %v1278 = vunpack.c.l.s4 1966171168
  %v1279 = vunpack.c.0.s8 %v1278
  %v1280 = vlaneseq
  %v1281 = vshrl.u32 %v1280, 7
  %v1282 = vsub.s32 %v1279, %v1281
  %v1283 = vrot.slane %v1245, %v1282
  %v1284 = vcombine.low %v1262, %v1269
  %v1285 = vcombine.low %v1276, %v1283
  %v1287 = vunpack.c.l.s4 1966171168
  %v1288 = vunpack.c.0.s8 %v1287
  %v1289 = vlaneseq
  %v1290 = vshrl.u32 %v1289, 7
  %v1291 = vsub.s32 %v1288, %v1290
  %v1292 = vrot.slane %v1284, %v1291
  %v1294 = vunpack.c.l.s4 1966171168
  %v1295 = vunpack.c.0.s8 %v1294
  %v1296 = vlaneseq
  %v1297 = vshrl.u32 %v1296, 7
  %v1298 = vsub.s32 %v1295, %v1297
  %v1299 = vrot.slane %v1285, %v1298
  %v1300 = vcombine.low %v1292, %v1299
  %v1302 = vlaneseq
  %vm1303 = vcmp.ge.s32.totalorder %v1302, 0
  %vm1304 = vcmp.lt.s32.totalorder %v1302, 784
  %vm1305 = vmand %vm1303, %vm1304
  %1306 = vst.msk [vmem:[%s4] ss:$2 sm:$0x7f] %vm1305, %v1300
  %s1307 = scalar_lea.vmem %s0, 2
  %v1308 = vld [vmem:[%s1307] sm:$0x3]
  %v1310 = vsel %vm43, %v1308, 0
  %1312 = vmatprep.subr.mxu0 %v18
  %1313 = vmatpush1.msra.mxu0 %v17
  %1314 = vmatprep.subr.mxu0 %v52
  %1315 = vmatpush1.msra.mxu0 %v49
  %1316 = vmatprep.subr.mxu0 0.0
  %1317 = vmatpush1.msra.mxu0 0.0
  %1318 = vmatprep.subr.mxu0 0.0
  %1319 = vmatpush1.msra.mxu0 0.0
  %1320 = vmatprep.subr.mxu0 0.0
  %1321 = vmatpush1.msra.mxu0 0.0
  %1322 = vmatprep.subr.mxu0 0.0
  %1323 = vmatpush1.msra.mxu0 0.0
  %1324 = vmatprep.subr.mxu0 0.0
  %1325 = vmatpush1.msra.mxu0 0.0
  %1326 = vmatprep.subr.mxu0 0.0
  %1327 = vmatpush1.msra.mxu0 0.0
  %1328 = vmatprep.subr.mxu0 0.0
  %1329 = vmatpush1.msra.mxu0 0.0
  %1330 = vmatprep.subr.mxu0 0.0
  %1331 = vmatpush1.msra.mxu0 0.0
  %1332 = vmatprep.subr.mxu0 0.0
  %1333 = vmatpush1.msra.mxu0 0.0
  %1334 = vmatprep.subr.mxu0 0.0
  %1335 = vmatpush1.msra.mxu0 0.0
  %1336 = vmatprep.subr.mxu0 0.0
  %1337 = vmatpush1.msra.mxu0 0.0
  %1338 = vmatprep.subr.mxu0 0.0
  %1339 = vmatpush1.msra.mxu0 0.0
  %1340 = vmatprep.subr.mxu0 0.0
  %1341 = vmatpush1.msra.mxu0 0.0
  %1342 = vmatprep.subr.mxu0 0.0
  %1343 = vmatpush1.msra.mxu0 0.0
  %1344 = vmatprep.subr.mxu0 0.0
  %1345 = vmatpush1.msra.mxu0 0.0
  %1346 = vmatprep.subr.mxu0 0.0
  %1347 = vmatpush1.msra.mxu0 0.0
  %1348 = vmatprep.subr.mxu0 0.0
  %1349 = vmatpush1.msra.mxu0 0.0
  %1350 = vmatprep.subr.mxu0 0.0
  %1351 = vmatpush1.msra.mxu0 0.0
  %1352 = vmatprep.subr.mxu0 0.0
  %1353 = vmatpush1.msra.mxu0 0.0
  %1354 = vmatprep.subr.mxu0 0.0
  %1355 = vmatpush1.msra.mxu0 0.0
  %1356 = vmatprep.subr.mxu0 0.0
  %1357 = vmatpush1.msra.mxu0 0.0
  %1358 = vmatprep.subr.mxu0 0.0
  %1359 = vmatpush1.msra.mxu0 0.0
  %1360 = vmatprep.subr.mxu0 0.0
  %1361 = vmatpush1.msra.mxu0 0.0
  %1362 = vmatprep.subr.mxu0 0.0
  %1363 = vmatpush1.msra.mxu0 0.0
  %1364 = vmatprep.subr.mxu0 0.0
  %1365 = vmatpush1.msra.mxu0 0.0
  %1366 = vmatprep.subr.mxu0 0.0
  %1367 = vmatpush1.msra.mxu0 0.0
  %1368 = vmatprep.subr.mxu0 0.0
  %1369 = vmatpush1.msra.mxu0 0.0
  %1370 = vmatprep.subr.mxu0 0.0
  %1371 = vmatpush1.msra.mxu0 0.0
  %1372 = vmatprep.subr.mxu0 0.0
  %1373 = vmatpush1.msra.mxu0 0.0
  %1374 = vmatprep.subr.mxu0 0.0
  %1375 = vmatpush1.msra.mxu0 0.0
  %1376 = vmatprep.mubr.f32.mxu0 0.0
  %1377 = vmatmul.mubr.f32.gmra.mrb[0].mxu0 %v1310
  %v1378 = vpop.f32.mrb[0].mxu0
  %v1379 = vadd.f32 0.0, %v1378
  %v1380 = vpop.f32.mrb[0].mxu0
  %v1381 = vadd.f32 0.0, %v1380
  %1382 = vdwg.mxu0
  %1383 = vmatprep.subr.mxu0 %v20
  %1384 = vmatpush1.msra.mxu0 %v19
  %1385 = vmatprep.subr.mxu0 %v58
  %1386 = vmatpush1.msra.mxu0 %v55
  %1387 = vmatprep.subr.mxu0 0.0
  %1388 = vmatpush1.msra.mxu0 0.0
  %1389 = vmatprep.subr.mxu0 0.0
  %1390 = vmatpush1.msra.mxu0 0.0
  %1391 = vmatprep.subr.mxu0 0.0
  %1392 = vmatpush1.msra.mxu0 0.0
  %1393 = vmatprep.subr.mxu0 0.0
  %1394 = vmatpush1.msra.mxu0 0.0
  %1395 = vmatprep.subr.mxu0 0.0
  %1396 = vmatpush1.msra.mxu0 0.0
  %1397 = vmatprep.subr.mxu0 0.0
  %1398 = vmatpush1.msra.mxu0 0.0
  %1399 = vmatprep.subr.mxu0 0.0
  %1400 = vmatpush1.msra.mxu0 0.0
  %1401 = vmatprep.subr.mxu0 0.0
  %1402 = vmatpush1.msra.mxu0 0.0
  %1403 = vmatprep.subr.mxu0 0.0
  %1404 = vmatpush1.msra.mxu0 0.0
  %1405 = vmatprep.subr.mxu0 0.0
  %1406 = vmatpush1.msra.mxu0 0.0
  %1407 = vmatprep.subr.mxu0 0.0
  %1408 = vmatpush1.msra.mxu0 0.0
  %1409 = vmatprep.subr.mxu0 0.0
  %1410 = vmatpush1.msra.mxu0 0.0
  %1411 = vmatprep.subr.mxu0 0.0
  %1412 = vmatpush1.msra.mxu0 0.0
  %1413 = vmatprep.subr.mxu0 0.0
  %1414 = vmatpush1.msra.mxu0 0.0
  %1415 = vmatprep.subr.mxu0 0.0
  %1416 = vmatpush1.msra.mxu0 0.0
  %1417 = vmatprep.subr.mxu0 0.0
  %1418 = vmatpush1.msra.mxu0 0.0
  %1419 = vmatprep.subr.mxu0 0.0
  %1420 = vmatpush1.msra.mxu0 0.0
  %1421 = vmatprep.subr.mxu0 0.0
  %1422 = vmatpush1.msra.mxu0 0.0
  %1423 = vmatprep.subr.mxu0 0.0
  %1424 = vmatpush1.msra.mxu0 0.0
  %1425 = vmatprep.subr.mxu0 0.0
  %1426 = vmatpush1.msra.mxu0 0.0
  %1427 = vmatprep.subr.mxu0 0.0
  %1428 = vmatpush1.msra.mxu0 0.0
  %1429 = vmatprep.subr.mxu0 0.0
  %1430 = vmatpush1.msra.mxu0 0.0
  %1431 = vmatprep.subr.mxu0 0.0
  %1432 = vmatpush1.msra.mxu0 0.0
  %1433 = vmatprep.subr.mxu0 0.0
  %1434 = vmatpush1.msra.mxu0 0.0
  %1435 = vmatprep.subr.mxu0 0.0
  %1436 = vmatpush1.msra.mxu0 0.0
  %1437 = vmatprep.subr.mxu0 0.0
  %1438 = vmatpush1.msra.mxu0 0.0
  %1439 = vmatprep.subr.mxu0 0.0
  %1440 = vmatpush1.msra.mxu0 0.0
  %1441 = vmatprep.subr.mxu0 0.0
  %1442 = vmatpush1.msra.mxu0 0.0
  %1443 = vmatprep.subr.mxu0 0.0
  %1444 = vmatpush1.msra.mxu0 0.0
  %1445 = vmatprep.subr.mxu0 0.0
  %1446 = vmatpush1.msra.mxu0 0.0
  %1447 = vmatprep.mubr.f32.mxu0 0.0
  %1448 = vmatmul.mubr.f32.gmra.mrb[0].mxu0 %v1310
  %v1449 = vpop.f32.mrb[0].mxu0
  %v1450 = vadd.f32 0.0, %v1449
  %v1451 = vpop.f32.mrb[0].mxu0
  %v1452 = vadd.f32 0.0, %v1451
  %1453 = vdwg.mxu0
  %1454 = vmatprep.subr.mxu0 %v22
  %1455 = vmatpush1.msra.mxu0 %v21
  %1456 = vmatprep.subr.mxu0 %v64
  %1457 = vmatpush1.msra.mxu0 %v61
  %1458 = vmatprep.subr.mxu0 0.0
  %1459 = vmatpush1.msra.mxu0 0.0
  %1460 = vmatprep.subr.mxu0 0.0
  %1461 = vmatpush1.msra.mxu0 0.0
  %1462 = vmatprep.subr.mxu0 0.0
  %1463 = vmatpush1.msra.mxu0 0.0
  %1464 = vmatprep.subr.mxu0 0.0
  %1465 = vmatpush1.msra.mxu0 0.0
  %1466 = vmatprep.subr.mxu0 0.0
  %1467 = vmatpush1.msra.mxu0 0.0
  %1468 = vmatprep.subr.mxu0 0.0
  %1469 = vmatpush1.msra.mxu0 0.0
  %1470 = vmatprep.subr.mxu0 0.0
  %1471 = vmatpush1.msra.mxu0 0.0
  %1472 = vmatprep.subr.mxu0 0.0
  %1473 = vmatpush1.msra.mxu0 0.0
  %1474 = vmatprep.subr.mxu0 0.0
  %1475 = vmatpush1.msra.mxu0 0.0
  %1476 = vmatprep.subr.mxu0 0.0
  %1477 = vmatpush1.msra.mxu0 0.0
  %1478 = vmatprep.subr.mxu0 0.0
  %1479 = vmatpush1.msra.mxu0 0.0
  %1480 = vmatprep.subr.mxu0 0.0
  %1481 = vmatpush1.msra.mxu0 0.0
  %1482 = vmatprep.subr.mxu0 0.0
  %1483 = vmatpush1.msra.mxu0 0.0
  %1484 = vmatprep.subr.mxu0 0.0
  %1485 = vmatpush1.msra.mxu0 0.0
  %1486 = vmatprep.subr.mxu0 0.0
  %1487 = vmatpush1.msra.mxu0 0.0
  %1488 = vmatprep.subr.mxu0 0.0
  %1489 = vmatpush1.msra.mxu0 0.0
  %1490 = vmatprep.subr.mxu0 0.0
  %1491 = vmatpush1.msra.mxu0 0.0
  %1492 = vmatprep.subr.mxu0 0.0
  %1493 = vmatpush1.msra.mxu0 0.0
  %1494 = vmatprep.subr.mxu0 0.0
  %1495 = vmatpush1.msra.mxu0 0.0
  %1496 = vmatprep.subr.mxu0 0.0
  %1497 = vmatpush1.msra.mxu0 0.0
  %1498 = vmatprep.subr.mxu0 0.0
  %1499 = vmatpush1.msra.mxu0 0.0
  %1500 = vmatprep.subr.mxu0 0.0
  %1501 = vmatpush1.msra.mxu0 0.0
  %1502 = vmatprep.subr.mxu0 0.0
  %1503 = vmatpush1.msra.mxu0 0.0
  %1504 = vmatprep.subr.mxu0 0.0
  %1505 = vmatpush1.msra.mxu0 0.0
  %1506 = vmatprep.subr.mxu0 0.0
  %1507 = vmatpush1.msra.mxu0 0.0
  %1508 = vmatprep.subr.mxu0 0.0
  %1509 = vmatpush1.msra.mxu0 0.0
  %1510 = vmatprep.subr.mxu0 0.0
  %1511 = vmatpush1.msra.mxu0 0.0
  %1512 = vmatprep.subr.mxu0 0.0
  %1513 = vmatpush1.msra.mxu0 0.0
  %1514 = vmatprep.subr.mxu0 0.0
  %1515 = vmatpush1.msra.mxu0 0.0
  %1516 = vmatprep.subr.mxu0 0.0
  %1517 = vmatpush1.msra.mxu0 0.0
  %1518 = vmatprep.mubr.f32.mxu0 0.0
  %1519 = vmatmul.mubr.f32.gmra.mrb[0].mxu0 %v1310
  %v1520 = vpop.f32.mrb[0].mxu0
  %v1521 = vadd.f32 0.0, %v1520
  %v1522 = vpop.f32.mrb[0].mxu0
  %v1523 = vadd.f32 0.0, %v1522
  %1524 = vdwg.mxu0
  %1525 = vmatprep.subr.mxu0 0.0
  %1526 = vmatpush1.msra.mxu0 %v23
  %1527 = vmatprep.subr.mxu0 0.0
  %1528 = vmatpush1.msra.mxu0 %v67
  %1529 = vmatprep.subr.mxu0 0.0
  %1530 = vmatpush1.msra.mxu0 0.0
  %1531 = vmatprep.subr.mxu0 0.0
  %1532 = vmatpush1.msra.mxu0 0.0
  %1533 = vmatprep.subr.mxu0 0.0
  %1534 = vmatpush1.msra.mxu0 0.0
  %1535 = vmatprep.subr.mxu0 0.0
  %1536 = vmatpush1.msra.mxu0 0.0
  %1537 = vmatprep.subr.mxu0 0.0
  %1538 = vmatpush1.msra.mxu0 0.0
  %1539 = vmatprep.subr.mxu0 0.0
  %1540 = vmatpush1.msra.mxu0 0.0
  %1541 = vmatprep.subr.mxu0 0.0
  %1542 = vmatpush1.msra.mxu0 0.0
  %1543 = vmatprep.subr.mxu0 0.0
  %1544 = vmatpush1.msra.mxu0 0.0
  %1545 = vmatprep.subr.mxu0 0.0
  %1546 = vmatpush1.msra.mxu0 0.0
  %1547 = vmatprep.subr.mxu0 0.0
  %1548 = vmatpush1.msra.mxu0 0.0
  %1549 = vmatprep.subr.mxu0 0.0
  %1550 = vmatpush1.msra.mxu0 0.0
  %1551 = vmatprep.subr.mxu0 0.0
  %1552 = vmatpush1.msra.mxu0 0.0
  %1553 = vmatprep.subr.mxu0 0.0
  %1554 = vmatpush1.msra.mxu0 0.0
  %1555 = vmatprep.subr.mxu0 0.0
  %1556 = vmatpush1.msra.mxu0 0.0
  %1557 = vmatprep.subr.mxu0 0.0
  %1558 = vmatpush1.msra.mxu0 0.0
  %1559 = vmatprep.subr.mxu0 0.0
  %1560 = vmatpush1.msra.mxu0 0.0
  %1561 = vmatprep.subr.mxu0 0.0
  %1562 = vmatpush1.msra.mxu0 0.0
  %1563 = vmatprep.subr.mxu0 0.0
  %1564 = vmatpush1.msra.mxu0 0.0
  %1565 = vmatprep.subr.mxu0 0.0
  %1566 = vmatpush1.msra.mxu0 0.0
  %1567 = vmatprep.subr.mxu0 0.0
  %1568 = vmatpush1.msra.mxu0 0.0
  %1569 = vmatprep.subr.mxu0 0.0
  %1570 = vmatpush1.msra.mxu0 0.0
  %1571 = vmatprep.subr.mxu0 0.0
  %1572 = vmatpush1.msra.mxu0 0.0
  %1573 = vmatprep.subr.mxu0 0.0
  %1574 = vmatpush1.msra.mxu0 0.0
  %1575 = vmatprep.subr.mxu0 0.0
  %1576 = vmatpush1.msra.mxu0 0.0
  %1577 = vmatprep.subr.mxu0 0.0
  %1578 = vmatpush1.msra.mxu0 0.0
  %1579 = vmatprep.subr.mxu0 0.0
  %1580 = vmatpush1.msra.mxu0 0.0
  %1581 = vmatprep.subr.mxu0 0.0
  %1582 = vmatpush1.msra.mxu0 0.0
  %1583 = vmatprep.subr.mxu0 0.0
  %1584 = vmatpush1.msra.mxu0 0.0
  %1585 = vmatprep.subr.mxu0 0.0
  %1586 = vmatpush1.msra.mxu0 0.0
  %1587 = vmatprep.subr.mxu0 0.0
  %1588 = vmatpush1.msra.mxu0 0.0
  %1589 = vmatprep.mubr.f32.mxu0 0.0
  %1590 = vmatmul.mubr.f32.gmra.mrb[0].mxu0 %v1310
  %v1591 = vpop.f32.mrb[0].mxu0
  %v1592 = vadd.f32 0.0, %v1591
  %v1593 = vpop.f32.mrb[0].mxu0
  %1594 = vdwg.mxu0
  %v1602 = vcombine.low %v1379, %v1381
  %v1603 = vcombine.low %v1450, %v1452
  %v1605 = vunpack.c.l.s4 1983009808
  %v1606 = vunpack.c.0.s8 %v1605
  %v1607 = vlaneseq
  %v1608 = vshrl.u32 %v1607, 7
  %v1609 = vsub.s32 %v1606, %v1608
  %v1610 = vrot.slane %v1602, %v1609
  %v1612 = vunpack.c.l.s4 1983009808
  %v1613 = vunpack.c.0.s8 %v1612
  %v1614 = vlaneseq
  %v1615 = vshrl.u32 %v1614, 7
  %v1616 = vsub.s32 %v1613, %v1615
  %v1617 = vrot.slane %v1603, %v1616
  %v1618 = vcombine.low %v1610, %v1617
  %v1619 = vcombine.low %v1521, %v1523
  %v1621 = vunpack.c.l.s4 1983009808
  %v1622 = vunpack.c.0.s8 %v1621
  %v1623 = vlaneseq
  %v1624 = vshrl.u32 %v1623, 7
  %v1625 = vsub.s32 %v1622, %v1624
  %v1626 = vrot.slane %v1619, %v1625
  %v1628 = vunpack.c.l.s4 1983009808
  %v1629 = vunpack.c.0.s8 %v1628
  %v1630 = vlaneseq
  %v1631 = vshrl.u32 %v1630, 7
  %v1632 = vsub.s32 %v1629, %v1631
  %v1633 = vrot.slane %v1592, %v1632
  %v1634 = vcombine.low %v1626, %v1633
  %v1637 = vadd.f32 %v31, %v1618
  %v1638 = vadd.f32 %v32, %v1634
  %v1639 = vadd.f32 %v1637, 1.0
  %v1640 = vadd.f32 %v1638, 1.0
  %v1641 = vmul.f32 %v1639, 13.5
  %v1642 = vmul.f32 %v1640, 13.5
  %v1645 = vlaneseq
  %v1646 = vshrl.u32 %v1645, 7
  %v1647 = vsub.s32 0, %v1646
  %v1648 = vrot.slane %v1641, %v1647
  %v1649 = vlaneseq
  %v1650 = vshrl.u32 %v1649, 7
  %v1651 = vsub.s32 2, %v1650
  %v1652 = vrot.slane %v1641, %v1651
  %v1653 = vlaneseq
  %v1654 = vshrl.u32 %v1653, 7
  %v1655 = vsub.s32 4, %v1654
  %v1656 = vrot.slane %v1641, %v1655
  %v1657 = vlaneseq
  %v1658 = vshrl.u32 %v1657, 7
  %v1659 = vsub.s32 6, %v1658
  %v1660 = vrot.slane %v1641, %v1659
  %v1661 = vlaneseq
  %v1662 = vshrl.u32 %v1661, 7
  %v1663 = vsub.s32 0, %v1662
  %v1664 = vrot.slane %v1642, %v1663
  %v1665 = vlaneseq
  %v1666 = vshrl.u32 %v1665, 7
  %v1667 = vsub.s32 2, %v1666
  %v1668 = vrot.slane %v1642, %v1667
  %v1669 = vlaneseq
  %v1670 = vshrl.u32 %v1669, 7
  %v1671 = vsub.s32 4, %v1670
  %v1672 = vrot.slane %v1642, %v1671
  %v1680 = vlaneseq
  %v1681 = vshrl.u32 %v1680, 7
  %v1682 = vsub.s32 0, %v1681
  %v1683 = vrot.slane %v1648, %v1682
  %v1684 = vlaneseq
  %v1685 = vshrl.u32 %v1684, 7
  %v1686 = vsub.s32 0, %v1685
  %v1687 = vrot.slane %v1652, %v1686
  %v1688 = vlaneseq
  %v1689 = vshrl.u32 %v1688, 7
  %v1690 = vsub.s32 0, %v1689
  %v1691 = vrot.slane %v1656, %v1690
  %v1692 = vlaneseq
  %v1693 = vshrl.u32 %v1692, 7
  %v1694 = vsub.s32 0, %v1693
  %v1695 = vrot.slane %v1660, %v1694
  %v1696 = vlaneseq
  %v1697 = vshrl.u32 %v1696, 7
  %v1698 = vsub.s32 0, %v1697
  %v1699 = vrot.slane %v1664, %v1698
  %v1700 = vlaneseq
  %v1701 = vshrl.u32 %v1700, 7
  %v1702 = vsub.s32 0, %v1701
  %v1703 = vrot.slane %v1668, %v1702
  %v1704 = vlaneseq
  %v1705 = vshrl.u32 %v1704, 7
  %v1706 = vsub.s32 0, %v1705
  %v1707 = vrot.slane %v1672, %v1706
  %v1708 = vsub.f32 %v38, %v1683
  %v1709 = vsub.f32 %v38, %v1687
  %v1710 = vsub.f32 %v38, %v1691
  %v1711 = vsub.f32 %v38, %v1695
  %v1712 = vsub.f32 %v38, %v1699
  %v1713 = vsub.f32 %v38, %v1703
  %v1714 = vsub.f32 %v38, %v1707
  %v1715 = vsub.f32 %v39, %v1683
  %v1716 = vsub.f32 %v39, %v1687
  %v1717 = vsub.f32 %v39, %v1691
  %v1718 = vsub.f32 %v39, %v1695
  %v1719 = vsub.f32 %v39, %v1699
  %v1720 = vsub.f32 %v39, %v1703
  %v1721 = vsub.f32 %v39, %v1707
  %v1722 = vsub.f32 %v40, %v1683
  %v1723 = vsub.f32 %v40, %v1687
  %v1724 = vsub.f32 %v40, %v1691
  %v1725 = vsub.f32 %v40, %v1695
  %v1726 = vsub.f32 %v40, %v1699
  %v1727 = vsub.f32 %v40, %v1703
  %v1728 = vsub.f32 %v40, %v1707
  %v1729 = vsub.f32 %v41, %v1683
  %v1730 = vsub.f32 %v41, %v1687
  %v1731 = vsub.f32 %v41, %v1691
  %v1732 = vsub.f32 %v41, %v1695
  %v1733 = vsub.f32 %v41, %v1699
  %v1734 = vsub.f32 %v41, %v1703
  %v1735 = vsub.f32 %v41, %v1707
  %v1736 = vand.u32 2147483647, %v1708
  %v1737 = vand.u32 2147483647, %v1709
  %v1738 = vand.u32 2147483647, %v1710
  %v1739 = vand.u32 2147483647, %v1711
  %v1740 = vand.u32 2147483647, %v1712
  %v1741 = vand.u32 2147483647, %v1713
  %v1742 = vand.u32 2147483647, %v1714
  %v1743 = vand.u32 2147483647, %v1715
  %v1744 = vand.u32 2147483647, %v1716
  %v1745 = vand.u32 2147483647, %v1717
  %v1746 = vand.u32 2147483647, %v1718
  %v1747 = vand.u32 2147483647, %v1719
  %v1748 = vand.u32 2147483647, %v1720
  %v1749 = vand.u32 2147483647, %v1721
  %v1750 = vand.u32 2147483647, %v1722
  %v1751 = vand.u32 2147483647, %v1723
  %v1752 = vand.u32 2147483647, %v1724
  %v1753 = vand.u32 2147483647, %v1725
  %v1754 = vand.u32 2147483647, %v1726
  %v1755 = vand.u32 2147483647, %v1727
  %v1756 = vand.u32 2147483647, %v1728
  %v1757 = vand.u32 2147483647, %v1729
  %v1758 = vand.u32 2147483647, %v1730
  %v1759 = vand.u32 2147483647, %v1731
  %v1760 = vand.u32 2147483647, %v1732
  %v1761 = vand.u32 2147483647, %v1733
  %v1762 = vand.u32 2147483647, %v1734
  %v1763 = vand.u32 2147483647, %v1735
  %v1764 = vsub.f32 1.0, %v1736
  %v1765 = vsub.f32 1.0, %v1737
  %v1766 = vsub.f32 1.0, %v1738
  %v1767 = vsub.f32 1.0, %v1739
  %v1768 = vsub.f32 1.0, %v1740
  %v1769 = vsub.f32 1.0, %v1741
  %v1770 = vsub.f32 1.0, %v1742
  %v1771 = vsub.f32 1.0, %v1743
  %v1772 = vsub.f32 1.0, %v1744
  %v1773 = vsub.f32 1.0, %v1745
  %v1774 = vsub.f32 1.0, %v1746
  %v1775 = vsub.f32 1.0, %v1747
  %v1776 = vsub.f32 1.0, %v1748
  %v1777 = vsub.f32 1.0, %v1749
  %v1778 = vsub.f32 1.0, %v1750
  %v1779 = vsub.f32 1.0, %v1751
  %v1780 = vsub.f32 1.0, %v1752
  %v1781 = vsub.f32 1.0, %v1753
  %v1782 = vsub.f32 1.0, %v1754
  %v1783 = vsub.f32 1.0, %v1755
  %v1784 = vsub.f32 1.0, %v1756
  %v1785 = vsub.f32 1.0, %v1757
  %v1786 = vsub.f32 1.0, %v1758
  %v1787 = vsub.f32 1.0, %v1759
  %v1788 = vsub.f32 1.0, %v1760
  %v1789 = vsub.f32 1.0, %v1761
  %v1790 = vsub.f32 1.0, %v1762
  %v1791 = vsub.f32 1.0, %v1763
  %v1792 = vmax.f32 %v1764, 0.0
  %v1793 = vmax.f32 %v1765, 0.0
  %v1794 = vmax.f32 %v1766, 0.0
  %v1795 = vmax.f32 %v1767, 0.0
  %v1796 = vmax.f32 %v1768, 0.0
  %v1797 = vmax.f32 %v1769, 0.0
  %v1798 = vmax.f32 %v1770, 0.0
  %v1799 = vmax.f32 %v1771, 0.0
  %v1800 = vmax.f32 %v1772, 0.0
  %v1801 = vmax.f32 %v1773, 0.0
  %v1802 = vmax.f32 %v1774, 0.0
  %v1803 = vmax.f32 %v1775, 0.0
  %v1804 = vmax.f32 %v1776, 0.0
  %v1805 = vmax.f32 %v1777, 0.0
  %v1806 = vmax.f32 %v1778, 0.0
  %v1807 = vmax.f32 %v1779, 0.0
  %v1808 = vmax.f32 %v1780, 0.0
  %v1809 = vmax.f32 %v1781, 0.0
  %v1810 = vmax.f32 %v1782, 0.0
  %v1811 = vmax.f32 %v1783, 0.0
  %v1812 = vmax.f32 %v1784, 0.0
  %v1813 = vmax.f32 %v1785, 0.0
  %v1814 = vmax.f32 %v1786, 0.0
  %v1815 = vmax.f32 %v1787, 0.0
  %v1816 = vmax.f32 %v1788, 0.0
  %v1817 = vmax.f32 %v1789, 0.0
  %v1818 = vmax.f32 %v1790, 0.0
  %v1819 = vmax.f32 %v1791, 0.0
  %v1820 = vlaneseq
  %v1821 = vshrl.u32 %v1820, 7
  %v1822 = vsub.s32 1, %v1821
  %v1823 = vrot.slane %v1641, %v1822
  %v1824 = vlaneseq
  %v1825 = vshrl.u32 %v1824, 7
  %v1826 = vsub.s32 3, %v1825
  %v1827 = vrot.slane %v1641, %v1826
  %v1828 = vlaneseq
  %v1829 = vshrl.u32 %v1828, 7
  %v1830 = vsub.s32 5, %v1829
  %v1831 = vrot.slane %v1641, %v1830
  %v1832 = vlaneseq
  %v1833 = vshrl.u32 %v1832, 7
  %v1834 = vsub.s32 7, %v1833
  %v1835 = vrot.slane %v1641, %v1834
  %v1836 = vlaneseq
  %v1837 = vshrl.u32 %v1836, 7
  %v1838 = vsub.s32 1, %v1837
  %v1839 = vrot.slane %v1642, %v1838
  %v1840 = vlaneseq
  %v1841 = vshrl.u32 %v1840, 7
  %v1842 = vsub.s32 3, %v1841
  %v1843 = vrot.slane %v1642, %v1842
  %v1844 = vlaneseq
  %v1845 = vshrl.u32 %v1844, 7
  %v1846 = vsub.s32 5, %v1845
  %v1847 = vrot.slane %v1642, %v1846
  %v1855 = vlaneseq
  %v1856 = vshrl.u32 %v1855, 7
  %v1857 = vsub.s32 1, %v1856
  %v1858 = vrot.slane %v1823, %v1857
  %v1859 = vlaneseq
  %v1860 = vshrl.u32 %v1859, 7
  %v1861 = vsub.s32 1, %v1860
  %v1862 = vrot.slane %v1827, %v1861
  %v1863 = vlaneseq
  %v1864 = vshrl.u32 %v1863, 7
  %v1865 = vsub.s32 1, %v1864
  %v1866 = vrot.slane %v1831, %v1865
  %v1867 = vlaneseq
  %v1868 = vshrl.u32 %v1867, 7
  %v1869 = vsub.s32 1, %v1868
  %v1870 = vrot.slane %v1835, %v1869
  %v1871 = vlaneseq
  %v1872 = vshrl.u32 %v1871, 7
  %v1873 = vsub.s32 1, %v1872
  %v1874 = vrot.slane %v1839, %v1873
  %v1875 = vlaneseq
  %v1876 = vshrl.u32 %v1875, 7
  %v1877 = vsub.s32 1, %v1876
  %v1878 = vrot.slane %v1843, %v1877
  %v1879 = vlaneseq
  %v1880 = vshrl.u32 %v1879, 7
  %v1881 = vsub.s32 1, %v1880
  %v1882 = vrot.slane %v1847, %v1881
  %v1883 = vsub.f32 %v38, %v1858
  %v1884 = vsub.f32 %v38, %v1862
  %v1885 = vsub.f32 %v38, %v1866
  %v1886 = vsub.f32 %v38, %v1870
  %v1887 = vsub.f32 %v38, %v1874
  %v1888 = vsub.f32 %v38, %v1878
  %v1889 = vsub.f32 %v38, %v1882
  %v1890 = vsub.f32 %v39, %v1858
  %v1891 = vsub.f32 %v39, %v1862
  %v1892 = vsub.f32 %v39, %v1866
  %v1893 = vsub.f32 %v39, %v1870
  %v1894 = vsub.f32 %v39, %v1874
  %v1895 = vsub.f32 %v39, %v1878
  %v1896 = vsub.f32 %v39, %v1882
  %v1897 = vsub.f32 %v40, %v1858
  %v1898 = vsub.f32 %v40, %v1862
  %v1899 = vsub.f32 %v40, %v1866
  %v1900 = vsub.f32 %v40, %v1870
  %v1901 = vsub.f32 %v40, %v1874
  %v1902 = vsub.f32 %v40, %v1878
  %v1903 = vsub.f32 %v40, %v1882
  %v1904 = vsub.f32 %v41, %v1858
  %v1905 = vsub.f32 %v41, %v1862
  %v1906 = vsub.f32 %v41, %v1866
  %v1907 = vsub.f32 %v41, %v1870
  %v1908 = vsub.f32 %v41, %v1874
  %v1909 = vsub.f32 %v41, %v1878
  %v1910 = vsub.f32 %v41, %v1882
  %v1911 = vand.u32 2147483647, %v1883
  %v1912 = vand.u32 2147483647, %v1884
  %v1913 = vand.u32 2147483647, %v1885
  %v1914 = vand.u32 2147483647, %v1886
  %v1915 = vand.u32 2147483647, %v1887
  %v1916 = vand.u32 2147483647, %v1888
  %v1917 = vand.u32 2147483647, %v1889
  %v1918 = vand.u32 2147483647, %v1890
  %v1919 = vand.u32 2147483647, %v1891
  %v1920 = vand.u32 2147483647, %v1892
  %v1921 = vand.u32 2147483647, %v1893
  %v1922 = vand.u32 2147483647, %v1894
  %v1923 = vand.u32 2147483647, %v1895
  %v1924 = vand.u32 2147483647, %v1896
  %v1925 = vand.u32 2147483647, %v1897
  %v1926 = vand.u32 2147483647, %v1898
  %v1927 = vand.u32 2147483647, %v1899
  %v1928 = vand.u32 2147483647, %v1900
  %v1929 = vand.u32 2147483647, %v1901
  %v1930 = vand.u32 2147483647, %v1902
  %v1931 = vand.u32 2147483647, %v1903
  %v1932 = vand.u32 2147483647, %v1904
  %v1933 = vand.u32 2147483647, %v1905
  %v1934 = vand.u32 2147483647, %v1906
  %v1935 = vand.u32 2147483647, %v1907
  %v1936 = vand.u32 2147483647, %v1908
  %v1937 = vand.u32 2147483647, %v1909
  %v1938 = vand.u32 2147483647, %v1910
  %v1939 = vsub.f32 1.0, %v1911
  %v1940 = vsub.f32 1.0, %v1912
  %v1941 = vsub.f32 1.0, %v1913
  %v1942 = vsub.f32 1.0, %v1914
  %v1943 = vsub.f32 1.0, %v1915
  %v1944 = vsub.f32 1.0, %v1916
  %v1945 = vsub.f32 1.0, %v1917
  %v1946 = vsub.f32 1.0, %v1918
  %v1947 = vsub.f32 1.0, %v1919
  %v1948 = vsub.f32 1.0, %v1920
  %v1949 = vsub.f32 1.0, %v1921
  %v1950 = vsub.f32 1.0, %v1922
  %v1951 = vsub.f32 1.0, %v1923
  %v1952 = vsub.f32 1.0, %v1924
  %v1953 = vsub.f32 1.0, %v1925
  %v1954 = vsub.f32 1.0, %v1926
  %v1955 = vsub.f32 1.0, %v1927
  %v1956 = vsub.f32 1.0, %v1928
  %v1957 = vsub.f32 1.0, %v1929
  %v1958 = vsub.f32 1.0, %v1930
  %v1959 = vsub.f32 1.0, %v1931
  %v1960 = vsub.f32 1.0, %v1932
  %v1961 = vsub.f32 1.0, %v1933
  %v1962 = vsub.f32 1.0, %v1934
  %v1963 = vsub.f32 1.0, %v1935
  %v1964 = vsub.f32 1.0, %v1936
  %v1965 = vsub.f32 1.0, %v1937
  %v1966 = vsub.f32 1.0, %v1938
  %v1967 = vmax.f32 %v1939, 0.0
  %v1968 = vmax.f32 %v1940, 0.0
  %v1969 = vmax.f32 %v1941, 0.0
  %v1970 = vmax.f32 %v1942, 0.0
  %v1971 = vmax.f32 %v1943, 0.0
  %v1972 = vmax.f32 %v1944, 0.0
  %v1973 = vmax.f32 %v1945, 0.0
  %v1974 = vmax.f32 %v1946, 0.0
  %v1975 = vmax.f32 %v1947, 0.0
  %v1976 = vmax.f32 %v1948, 0.0
  %v1977 = vmax.f32 %v1949, 0.0
  %v1978 = vmax.f32 %v1950, 0.0
  %v1979 = vmax.f32 %v1951, 0.0
  %v1980 = vmax.f32 %v1952, 0.0
  %v1981 = vmax.f32 %v1953, 0.0
  %v1982 = vmax.f32 %v1954, 0.0
  %v1983 = vmax.f32 %v1955, 0.0
  %v1984 = vmax.f32 %v1956, 0.0
  %v1985 = vmax.f32 %v1957, 0.0
  %v1986 = vmax.f32 %v1958, 0.0
  %v1987 = vmax.f32 %v1959, 0.0
  %v1988 = vmax.f32 %v1960, 0.0
  %v1989 = vmax.f32 %v1961, 0.0
  %v1990 = vmax.f32 %v1962, 0.0
  %v1991 = vmax.f32 %v1963, 0.0
  %v1992 = vmax.f32 %v1964, 0.0
  %v1993 = vmax.f32 %v1965, 0.0
  %v1994 = vmax.f32 %v1966, 0.0
  %s1995 = scalar_lea.vmem %s3, 32
  %v1996 = vld [vmem:[%s1995] sm:$0xff]
  %v1997 = vld [vmem:[%s1995 + $0x8] sm:$0xff]
  %v1998 = vld [vmem:[%s1995 + $0x10] sm:$0xff]
  %v1999 = vld [vmem:[%s1995 + $0x18] sm:$0xf]
  %v2001 = vsel %vm756, %v1996, 0
  %v2004 = vsel %vm756, %v1997, 0
  %v2007 = vsel %vm756, %v1998, 0
  %v2010 = vsel %vm756, %v1999, 0
  %v2013 = vsel %vm769, %v1813, 0
  %v2016 = vsel %vm769, %v1814, 0
  %v2019 = vsel %vm769, %v1815, 0
  %v2022 = vsel %vm769, %v1816, 0
  %v2025 = vsel %vm769, %v1817, 0
  %v2028 = vsel %vm769, %v1818, 0
  %v2031 = vsel %vm769, %v1819, 0
  %2033 = vmatprep.subr.mxu0 %v1793
  %2034 = vmatpush1.msra.mxu0 %v1792
  %2035 = vmatprep.subr.mxu0 %v1800
  %2036 = vmatpush1.msra.mxu0 %v1799
  %2037 = vmatprep.subr.mxu0 %v1807
  %2038 = vmatpush1.msra.mxu0 %v1806
  %2039 = vmatprep.subr.mxu0 %v2016
  %2040 = vmatpush1.msra.mxu0 %v2013
  %2041 = vmatprep.subr.mxu0 0.0
  %2042 = vmatpush1.msra.mxu0 0.0
  %2043 = vmatprep.subr.mxu0 0.0
  %2044 = vmatpush1.msra.mxu0 0.0
  %2045 = vmatprep.subr.mxu0 0.0
  %2046 = vmatpush1.msra.mxu0 0.0
  %2047 = vmatprep.subr.mxu0 0.0
  %2048 = vmatpush1.msra.mxu0 0.0
  %2049 = vmatprep.subr.mxu0 0.0
  %2050 = vmatpush1.msra.mxu0 0.0
  %2051 = vmatprep.subr.mxu0 0.0
  %2052 = vmatpush1.msra.mxu0 0.0
  %2053 = vmatprep.subr.mxu0 0.0
  %2054 = vmatpush1.msra.mxu0 0.0
  %2055 = vmatprep.subr.mxu0 0.0
  %2056 = vmatpush1.msra.mxu0 0.0
  %2057 = vmatprep.subr.mxu0 0.0
  %2058 = vmatpush1.msra.mxu0 0.0
  %2059 = vmatprep.subr.mxu0 0.0
  %2060 = vmatpush1.msra.mxu0 0.0
  %2061 = vmatprep.subr.mxu0 0.0
  %2062 = vmatpush1.msra.mxu0 0.0
  %2063 = vmatprep.subr.mxu0 0.0
  %2064 = vmatpush1.msra.mxu0 0.0
  %2065 = vmatprep.subr.mxu0 0.0
  %2066 = vmatpush1.msra.mxu0 0.0
  %2067 = vmatprep.subr.mxu0 0.0
  %2068 = vmatpush1.msra.mxu0 0.0
  %2069 = vmatprep.subr.mxu0 0.0
  %2070 = vmatpush1.msra.mxu0 0.0
  %2071 = vmatprep.subr.mxu0 0.0
  %2072 = vmatpush1.msra.mxu0 0.0
  %2073 = vmatprep.subr.mxu0 0.0
  %2074 = vmatpush1.msra.mxu0 0.0
  %2075 = vmatprep.subr.mxu0 0.0
  %2076 = vmatpush1.msra.mxu0 0.0
  %2077 = vmatprep.subr.mxu0 0.0
  %2078 = vmatpush1.msra.mxu0 0.0
  %2079 = vmatprep.subr.mxu0 0.0
  %2080 = vmatpush1.msra.mxu0 0.0
  %2081 = vmatprep.subr.mxu0 0.0
  %2082 = vmatpush1.msra.mxu0 0.0
  %2083 = vmatprep.subr.mxu0 0.0
  %2084 = vmatpush1.msra.mxu0 0.0
  %2085 = vmatprep.subr.mxu0 0.0
  %2086 = vmatpush1.msra.mxu0 0.0
  %2087 = vmatprep.subr.mxu0 0.0
  %2088 = vmatpush1.msra.mxu0 0.0
  %2089 = vmatprep.subr.mxu0 0.0
  %2090 = vmatpush1.msra.mxu0 0.0
  %2091 = vmatprep.subr.mxu0 0.0
  %2092 = vmatpush1.msra.mxu0 0.0
  %2093 = vmatprep.subr.mxu0 0.0
  %2094 = vmatpush1.msra.mxu0 0.0
  %2095 = vmatprep.subr.mxu0 0.0
  %2096 = vmatpush1.msra.mxu0 0.0
  %2097 = vmatprep.mubr.f32.mxu0 0.0
  %2098 = vmatmul.mubr.f32.gmra.mrb[0].mxu0 %v2001
  %v2099 = vpop.f32.mrb[0].mxu0
  %v2100 = vadd.f32 0.0, %v2099
  %v2101 = vpop.f32.mrb[0].mxu0
  %v2102 = vadd.f32 0.0, %v2101
  %2103 = vmatprep.mubr.f32.mxu0 0.0
  %2104 = vmatmul.mubr.f32.gmra.mrb[0].mxu0 %v2004
  %v2105 = vpop.f32.mrb[0].mxu0
  %v2106 = vadd.f32 0.0, %v2105
  %v2107 = vpop.f32.mrb[0].mxu0
  %v2108 = vadd.f32 0.0, %v2107
  %2109 = vmatprep.mubr.f32.mxu0 0.0
  %2110 = vmatmul.mubr.f32.gmra.mrb[0].mxu0 %v2007
  %v2111 = vpop.f32.mrb[0].mxu0
  %v2112 = vadd.f32 0.0, %v2111
  %v2113 = vpop.f32.mrb[0].mxu0
  %v2114 = vadd.f32 0.0, %v2113
  %2115 = vmatprep.mubr.f32.mxu0 0.0
  %2116 = vmatmul.mubr.f32.gmra.mrb[0].mxu0 %v2010
  %v2117 = vpop.f32.mrb[0].mxu0
  %v2118 = vadd.f32 0.0, %v2117
  %v2119 = vpop.f32.mrb[0].mxu0
  %v2120 = vadd.f32 0.0, %v2119
  %2121 = vdwg.mxu0
  %2122 = vmatprep.subr.mxu0 %v1795
  %2123 = vmatpush1.msra.mxu0 %v1794
  %2124 = vmatprep.subr.mxu0 %v1802
  %2125 = vmatpush1.msra.mxu0 %v1801
  %2126 = vmatprep.subr.mxu0 %v1809
  %2127 = vmatpush1.msra.mxu0 %v1808
  %2128 = vmatprep.subr.mxu0 %v2022
  %2129 = vmatpush1.msra.mxu0 %v2019
  %2130 = vmatprep.subr.mxu0 0.0
  %2131 = vmatpush1.msra.mxu0 0.0
  %2132 = vmatprep.subr.mxu0 0.0
  %2133 = vmatpush1.msra.mxu0 0.0
  %2134 = vmatprep.subr.mxu0 0.0
  %2135 = vmatpush1.msra.mxu0 0.0
  %2136 = vmatprep.subr.mxu0 0.0
  %2137 = vmatpush1.msra.mxu0 0.0
  %2138 = vmatprep.subr.mxu0 0.0
  %2139 = vmatpush1.msra.mxu0 0.0
  %2140 = vmatprep.subr.mxu0 0.0
  %2141 = vmatpush1.msra.mxu0 0.0
  %2142 = vmatprep.subr.mxu0 0.0
  %2143 = vmatpush1.msra.mxu0 0.0
  %2144 = vmatprep.subr.mxu0 0.0
  %2145 = vmatpush1.msra.mxu0 0.0
  %2146 = vmatprep.subr.mxu0 0.0
  %2147 = vmatpush1.msra.mxu0 0.0
  %2148 = vmatprep.subr.mxu0 0.0
  %2149 = vmatpush1.msra.mxu0 0.0
  %2150 = vmatprep.subr.mxu0 0.0
  %2151 = vmatpush1.msra.mxu0 0.0
  %2152 = vmatprep.subr.mxu0 0.0
  %2153 = vmatpush1.msra.mxu0 0.0
  %2154 = vmatprep.subr.mxu0 0.0
  %2155 = vmatpush1.msra.mxu0 0.0
  %2156 = vmatprep.subr.mxu0 0.0
  %2157 = vmatpush1.msra.mxu0 0.0
  %2158 = vmatprep.subr.mxu0 0.0
  %2159 = vmatpush1.msra.mxu0 0.0
  %2160 = vmatprep.subr.mxu0 0.0
  %2161 = vmatpush1.msra.mxu0 0.0
  %2162 = vmatprep.subr.mxu0 0.0
  %2163 = vmatpush1.msra.mxu0 0.0
  %2164 = vmatprep.subr.mxu0 0.0
  %2165 = vmatpush1.msra.mxu0 0.0
  %2166 = vmatprep.subr.mxu0 0.0
  %2167 = vmatpush1.msra.mxu0 0.0
  %2168 = vmatprep.subr.mxu0 0.0
  %2169 = vmatpush1.msra.mxu0 0.0
  %2170 = vmatprep.subr.mxu0 0.0
  %2171 = vmatpush1.msra.mxu0 0.0
  %2172 = vmatprep.subr.mxu0 0.0
  %2173 = vmatpush1.msra.mxu0 0.0
  %2174 = vmatprep.subr.mxu0 0.0
  %2175 = vmatpush1.msra.mxu0 0.0
  %2176 = vmatprep.subr.mxu0 0.0
  %2177 = vmatpush1.msra.mxu0 0.0
  %2178 = vmatprep.subr.mxu0 0.0
  %2179 = vmatpush1.msra.mxu0 0.0
  %2180 = vmatprep.subr.mxu0 0.0
  %2181 = vmatpush1.msra.mxu0 0.0
  %2182 = vmatprep.subr.mxu0 0.0
  %2183 = vmatpush1.msra.mxu0 0.0
  %2184 = vmatprep.subr.mxu0 0.0
  %2185 = vmatpush1.msra.mxu0 0.0
  %2186 = vmatprep.mubr.f32.mxu0 0.0
  %2187 = vmatmul.mubr.f32.gmra.mrb[0].mxu0 %v2001
  %v2188 = vpop.f32.mrb[0].mxu0
  %v2189 = vadd.f32 0.0, %v2188
  %v2190 = vpop.f32.mrb[0].mxu0
  %v2191 = vadd.f32 0.0, %v2190
  %2192 = vmatprep.mubr.f32.mxu0 0.0
  %2193 = vmatmul.mubr.f32.gmra.mrb[0].mxu0 %v2004
  %v2194 = vpop.f32.mrb[0].mxu0
  %v2195 = vadd.f32 0.0, %v2194
  %v2196 = vpop.f32.mrb[0].mxu0
  %v2197 = vadd.f32 0.0, %v2196
  %2198 = vmatprep.mubr.f32.mxu0 0.0
  %2199 = vmatmul.mubr.f32.gmra.mrb[0].mxu0 %v2007
  %v2200 = vpop.f32.mrb[0].mxu0
  %v2201 = vadd.f32 0.0, %v2200
  %v2202 = vpop.f32.mrb[0].mxu0
  %v2203 = vadd.f32 0.0, %v2202
  %2204 = vmatprep.mubr.f32.mxu0 0.0
  %2205 = vmatmul.mubr.f32.gmra.mrb[0].mxu0 %v2010
  %v2206 = vpop.f32.mrb[0].mxu0
  %v2207 = vadd.f32 0.0, %v2206
  %v2208 = vpop.f32.mrb[0].mxu0
  %v2209 = vadd.f32 0.0, %v2208
  %2210 = vdwg.mxu0
  %2211 = vmatprep.subr.mxu0 %v1797
  %2212 = vmatpush1.msra.mxu0 %v1796
  %2213 = vmatprep.subr.mxu0 %v1804
  %2214 = vmatpush1.msra.mxu0 %v1803
  %2215 = vmatprep.subr.mxu0 %v1811
  %2216 = vmatpush1.msra.mxu0 %v1810
  %2217 = vmatprep.subr.mxu0 %v2028
  %2218 = vmatpush1.msra.mxu0 %v2025
  %2219 = vmatprep.subr.mxu0 0.0
  %2220 = vmatpush1.msra.mxu0 0.0
  %2221 = vmatprep.subr.mxu0 0.0
  %2222 = vmatpush1.msra.mxu0 0.0
  %2223 = vmatprep.subr.mxu0 0.0
  %2224 = vmatpush1.msra.mxu0 0.0
  %2225 = vmatprep.subr.mxu0 0.0
  %2226 = vmatpush1.msra.mxu0 0.0
  %2227 = vmatprep.subr.mxu0 0.0
  %2228 = vmatpush1.msra.mxu0 0.0
  %2229 = vmatprep.subr.mxu0 0.0
  %2230 = vmatpush1.msra.mxu0 0.0
  %2231 = vmatprep.subr.mxu0 0.0
  %2232 = vmatpush1.msra.mxu0 0.0
  %2233 = vmatprep.subr.mxu0 0.0
  %2234 = vmatpush1.msra.mxu0 0.0
  %2235 = vmatprep.subr.mxu0 0.0
  %2236 = vmatpush1.msra.mxu0 0.0
  %2237 = vmatprep.subr.mxu0 0.0
  %2238 = vmatpush1.msra.mxu0 0.0
  %2239 = vmatprep.subr.mxu0 0.0
  %2240 = vmatpush1.msra.mxu0 0.0
  %2241 = vmatprep.subr.mxu0 0.0
  %2242 = vmatpush1.msra.mxu0 0.0
  %2243 = vmatprep.subr.mxu0 0.0
  %2244 = vmatpush1.msra.mxu0 0.0
  %2245 = vmatprep.subr.mxu0 0.0
  %2246 = vmatpush1.msra.mxu0 0.0
  %2247 = vmatprep.subr.mxu0 0.0
  %2248 = vmatpush1.msra.mxu0 0.0
  %2249 = vmatprep.subr.mxu0 0.0
  %2250 = vmatpush1.msra.mxu0 0.0
  %2251 = vmatprep.subr.mxu0 0.0
  %2252 = vmatpush1.msra.mxu0 0.0
  %2253 = vmatprep.subr.mxu0 0.0
  %2254 = vmatpush1.msra.mxu0 0.0
  %2255 = vmatprep.subr.mxu0 0.0
  %2256 = vmatpush1.msra.mxu0 0.0
  %2257 = vmatprep.subr.mxu0 0.0
  %2258 = vmatpush1.msra.mxu0 0.0
  %2259 = vmatprep.subr.mxu0 0.0
  %2260 = vmatpush1.msra.mxu0 0.0
  %2261 = vmatprep.subr.mxu0 0.0
  %2262 = vmatpush1.msra.mxu0 0.0
  %2263 = vmatprep.subr.mxu0 0.0
  %2264 = vmatpush1.msra.mxu0 0.0
  %2265 = vmatprep.subr.mxu0 0.0
  %2266 = vmatpush1.msra.mxu0 0.0
  %2267 = vmatprep.subr.mxu0 0.0
  %2268 = vmatpush1.msra.mxu0 0.0
  %2269 = vmatprep.subr.mxu0 0.0
  %2270 = vmatpush1.msra.mxu0 0.0
  %2271 = vmatprep.subr.mxu0 0.0
  %2272 = vmatpush1.msra.mxu0 0.0
  %2273 = vmatprep.subr.mxu0 0.0
  %2274 = vmatpush1.msra.mxu0 0.0
  %2275 = vmatprep.mubr.f32.mxu0 0.0
  %2276 = vmatmul.mubr.f32.gmra.mrb[0].mxu0 %v2001
  %v2277 = vpop.f32.mrb[0].mxu0
  %v2278 = vadd.f32 0.0, %v2277
  %v2279 = vpop.f32.mrb[0].mxu0
  %v2280 = vadd.f32 0.0, %v2279
  %2281 = vmatprep.mubr.f32.mxu0 0.0
  %2282 = vmatmul.mubr.f32.gmra.mrb[0].mxu0 %v2004
  %v2283 = vpop.f32.mrb[0].mxu0
  %v2284 = vadd.f32 0.0, %v2283
  %v2285 = vpop.f32.mrb[0].mxu0
  %v2286 = vadd.f32 0.0, %v2285
  %2287 = vmatprep.mubr.f32.mxu0 0.0
  %2288 = vmatmul.mubr.f32.gmra.mrb[0].mxu0 %v2007
  %v2289 = vpop.f32.mrb[0].mxu0
  %v2290 = vadd.f32 0.0, %v2289
  %v2291 = vpop.f32.mrb[0].mxu0
  %v2292 = vadd.f32 0.0, %v2291
  %2293 = vmatprep.mubr.f32.mxu0 0.0
  %2294 = vmatmul.mubr.f32.gmra.mrb[0].mxu0 %v2010
  %v2295 = vpop.f32.mrb[0].mxu0
  %v2296 = vadd.f32 0.0, %v2295
  %v2297 = vpop.f32.mrb[0].mxu0
  %v2298 = vadd.f32 0.0, %v2297
  %2299 = vdwg.mxu0
  %2300 = vmatprep.subr.mxu0 0.0
  %2301 = vmatpush1.msra.mxu0 %v1798
  %2302 = vmatprep.subr.mxu0 0.0
  %2303 = vmatpush1.msra.mxu0 %v1805
  %2304 = vmatprep.subr.mxu0 0.0
  %2305 = vmatpush1.msra.mxu0 %v1812
  %2306 = vmatprep.subr.mxu0 0.0
  %2307 = vmatpush1.msra.mxu0 %v2031
  %2308 = vmatprep.subr.mxu0 0.0
  %2309 = vmatpush1.msra.mxu0 0.0
  %2310 = vmatprep.subr.mxu0 0.0
  %2311 = vmatpush1.msra.mxu0 0.0
  %2312 = vmatprep.subr.mxu0 0.0
  %2313 = vmatpush1.msra.mxu0 0.0
  %2314 = vmatprep.subr.mxu0 0.0
  %2315 = vmatpush1.msra.mxu0 0.0
  %2316 = vmatprep.subr.mxu0 0.0
  %2317 = vmatpush1.msra.mxu0 0.0
  %2318 = vmatprep.subr.mxu0 0.0
  %2319 = vmatpush1.msra.mxu0 0.0
  %2320 = vmatprep.subr.mxu0 0.0
  %2321 = vmatpush1.msra.mxu0 0.0
  %2322 = vmatprep.subr.mxu0 0.0
  %2323 = vmatpush1.msra.mxu0 0.0
  %2324 = vmatprep.subr.mxu0 0.0
  %2325 = vmatpush1.msra.mxu0 0.0
  %2326 = vmatprep.subr.mxu0 0.0
  %2327 = vmatpush1.msra.mxu0 0.0
  %2328 = vmatprep.subr.mxu0 0.0
  %2329 = vmatpush1.msra.mxu0 0.0
  %2330 = vmatprep.subr.mxu0 0.0
  %2331 = vmatpush1.msra.mxu0 0.0
  %2332 = vmatprep.subr.mxu0 0.0
  %2333 = vmatpush1.msra.mxu0 0.0
  %2334 = vmatprep.subr.mxu0 0.0
  %2335 = vmatpush1.msra.mxu0 0.0
  %2336 = vmatprep.subr.mxu0 0.0
  %2337 = vmatpush1.msra.mxu0 0.0
  %2338 = vmatprep.subr.mxu0 0.0
  %2339 = vmatpush1.msra.mxu0 0.0
  %2340 = vmatprep.subr.mxu0 0.0
  %2341 = vmatpush1.msra.mxu0 0.0
  %2342 = vmatprep.subr.mxu0 0.0
  %2343 = vmatpush1.msra.mxu0 0.0
  %2344 = vmatprep.subr.mxu0 0.0
  %2345 = vmatpush1.msra.mxu0 0.0
  %2346 = vmatprep.subr.mxu0 0.0
  %2347 = vmatpush1.msra.mxu0 0.0
  %2348 = vmatprep.subr.mxu0 0.0
  %2349 = vmatpush1.msra.mxu0 0.0
  %2350 = vmatprep.subr.mxu0 0.0
  %2351 = vmatpush1.msra.mxu0 0.0
  %2352 = vmatprep.subr.mxu0 0.0
  %2353 = vmatpush1.msra.mxu0 0.0
  %2354 = vmatprep.subr.mxu0 0.0
  %2355 = vmatpush1.msra.mxu0 0.0
  %2356 = vmatprep.subr.mxu0 0.0
  %2357 = vmatpush1.msra.mxu0 0.0
  %2358 = vmatprep.subr.mxu0 0.0
  %2359 = vmatpush1.msra.mxu0 0.0
  %2360 = vmatprep.subr.mxu0 0.0
  %2361 = vmatpush1.msra.mxu0 0.0
  %2362 = vmatprep.subr.mxu0 0.0
  %2363 = vmatpush1.msra.mxu0 0.0
  %2364 = vmatprep.mubr.f32.mxu0 0.0
  %2365 = vmatmul.mubr.f32.gmra.mrb[0].mxu0 %v2001
  %v2366 = vpop.f32.mrb[0].mxu0
  %v2367 = vadd.f32 0.0, %v2366
  %v2368 = vpop.f32.mrb[0].mxu0
  %2369 = vmatprep.mubr.f32.mxu0 0.0
  %2370 = vmatmul.mubr.f32.gmra.mrb[0].mxu0 %v2004
  %v2371 = vpop.f32.mrb[0].mxu0
  %v2372 = vadd.f32 0.0, %v2371
  %v2373 = vpop.f32.mrb[0].mxu0
  %2374 = vmatprep.mubr.f32.mxu0 0.0
  %2375 = vmatmul.mubr.f32.gmra.mrb[0].mxu0 %v2007
  %v2376 = vpop.f32.mrb[0].mxu0
  %v2377 = vadd.f32 0.0, %v2376
  %v2378 = vpop.f32.mrb[0].mxu0
  %2379 = vmatprep.mubr.f32.mxu0 0.0
  %2380 = vmatmul.mubr.f32.gmra.mrb[0].mxu0 %v2010
  %v2381 = vpop.f32.mrb[0].mxu0
  %v2382 = vadd.f32 0.0, %v2381
  %v2383 = vpop.f32.mrb[0].mxu0
  %2384 = vdwg.mxu0
  %v2385 = vmul.f32 %v2100, %v1967
  %v2386 = vmul.f32 %v2102, %v1968
  %v2387 = vmul.f32 %v2189, %v1969
  %v2388 = vmul.f32 %v2191, %v1970
  %v2389 = vmul.f32 %v2278, %v1971
  %v2390 = vmul.f32 %v2280, %v1972
  %v2391 = vmul.f32 %v2367, %v1973
  %v2392 = vmul.f32 %v2106, %v1974
  %v2393 = vmul.f32 %v2108, %v1975
  %v2394 = vmul.f32 %v2195, %v1976
  %v2395 = vmul.f32 %v2197, %v1977
  %v2396 = vmul.f32 %v2284, %v1978
  %v2397 = vmul.f32 %v2286, %v1979
  %v2398 = vmul.f32 %v2372, %v1980
  %v2399 = vmul.f32 %v2112, %v1981
  %v2400 = vmul.f32 %v2114, %v1982
  %v2401 = vmul.f32 %v2201, %v1983
  %v2402 = vmul.f32 %v2203, %v1984
  %v2403 = vmul.f32 %v2290, %v1985
  %v2404 = vmul.f32 %v2292, %v1986
  %v2405 = vmul.f32 %v2377, %v1987
  %v2406 = vmul.f32 %v2118, %v1988
  %v2407 = vmul.f32 %v2120, %v1989
  %v2408 = vmul.f32 %v2207, %v1990
  %v2409 = vmul.f32 %v2209, %v1991
  %v2410 = vmul.f32 %v2296, %v1992
  %v2411 = vmul.f32 %v2298, %v1993
  %v2412 = vmul.f32 %v2382, %v1994
  %v2413 = vadd.f32 %v2385, %v2392
  %v2414 = vadd.f32 %v2413, %v2399
  %v2415 = vsel %vm769, %v2406, 0.0
  %v2416 = vadd.f32 %v2414, %v2415
  %v2417 = vrot.slane %v2416, 4
  %v2418 = vadd.f32 %v2416, %v2417
  %v2419 = vrot.slane %v2418, 2
  %v2420 = vadd.f32 %v2418, %v2419
  %v2421 = vrot.slane %v2420, 1
  %v2422 = vadd.f32 %v2420, %v2421
  %v2423 = vadd.f32 %v2386, %v2393
  %v2424 = vadd.f32 %v2423, %v2400
  %v2425 = vsel %vm769, %v2407, 0.0
  %v2426 = vadd.f32 %v2424, %v2425
  %v2427 = vrot.slane %v2426, 4
  %v2428 = vadd.f32 %v2426, %v2427
  %v2429 = vrot.slane %v2428, 2
  %v2430 = vadd.f32 %v2428, %v2429
  %v2431 = vrot.slane %v2430, 1
  %v2432 = vadd.f32 %v2430, %v2431
  %v2433 = vadd.f32 %v2387, %v2394
  %v2434 = vadd.f32 %v2433, %v2401
  %v2435 = vsel %vm769, %v2408, 0.0
  %v2436 = vadd.f32 %v2434, %v2435
  %v2437 = vrot.slane %v2436, 4
  %v2438 = vadd.f32 %v2436, %v2437
  %v2439 = vrot.slane %v2438, 2
  %v2440 = vadd.f32 %v2438, %v2439
  %v2441 = vrot.slane %v2440, 1
  %v2442 = vadd.f32 %v2440, %v2441
  %v2443 = vadd.f32 %v2388, %v2395
  %v2444 = vadd.f32 %v2443, %v2402
  %v2445 = vsel %vm769, %v2409, 0.0
  %v2446 = vadd.f32 %v2444, %v2445
  %v2447 = vrot.slane %v2446, 4
  %v2448 = vadd.f32 %v2446, %v2447
  %v2449 = vrot.slane %v2448, 2
  %v2450 = vadd.f32 %v2448, %v2449
  %v2451 = vrot.slane %v2450, 1
  %v2452 = vadd.f32 %v2450, %v2451
  %v2453 = vadd.f32 %v2389, %v2396
  %v2454 = vadd.f32 %v2453, %v2403
  %v2455 = vsel %vm769, %v2410, 0.0
  %v2456 = vadd.f32 %v2454, %v2455
  %v2457 = vrot.slane %v2456, 4
  %v2458 = vadd.f32 %v2456, %v2457
  %v2459 = vrot.slane %v2458, 2
  %v2460 = vadd.f32 %v2458, %v2459
  %v2461 = vrot.slane %v2460, 1
  %v2462 = vadd.f32 %v2460, %v2461
  %v2463 = vadd.f32 %v2390, %v2397
  %v2464 = vadd.f32 %v2463, %v2404
  %v2465 = vsel %vm769, %v2411, 0.0
  %v2466 = vadd.f32 %v2464, %v2465
  %v2467 = vrot.slane %v2466, 4
  %v2468 = vadd.f32 %v2466, %v2467
  %v2469 = vrot.slane %v2468, 2
  %v2470 = vadd.f32 %v2468, %v2469
  %v2471 = vrot.slane %v2470, 1
  %v2472 = vadd.f32 %v2470, %v2471
  %v2473 = vsel %vm1231, %v2391, 0.0
  %v2474 = vsel %vm1231, %v2398, 0.0
  %v2475 = vadd.f32 %v2473, %v2474
  %v2476 = vsel %vm1231, %v2405, 0.0
  %v2477 = vadd.f32 %v2475, %v2476
  %v2478 = vsel %vm1237, %v2412, 0.0
  %v2479 = vadd.f32 %v2477, %v2478
  %v2480 = vrot.slane %v2479, 4
  %v2481 = vadd.f32 %v2479, %v2480
  %v2482 = vrot.slane %v2481, 2
  %v2483 = vadd.f32 %v2481, %v2482
  %v2484 = vrot.slane %v2483, 1
  %v2485 = vadd.f32 %v2483, %v2484
  %v2493 = vcombine.low %v2422, %v2432
  %v2494 = vcombine.low %v2442, %v2452
  %v2495 = vcombine.low %v2462, %v2472
  %v2497 = vunpack.c.l.s4 1966171168
  %v2498 = vunpack.c.0.s8 %v2497
  %v2499 = vlaneseq
  %v2500 = vshrl.u32 %v2499, 7
  %v2501 = vsub.s32 %v2498, %v2500
  %v2502 = vrot.slane %v2493, %v2501
  %v2504 = vunpack.c.l.s4 1966171168
  %v2505 = vunpack.c.0.s8 %v2504
  %v2506 = vlaneseq
  %v2507 = vshrl.u32 %v2506, 7
  %v2508 = vsub.s32 %v2505, %v2507
  %v2509 = vrot.slane %v2494, %v2508
  %v2511 = vunpack.c.l.s4 1966171168
  %v2512 = vunpack.c.0.s8 %v2511
  %v2513 = vlaneseq
  %v2514 = vshrl.u32 %v2513, 7
  %v2515 = vsub.s32 %v2512, %v2514
  %v2516 = vrot.slane %v2495, %v2515
  %v2518 = vunpack.c.l.s4 1966171168
  %v2519 = vunpack.c.0.s8 %v2518
  %v2520 = vlaneseq
  %v2521 = vshrl.u32 %v2520, 7
  %v2522 = vsub.s32 %v2519, %v2521
  %v2523 = vrot.slane %v2485, %v2522
  %v2524 = vcombine.low %v2502, %v2509
  %v2525 = vcombine.low %v2516, %v2523
  %v2527 = vunpack.c.l.s4 1966171168
  %v2528 = vunpack.c.0.s8 %v2527
  %v2529 = vlaneseq
  %v2530 = vshrl.u32 %v2529, 7
  %v2531 = vsub.s32 %v2528, %v2530
  %v2532 = vrot.slane %v2524, %v2531
  %v2534 = vunpack.c.l.s4 1966171168
  %v2535 = vunpack.c.0.s8 %v2534
  %v2536 = vlaneseq
  %v2537 = vshrl.u32 %v2536, 7
  %v2538 = vsub.s32 %v2535, %v2537
  %v2539 = vrot.slane %v2525, %v2538
  %v2540 = vcombine.low %v2532, %v2539
  %s2542 = scalar_lea.vmem %s4, 1
  %2543 = vst.msk [vmem:[%s2542] ss:$2 sm:$0x7f] %vm1305, %v2540
  // Predicated region
  $region18: #{spatial_transformer_forward.7} parent=0 // pred_check
    _
  $region19: #{spatial_transformer_forward.7} parent=0 // pred_check_branch
    %2545 = sbr.rel (0) target = $region21
  $region20: #{spatial_transformer_forward.7} parent=0 // pred_region
    _
  $region21: #{spatial_transformer_forward.7} parent=0 // pred_fallthru
    _
  // Predicated region
  $region22: #{spatial_transformer_forward.7} parent=0 // pred_check
    _
  $region23: #{spatial_transformer_forward.7} parent=0 // pred_check_branch
    %2547 = sbr.rel (0) target = $region25
  $region24: #{spatial_transformer_forward.7} parent=0 // pred_region
    _
  $region25: #{spatial_transformer_forward.7} parent=0 // pred_fallthru
    _

</llo_original>
